<compile_context>
chip_gen: v5e
topology: v5e:2x2
jax: 0.10.0
libtpu: 0.0.40
codegen_flags: <defaults>
</compile_context>

<pallas_src>
import math

import numpy as np
import jax
import jax.numpy as jnp
from jax import lax
from jax.experimental import pallas as pl
from jax.experimental.pallas import tpu as pltpu

EPS = 1e-5          # PyTorch GroupNorm default eps
SIGMA = 25.0        # marginal_prob_std sigma
EMBED_DIM = 256
CHANNELS = [32, 64, 128, 256]

# fused Dense/GroupNorm parameter slab: stage order
#   [dense1/gn1, dense2/gn2, dense3/gn3, dense4/gn4, dense5/tgn4, dense6/tgn3, dense7/tgn2]
# offsets padded to multiples of 128 lanes (review item: lane-aligned slices).
STAGE_C   = [32, 64, 128, 256, 128, 64, 32]
STAGE_OFF = [0, 128, 256, 384, 640, 768, 896]
SLAB_W    = 1024


# ----------------------------- the fused kernel ------------------------------

def scorenet_kernel(
    t_ref, rstd_ref, x_ref,
    wf_ref, we_ref, be_ref, dwall_ref, dball_ref, gall_ref, ball_ref,
    w1_ref, w2_ref, w3_ref, w4_ref,
    wt4e_ref, wt4o_ref, wt3e_ref, wt3o_ref, wt2e_ref, wt2o_ref,
    wt1_ref, bt1_ref,
    a1_ref, a64_ref, a128_ref, a256_ref, a7_ref,
    o_ref,
):
    b = pl.program_id(0)
    L = x_ref.shape[0]                      # per-batch sequence length (static)

    f32, bf16 = jnp.float32, jnp.bfloat16

    def mm(a, w):
        return jnp.dot(a, w, preferred_element_type=f32)

    def swish(v):
        return v * jax.nn.sigmoid(v)

    idx = lax.broadcasted_iota(jnp.int32, (L, 1), 0)

    def not_first(d):        # zero rows [0, d): "previous" tap falls on the zero pad
        return (idx >= d).astype(f32)

    def not_last(d):         # zero rows [L-d, L): "next" tap falls on the zero pad
        return (idx < L - d).astype(f32)

    def valid(d):            # 1.0 at rows holding a real (dilated) sample; d is a power of 2
        return (jnp.bitwise_and(idx, d - 1) == 0).astype(f32)

    # ---- time embedding: GaussianFourierProjection -> Linear -> swish -------
    t_val = t_ref[b]                                           # scalar (SMEM)
    x_proj = t_val * wf_ref[...]                               # 2*pi*scale folded into Wf
    four = jnp.concatenate([jnp.sin(x_proj), jnp.cos(x_proj)], axis=1)   # (1, 256)
    e = mm(four, we_ref[...]) + be_ref[...]
    embed = swish(e)                                           # (1, 256)

    # all 7 Dense(embed) projections in one lane-aligned matmul
    tball = mm(embed, dwall_ref[...]) + dball_ref[...]         # (1, 1024)
    gall = gall_ref[...]                                       # (1, 1024)
    ball = ball_ref[...]                                       # (1, 1024)

    def gn_swish(c, off, C, a_ref, d_out):
        """+Dense(embed) bias, GroupNorm over the valid (dilated) rows, swish."""
        y = c + tball[:, off:off + C]                          # (L, C)
        ym = y if d_out == 1 else y * valid(d_out)
        s1 = jnp.sum(ym, axis=0, keepdims=True)                # (1, C) sum x
        s2 = jnp.sum(ym * ym, axis=0, keepdims=True)           # (1, C) sum x^2
        mean = mm(s1, a_ref[...])                              # group mean, per channel
        ex2 = mm(s2, a_ref[...])                               # group E[x^2], per channel
        var = jnp.maximum(ex2 - mean * mean, 0.0)              # cancellation guard
        inv = lax.rsqrt(var + EPS)
        scale = inv * gall[:, off:off + C]                     # fused scale / shift
        shift = ball[:, off:off + C] - mean * scale
        return swish(y * scale + shift)

    def conv_down(x, d_in, w_ref):
        """Conv1d(K=3, pad=1, stride 1 or 2) on the dilated full-length slab."""
        prev = pltpu.roll(x, d_in, axis=0) * not_first(d_in)
        nxt = pltpu.roll(x, L - d_in, axis=0) * not_last(d_in)
        patches = jnp.concatenate([prev, x, nxt], axis=1).astype(bf16)   # (L, 3*Cin)
        return mm(patches, w_ref[...])                                   # (L, Cout)

    def tconv_up(x, d_in, we_r, wo_r):
        """ConvTranspose1d(K=3, stride=2, pad=1, out_pad=1) via even/odd phases."""
        d_out = d_in // 2
        xm = x * valid(d_in)                                   # kill junk rows of the input
        nxt = pltpu.roll(xm, L - d_in, axis=0) * not_last(d_in)
        xb = xm.astype(bf16)
        even = mm(xb, we_r[...])                               # lands on the input rows
        odd = mm(jnp.concatenate([xb, nxt.astype(bf16)], axis=1), wo_r[...])
        return even + pltpu.roll(odd, d_out, axis=0), d_out    # odd phase shifted by d_out

    # ---- encoder -------------------------------------------------------------
    x0 = x_ref[...]                                            # (L, 32) channels-last
    h1 = gn_swish(conv_down(x0, 1, w1_ref), STAGE_OFF[0], 32, a1_ref, 1)
    h2 = gn_swish(conv_down(h1, 1, w2_ref), STAGE_OFF[1], 64, a64_ref, 2)
    h3 = gn_swish(conv_down(h2, 2, w3_ref), STAGE_OFF[2], 128, a128_ref, 4)
    h4 = gn_swish(conv_down(h3, 4, w4_ref), STAGE_OFF[3], 256, a256_ref, 8)

    # ---- decoder (skips are VMEM/vreg-resident; channel concat only) --------
    c, d = tconv_up(h4, 8, wt4e_ref, wt4o_ref)
    h = gn_swish(c, STAGE_OFF[4], 128, a128_ref, d)
    c, d = tconv_up(jnp.concatenate([h, h3], axis=1), 4, wt3e_ref, wt3o_ref)
    h = gn_swish(c, STAGE_OFF[5], 64, a64_ref, d)
    c, d = tconv_up(jnp.concatenate([h, h2], axis=1), 2, wt2e_ref, wt2o_ref)
    h = gn_swish(c, STAGE_OFF[6], 32, a7_ref, d)

    # ---- final stride-1 ConvTranspose1d (with bias) + multiply by 1/std(t) ---
    hc = jnp.concatenate([h, h1], axis=1)                      # (L, 64)
    prev = pltpu.roll(hc, 1, axis=0) * not_first(1)
    nxt = pltpu.roll(hc, L - 1, axis=0) * not_last(1)
    pf = jnp.concatenate([prev, hc, nxt], axis=1).astype(bf16) # (L, 192)
    y = mm(pf, wt1_ref[...]) + bt1_ref[...]                    # (L, 32)
    o_ref[...] = y * rstd_ref[b]


# ----------------------------- host-side parameter prep ----------------------

def _conv_w_to_mat(w):
    """Conv1d weight (Cout, Cin, K) -> (K*Cin, Cout), row blocks [k=0; k=1; k=2]."""
    Cout, Cin, K = w.shape
    return jnp.transpose(w, (2, 1, 0)).reshape(K * Cin, Cout)


def _tconv_even_mat(w_t):
    """ConvTranspose1d weight (Cin, Cout, 3), stride 2: even-phase matrix W1."""
    return w_t[:, :, 1]


def _tconv_odd_mat(w_t):
    """ConvTranspose1d weight (Cin, Cout, 3), stride 2: odd-phase matrix [W2; W0]."""
    return jnp.concatenate([w_t[:, :, 2], w_t[:, :, 0]], axis=0)


def _tconv_s1_mat(w_t):
    """ConvTranspose1d (Cin, Cout, 3), stride 1, pad 1 -> conv matrix rows [W2; W1; W0]."""
    return jnp.concatenate([w_t[:, :, 2], w_t[:, :, 1], w_t[:, :, 0]], axis=0)


def _gn_mat(C, G, Lv):
    """(C, C) block-diag group-averaging matrix: channel sums @ A = group mean/channel."""
    gs = C // G
    grp = np.arange(C) // gs
    A = (grp[:, None] == grp[None, :]).astype(np.float32) / float(gs * Lv)
    return jnp.asarray(A)


def marginal_prob_std(t):
    return jnp.sqrt((SIGMA ** (2.0 * t) - 1.0) / (2.0 * jnp.log(SIGMA)))


def _cost_estimate(B, L):
    mm_dims = [
        (1, 256, 256), (1, 256, SLAB_W),                    # embed Linear + Dense slab
        (L, 96, 32), (L, 96, 64), (L, 192, 128), (L, 384, 256),   # encoder convs
        (L, 256, 128), (L, 512, 128),                       # tconv4 even/odd
        (L, 256, 64), (L, 512, 64),                         # tconv3
        (L, 128, 32), (L, 256, 32),                         # tconv2
        (L, 192, 32),                                       # tconv1
    ]
    mm_dims += [(1, C, C) for C in STAGE_C for _ in range(2)]        # GN group means
    flops = B * sum(2 * m * k * n for m, k, n in mm_dims)
    transc = B * (2 * 256 + sum(L * C for C in STAGE_C))             # sin/cos + swish
    return int(flops), int(transc)


# ----------------------------- parameters ------------------------------------

def init_params(key):
    keys = iter(jax.random.split(key, 64))

    def nrm(shape, scale=0.05):
        return scale * jax.random.normal(next(keys), shape, jnp.float32)

    c = CHANNELS
    p = {}
    p['Wf'] = 30.0 * jax.random.normal(next(keys), (EMBED_DIM // 2,), jnp.float32)
    p['We'] = nrm((EMBED_DIM, EMBED_DIM))
    p['be'] = nrm((EMBED_DIM,))
    p['conv1_w'] = nrm((c[0], 32, 3))
    p['d1_w'] = nrm((EMBED_DIM, c[0])); p['d1_b'] = nrm((c[0],))
    p['gn1_g'] = jnp.ones((c[0],), jnp.float32); p['gn1_b'] = jnp.zeros((c[0],), jnp.float32)
    p['conv2_w'] = nrm((c[1], c[0], 3))
    p['d2_w'] = nrm((EMBED_DIM, c[1])); p['d2_b'] = nrm((c[1],))
    p['gn2_g'] = jnp.ones((c[1],), jnp.float32); p['gn2_b'] = jnp.zeros((c[1],), jnp.float32)
    p['conv3_w'] = nrm((c[2], c[1], 3))
    p['d3_w'] = nrm((EMBED_DIM, c[2])); p['d3_b'] = nrm((c[2],))
    p['gn3_g'] = jnp.ones((c[2],), jnp.float32); p['gn3_b'] = jnp.zeros((c[2],), jnp.float32)
    p['conv4_w'] = nrm((c[3], c[2], 3))
    p['d4_w'] = nrm((EMBED_DIM, c[3])); p['d4_b'] = nrm((c[3],))
    p['gn4_g'] = jnp.ones((c[3],), jnp.float32); p['gn4_b'] = jnp.zeros((c[3],), jnp.float32)
    p['tconv4_w'] = nrm((c[3], c[2], 3))
    p['d5_w'] = nrm((EMBED_DIM, c[2])); p['d5_b'] = nrm((c[2],))
    p['tgn4_g'] = jnp.ones((c[2],), jnp.float32); p['tgn4_b'] = jnp.zeros((c[2],), jnp.float32)
    p['tconv3_w'] = nrm((c[2] + c[2], c[1], 3))
    p['d6_w'] = nrm((EMBED_DIM, c[1])); p['d6_b'] = nrm((c[1],))
    p['tgn3_g'] = jnp.ones((c[1],), jnp.float32); p['tgn3_b'] = jnp.zeros((c[1],), jnp.float32)
    p['tconv2_w'] = nrm((c[1] + c[1], c[0], 3))
    p['d7_w'] = nrm((EMBED_DIM, c[0])); p['d7_b'] = nrm((c[0],))
    p['tgn2_g'] = jnp.ones((c[0],), jnp.float32); p['tgn2_b'] = jnp.zeros((c[0],), jnp.float32)
    p['tconv1_w'] = nrm((c[0] + c[0], 32, 3))
    p['tconv1_b'] = nrm((32,))
    return p


# ----------------------------- full forward ----------------------------------

def scorenet_forward(params, x, t):
    """x: (B, 32, L) NCL, t: (B,). Returns (B, 32, L) — matches PyTorch ScoreNet."""
    p = params
    B, c_in, L = x.shape
    assert c_in == 32 and L % 8 == 0, "kernel expects 32 input channels and L % 8 == 0"

    f32, bf16 = jnp.float32, jnp.bfloat16

    std = marginal_prob_std(t).astype(f32)
    rstd = (1.0 / std).astype(f32)                                   # multiply in-kernel
    x_flat = jnp.transpose(x, (0, 2, 1)).reshape(B * L, 32).astype(f32)

    # lane-aligned fused Dense / GroupNorm parameter slabs
    dwall = jnp.zeros((EMBED_DIM, SLAB_W), f32)
    dball = jnp.zeros((1, SLAB_W), f32)
    gall = jnp.zeros((1, SLAB_W), f32)
    ball = jnp.zeros((1, SLAB_W), f32)
    dws = [p['d1_w'], p['d2_w'], p['d3_w'], p['d4_w'], p['d5_w'], p['d6_w'], p['d7_w']]
    dbs = [p['d1_b'], p['d2_b'], p['d3_b'], p['d4_b'], p['d5_b'], p['d6_b'], p['d7_b']]
    gms = [p['gn1_g'], p['gn2_g'], p['gn3_g'], p['gn4_g'], p['tgn4_g'], p['tgn3_g'], p['tgn2_g']]
    bss = [p['gn1_b'], p['gn2_b'], p['gn3_b'], p['gn4_b'], p['tgn4_b'], p['tgn3_b'], p['tgn2_b']]
    for off, C, dw, db, g, bb in zip(STAGE_OFF, STAGE_C, dws, dbs, gms, bss):
        dwall = dwall.at[:, off:off + C].set(dw)
        dball = dball.at[0, off:off + C].set(db)
        gall = gall.at[0, off:off + C].set(g)
        ball = ball.at[0, off:off + C].set(bb)

    args = (
        t.astype(f32),                                        # (B,) SMEM
        rstd,                                                 # (B,) SMEM
        x_flat,                                               # (B*L, 32)
        (p['Wf'] * (2.0 * math.pi)).reshape(1, -1).astype(f32),   # 2*pi folded in
        p['We'], p['be'].reshape(1, -1),
        dwall, dball, gall, ball,
        _conv_w_to_mat(p['conv1_w']).astype(bf16),            # (96, 32)
        _conv_w_to_mat(p['conv2_w']).astype(bf16),            # (96, 64)
        _conv_w_to_mat(p['conv3_w']).astype(bf16),            # (192, 128)
        _conv_w_to_mat(p['conv4_w']).astype(bf16),            # (384, 256)
        _tconv_even_mat(p['tconv4_w']).astype(bf16),          # (256, 128)
        _tconv_odd_mat(p['tconv4_w']).astype(bf16),           # (512, 128)
        _tconv_even_mat(p['tconv3_w']).astype(bf16),          # (256, 64)
        _tconv_odd_mat(p['tconv3_w']).astype(bf16),           # (512, 64)
        _tconv_even_mat(p['tconv2_w']).astype(bf16),          # (128, 32)
        _tconv_odd_mat(p['tconv2_w']).astype(bf16),           # (256, 32)
        _tconv_s1_mat(p['tconv1_w']).astype(bf16),            # (192, 32)
        p['tconv1_b'].reshape(1, -1).astype(f32),             # (1, 32)
        _gn_mat(32, 4, L),                                    # gnorm1
        _gn_mat(64, 32, L // 2),                              # gnorm2 / tgnorm3
        _gn_mat(128, 32, L // 4),                             # gnorm3 / tgnorm4
        _gn_mat(256, 32, L // 8),                             # gnorm4
        _gn_mat(32, 32, L),                                   # tgnorm2
    )

    smem = pl.BlockSpec(memory_space=pltpu.MemorySpace.SMEM)

    def full_spec(shape):
        return pl.BlockSpec(shape, lambda b: (0,) * len(shape))   # resident, fetched once

    in_specs = [smem, smem, pl.BlockSpec((L, 32), lambda b: (b, 0))]
    in_specs += [full_spec(a.shape) for a in args[3:]]

    flops, transc = _cost_estimate(B, L)
    bytes_accessed = sum(int(np.prod(a.shape)) * a.dtype.itemsize for a in args) + B * L * 32 * 4

    out_flat = pl.pallas_call(
        scorenet_kernel,
        out_shape=jax.ShapeDtypeStruct((B * L, 32), f32),
        grid=(B,),
        in_specs=in_specs,
        out_specs=pl.BlockSpec((L, 32), lambda b: (b, 0)),
        compiler_params=pltpu.CompilerParams(
            dimension_semantics=("parallel",),            # 2-TC sharding on v7x
            vmem_limit_bytes=32 * 1024 * 1024,            # footprint ~3 MiB << 64 MiB (v7x)
        ),
        cost_estimate=pl.CostEstimate(
            flops=flops, transcendentals=transc, bytes_accessed=int(bytes_accessed)),
    )(*args)

    return jnp.transpose(out_flat.reshape(B, L, 32), (0, 2, 1))      # (B, 32, L)


# ----------------------------- main -------------------------------------------

if __name__ == "__main__":
    key = jax.random.PRNGKey(0)
    kp, kx, kt = jax.random.split(key, 3)
    params = init_params(kp)

    B, C_IN, L = 2, 32, 16                        # input x: (B, 32, 16) NCL
    x = jax.random.normal(kx, (B, C_IN, L), jnp.float32)
    t = jax.random.uniform(kt, (B,), jnp.float32, minval=0.1, maxval=1.0)

    fwd = jax.jit(scorenet_forward)
    out = jax.block_until_ready(fwd(params, x, t))

    assert out.shape == (B, C_IN, L), out.shape
    assert bool(jnp.all(jnp.isfinite(out)))
    print("KERNEL_OK")
</pallas_src>

<mosaic_0001>
module attributes {stable_mosaic.version = 11 : i64} {
  func.func @scorenet_kernel(%arg0: i32, %arg1: memref<2xf32, #tpu.memory_space<smem>>, %arg2: memref<2xf32, #tpu.memory_space<smem>>, %arg3: memref<16x32xf32, #tpu.memory_space<vmem>>, %arg4: memref<1x128xf32, #tpu.memory_space<vmem>>, %arg5: memref<256x256xf32, #tpu.memory_space<vmem>>, %arg6: memref<1x256xf32, #tpu.memory_space<vmem>>, %arg7: memref<256x1024xf32, #tpu.memory_space<vmem>>, %arg8: memref<1x1024xf32, #tpu.memory_space<vmem>>, %arg9: memref<1x1024xf32, #tpu.memory_space<vmem>>, %arg10: memref<1x1024xf32, #tpu.memory_space<vmem>>, %arg11: memref<96x32xbf16, #tpu.memory_space<vmem>>, %arg12: memref<96x64xbf16, #tpu.memory_space<vmem>>, %arg13: memref<192x128xbf16, #tpu.memory_space<vmem>>, %arg14: memref<384x256xbf16, #tpu.memory_space<vmem>>, %arg15: memref<256x128xbf16, #tpu.memory_space<vmem>>, %arg16: memref<512x128xbf16, #tpu.memory_space<vmem>>, %arg17: memref<256x64xbf16, #tpu.memory_space<vmem>>, %arg18: memref<512x64xbf16, #tpu.memory_space<vmem>>, %arg19: memref<128x32xbf16, #tpu.memory_space<vmem>>, %arg20: memref<256x32xbf16, #tpu.memory_space<vmem>>, %arg21: memref<192x32xbf16, #tpu.memory_space<vmem>>, %arg22: memref<1x32xf32, #tpu.memory_space<vmem>>, %arg23: memref<32x32xf32, #tpu.memory_space<vmem>>, %arg24: memref<64x64xf32, #tpu.memory_space<vmem>>, %arg25: memref<128x128xf32, #tpu.memory_space<vmem>>, %arg26: memref<256x256xf32, #tpu.memory_space<vmem>>, %arg27: memref<32x32xf32, #tpu.memory_space<vmem>>, %arg28: memref<16x32xf32, #tpu.memory_space<vmem>>) attributes {dimension_semantics = [#tpu.dimension_semantics<parallel>], iteration_bounds = array<i64: 2>, scalar_prefetch = 0 : i64, scratch_operands = 0 : i64, tpu.core_type = #tpu.core_type<tc>, window_params = [{transform_indices = @transform_0, window_bounds = array<i64: 2>}, {transform_indices = @transform_1, window_bounds = array<i64: 2>}, {transform_indices = @transform_2, window_bounds = array<i64: 16, 32>}, {pipeline_mode = #tpu.pipeline_mode<synchronous>, transform_indices = @transform_3, window_bounds = array<i64: 1, 128>}, {pipeline_mode = #tpu.pipeline_mode<synchronous>, transform_indices = @transform_4, window_bounds = array<i64: 256, 256>}, {pipeline_mode = #tpu.pipeline_mode<synchronous>, transform_indices = @transform_5, window_bounds = array<i64: 1, 256>}, {pipeline_mode = #tpu.pipeline_mode<synchronous>, transform_indices = @transform_6, window_bounds = array<i64: 256, 1024>}, {pipeline_mode = #tpu.pipeline_mode<synchronous>, transform_indices = @transform_7, window_bounds = array<i64: 1, 1024>}, {pipeline_mode = #tpu.pipeline_mode<synchronous>, transform_indices = @transform_8, window_bounds = array<i64: 1, 1024>}, {pipeline_mode = #tpu.pipeline_mode<synchronous>, transform_indices = @transform_9, window_bounds = array<i64: 1, 1024>}, {pipeline_mode = #tpu.pipeline_mode<synchronous>, transform_indices = @transform_10, window_bounds = array<i64: 96, 32>}, {pipeline_mode = #tpu.pipeline_mode<synchronous>, transform_indices = @transform_11, window_bounds = array<i64: 96, 64>}, {pipeline_mode = #tpu.pipeline_mode<synchronous>, transform_indices = @transform_12, window_bounds = array<i64: 192, 128>}, {pipeline_mode = #tpu.pipeline_mode<synchronous>, transform_indices = @transform_13, window_bounds = array<i64: 384, 256>}, {pipeline_mode = #tpu.pipeline_mode<synchronous>, transform_indices = @transform_14, window_bounds = array<i64: 256, 128>}, {pipeline_mode = #tpu.pipeline_mode<synchronous>, transform_indices = @transform_15, window_bounds = array<i64: 512, 128>}, {pipeline_mode = #tpu.pipeline_mode<synchronous>, transform_indices = @transform_16, window_bounds = array<i64: 256, 64>}, {pipeline_mode = #tpu.pipeline_mode<synchronous>, transform_indices = @transform_17, window_bounds = array<i64: 512, 64>}, {pipeline_mode = #tpu.pipeline_mode<synchronous>, transform_indices = @transform_18, window_bounds = array<i64: 128, 32>}, {pipeline_mode = #tpu.pipeline_mode<synchronous>, transform_indices = @transform_19, window_bounds = array<i64: 256, 32>}, {pipeline_mode = #tpu.pipeline_mode<synchronous>, transform_indices = @transform_20, window_bounds = array<i64: 192, 32>}, {pipeline_mode = #tpu.pipeline_mode<synchronous>, transform_indices = @transform_21, window_bounds = array<i64: 1, 32>}, {pipeline_mode = #tpu.pipeline_mode<synchronous>, transform_indices = @transform_22, window_bounds = array<i64: 32, 32>}, {pipeline_mode = #tpu.pipeline_mode<synchronous>, transform_indices = @transform_23, window_bounds = array<i64: 64, 64>}, {pipeline_mode = #tpu.pipeline_mode<synchronous>, transform_indices = @transform_24, window_bounds = array<i64: 128, 128>}, {pipeline_mode = #tpu.pipeline_mode<synchronous>, transform_indices = @transform_25, window_bounds = array<i64: 256, 256>}, {pipeline_mode = #tpu.pipeline_mode<synchronous>, transform_indices = @transform_26, window_bounds = array<i64: 32, 32>}, {transform_indices = @transform_27, window_bounds = array<i64: 16, 32>}]} {
    %0 = tpu.iota {dimensions = array<i32: 0>} : vector<16x1xi32>
    %1 = arith.index_cast %arg0 : i32 to index
    %2 = memref.load %arg1[%1] : memref<2xf32, #tpu.memory_space<smem>>
    %c0 = arith.constant 0 : index
    %c0_0 = arith.constant 0 : index
    %3 = vector.load %arg4[%c0, %c0_0] : memref<1x128xf32, #tpu.memory_space<vmem>>, vector<1x128xf32>
    %4 = vector.broadcast %2 : f32 to vector<1x128xf32>
    %5 = arith.mulf %4, %3 : vector<1x128xf32>
    %6 = math.sin %5 : vector<1x128xf32>
    %7 = math.cos %5 : vector<1x128xf32>
    %8 = tpu.concatenate %6, %7 in 1 : vector<1x128xf32>, vector<1x128xf32> -> vector<1x256xf32>
    %c0_1 = arith.constant 0 : index
    %c0_2 = arith.constant 0 : index
    %9 = vector.load %arg5[%c0_1, %c0_2] : memref<256x256xf32, #tpu.memory_space<vmem>>, vector<256x256xf32>
    %cst = arith.constant dense<0.000000e+00> : vector<1x256xf32>
    %10 = tpu.matmul %8, %9, %cst {dimension_numbers = #tpu.dot_dimension_numbers<[1], [0], [0], [1], [0, 0, 1, 1], [], []>} : vector<1x256xf32>, vector<256x256xf32>, vector<1x256xf32> -> vector<1x256xf32>
    %c0_3 = arith.constant 0 : index
    %c0_4 = arith.constant 0 : index
    %11 = vector.load %arg6[%c0_3, %c0_4] : memref<1x256xf32, #tpu.memory_space<vmem>>, vector<1x256xf32>
    %12 = arith.addf %10, %11 : vector<1x256xf32>
    %13 = arith.negf %12 : vector<1x256xf32>
    %14 = math.exp %13 : vector<1x256xf32>
    %cst_5 = arith.constant 1.000000e+00 : f32
    %15 = vector.broadcast %cst_5 : f32 to vector<1x256xf32>
    %16 = arith.addf %15, %14 : vector<1x256xf32>
    %17 = arith.divf %15, %16 : vector<1x256xf32>
    %18 = arith.mulf %12, %17 : vector<1x256xf32>
    %c0_6 = arith.constant 0 : index
    %c0_7 = arith.constant 0 : index
    %19 = vector.load %arg7[%c0_6, %c0_7] : memref<256x1024xf32, #tpu.memory_space<vmem>>, vector<256x1024xf32>
    %cst_8 = arith.constant dense<0.000000e+00> : vector<1x1024xf32>
    %20 = tpu.matmul %18, %19, %cst_8 {dimension_numbers = #tpu.dot_dimension_numbers<[1], [0], [0], [1], [0, 0, 1, 1], [], []>} : vector<1x256xf32>, vector<256x1024xf32>, vector<1x1024xf32> -> vector<1x1024xf32>
    %c0_9 = arith.constant 0 : index
    %c0_10 = arith.constant 0 : index
    %21 = vector.load %arg8[%c0_9, %c0_10] : memref<1x1024xf32, #tpu.memory_space<vmem>>, vector<1x1024xf32>
    %22 = arith.addf %20, %21 : vector<1x1024xf32>
    %c0_11 = arith.constant 0 : index
    %c0_12 = arith.constant 0 : index
    %23 = vector.load %arg9[%c0_11, %c0_12] : memref<1x1024xf32, #tpu.memory_space<vmem>>, vector<1x1024xf32>
    %c0_13 = arith.constant 0 : index
    %c0_14 = arith.constant 0 : index
    %24 = vector.load %arg10[%c0_13, %c0_14] : memref<1x1024xf32, #tpu.memory_space<vmem>>, vector<1x1024xf32>
    %c0_15 = arith.constant 0 : index
    %c0_16 = arith.constant 0 : index
    %25 = vector.load %arg3[%c0_15, %c0_16] : memref<16x32xf32, #tpu.memory_space<vmem>>, vector<16x32xf32>
    %c1_i32 = arith.constant 1 : i32
    %26 = tpu.dynamic_rotate %25 by %c1_i32 dim 0 : vector<16x32xf32>, i32 -> vector<16x32xf32>
    %c1_i32_17 = arith.constant 1 : i32
    %27 = vector.broadcast %c1_i32_17 : i32 to vector<16x1xi32>
    %28 = arith.cmpi sge, %0, %27 : vector<16x1xi32>
    %29 = arith.extui %28 : vector<16x1xi1> to vector<16x1xi32>
    %30 = arith.sitofp %29 : vector<16x1xi32> to vector<16x1xf32>
    %31 = vector.broadcast %30 : vector<16x1xf32> to vector<16x32xf32>
    %32 = arith.mulf %26, %31 : vector<16x32xf32>
    %c15_i32 = arith.constant 15 : i32
    %33 = tpu.dynamic_rotate %25 by %c15_i32 dim 0 : vector<16x32xf32>, i32 -> vector<16x32xf32>
    %c15_i32_18 = arith.constant 15 : i32
    %34 = vector.broadcast %c15_i32_18 : i32 to vector<16x1xi32>
    %35 = arith.cmpi slt, %0, %34 : vector<16x1xi32>
    %36 = arith.extui %35 : vector<16x1xi1> to vector<16x1xi32>
    %37 = arith.sitofp %36 : vector<16x1xi32> to vector<16x1xf32>
    %38 = vector.broadcast %37 : vector<16x1xf32> to vector<16x32xf32>
    %39 = arith.mulf %33, %38 : vector<16x32xf32>
    %40 = tpu.concatenate %32, %25, %39 in 1 : vector<16x32xf32>, vector<16x32xf32>, vector<16x32xf32> -> vector<16x96xf32>
    %41 = arith.truncf %40 : vector<16x96xf32> to vector<16x96xbf16>
    %c0_19 = arith.constant 0 : index
    %c0_20 = arith.constant 0 : index
    %42 = vector.load %arg11[%c0_19, %c0_20] : memref<96x32xbf16, #tpu.memory_space<vmem>>, vector<96x32xbf16>
    %cst_21 = arith.constant dense<0.000000e+00> : vector<16x32xf32>
    %43 = tpu.matmul %41, %42, %cst_21 {dimension_numbers = #tpu.dot_dimension_numbers<[1], [0], [0], [1], [0, 0, 1, 1], [], []>} : vector<16x96xbf16>, vector<96x32xbf16>, vector<16x32xf32> -> vector<16x32xf32>
    %44 = vector.extract_strided_slice %22 {offsets = [0, 0], sizes = [1, 32], strides = [1, 1]} : vector<1x1024xf32> to vector<1x32xf32>
    %45 = vector.broadcast %44 : vector<1x32xf32> to vector<16x32xf32>
    %46 = arith.addf %43, %45 : vector<16x32xf32>
    %cst_22 = arith.constant dense<0.000000e+00> : vector<32xf32>
    %47 = vector.multi_reduction <add>, %46, %cst_22 [0] : vector<16x32xf32> to vector<32xf32>
    %48 = vector.shape_cast %47 : vector<32xf32> to vector<1x32xf32>
    %49 = arith.mulf %46, %46 : vector<16x32xf32>
    %cst_23 = arith.constant dense<0.000000e+00> : vector<32xf32>
    %50 = vector.multi_reduction <add>, %49, %cst_23 [0] : vector<16x32xf32> to vector<32xf32>
    %51 = vector.shape_cast %50 : vector<32xf32> to vector<1x32xf32>
    %c0_24 = arith.constant 0 : index
    %c0_25 = arith.constant 0 : index
    %52 = vector.load %arg23[%c0_24, %c0_25] : memref<32x32xf32, #tpu.memory_space<vmem>>, vector<32x32xf32>
    %cst_26 = arith.constant dense<0.000000e+00> : vector<1x32xf32>
    %53 = tpu.matmul %48, %52, %cst_26 {dimension_numbers = #tpu.dot_dimension_numbers<[1], [0], [0], [1], [0, 0, 1, 1], [], []>} : vector<1x32xf32>, vector<32x32xf32>, vector<1x32xf32> -> vector<1x32xf32>
    %c0_27 = arith.constant 0 : index
    %c0_28 = arith.constant 0 : index
    %54 = vector.load %arg23[%c0_27, %c0_28] : memref<32x32xf32, #tpu.memory_space<vmem>>, vector<32x32xf32>
    %cst_29 = arith.constant dense<0.000000e+00> : vector<1x32xf32>
    %55 = tpu.matmul %51, %54, %cst_29 {dimension_numbers = #tpu.dot_dimension_numbers<[1], [0], [0], [1], [0, 0, 1, 1], [], []>} : vector<1x32xf32>, vector<32x32xf32>, vector<1x32xf32> -> vector<1x32xf32>
    %56 = arith.mulf %53, %53 : vector<1x32xf32>
    %57 = arith.subf %55, %56 : vector<1x32xf32>
    %cst_30 = arith.constant 0.000000e+00 : f32
    %58 = vector.broadcast %cst_30 : f32 to vector<1x32xf32>
    %59 = arith.maximumf %57, %58 : vector<1x32xf32>
    %cst_31 = arith.constant 9.99999974E-6 : f32
    %60 = vector.broadcast %cst_31 : f32 to vector<1x32xf32>
    %61 = arith.addf %59, %60 : vector<1x32xf32>
    %62 = math.rsqrt %61 : vector<1x32xf32>
    %63 = vector.extract_strided_slice %23 {offsets = [0, 0], sizes = [1, 32], strides = [1, 1]} : vector<1x1024xf32> to vector<1x32xf32>
    %64 = arith.mulf %62, %63 : vector<1x32xf32>
    %65 = vector.extract_strided_slice %24 {offsets = [0, 0], sizes = [1, 32], strides = [1, 1]} : vector<1x1024xf32> to vector<1x32xf32>
    %66 = arith.mulf %53, %64 : vector<1x32xf32>
    %67 = arith.subf %65, %66 : vector<1x32xf32>
    %68 = vector.broadcast %64 : vector<1x32xf32> to vector<16x32xf32>
    %69 = arith.mulf %46, %68 : vector<16x32xf32>
    %70 = vector.broadcast %67 : vector<1x32xf32> to vector<16x32xf32>
    %71 = arith.addf %69, %70 : vector<16x32xf32>
    %72 = arith.negf %71 : vector<16x32xf32>
    %73 = math.exp %72 : vector<16x32xf32>
    %cst_32 = arith.constant 1.000000e+00 : f32
    %74 = vector.broadcast %cst_32 : f32 to vector<16x32xf32>
    %75 = arith.addf %74, %73 : vector<16x32xf32>
    %76 = arith.divf %74, %75 : vector<16x32xf32>
    %77 = arith.mulf %71, %76 : vector<16x32xf32>
    %c1_i32_33 = arith.constant 1 : i32
    %78 = tpu.dynamic_rotate %77 by %c1_i32_33 dim 0 : vector<16x32xf32>, i32 -> vector<16x32xf32>
    %c1_i32_34 = arith.constant 1 : i32
    %79 = vector.broadcast %c1_i32_34 : i32 to vector<16x1xi32>
    %80 = arith.cmpi sge, %0, %79 : vector<16x1xi32>
    %81 = arith.extui %80 : vector<16x1xi1> to vector<16x1xi32>
    %82 = arith.sitofp %81 : vector<16x1xi32> to vector<16x1xf32>
    %83 = vector.broadcast %82 : vector<16x1xf32> to vector<16x32xf32>
    %84 = arith.mulf %78, %83 : vector<16x32xf32>
    %c15_i32_35 = arith.constant 15 : i32
    %85 = tpu.dynamic_rotate %77 by %c15_i32_35 dim 0 : vector<16x32xf32>, i32 -> vector<16x32xf32>
    %c15_i32_36 = arith.constant 15 : i32
    %86 = vector.broadcast %c15_i32_36 : i32 to vector<16x1xi32>
    %87 = arith.cmpi slt, %0, %86 : vector<16x1xi32>
    %88 = arith.extui %87 : vector<16x1xi1> to vector<16x1xi32>
    %89 = arith.sitofp %88 : vector<16x1xi32> to vector<16x1xf32>
    %90 = vector.broadcast %89 : vector<16x1xf32> to vector<16x32xf32>
    %91 = arith.mulf %85, %90 : vector<16x32xf32>
    %92 = tpu.concatenate %84, %77, %91 in 1 : vector<16x32xf32>, vector<16x32xf32>, vector<16x32xf32> -> vector<16x96xf32>
    %93 = arith.truncf %92 : vector<16x96xf32> to vector<16x96xbf16>
    %c0_37 = arith.constant 0 : index
    %c0_38 = arith.constant 0 : index
    %94 = vector.load %arg12[%c0_37, %c0_38] : memref<96x64xbf16, #tpu.memory_space<vmem>>, vector<96x64xbf16>
    %cst_39 = arith.constant dense<0.000000e+00> : vector<16x64xf32>
    %95 = tpu.matmul %93, %94, %cst_39 {dimension_numbers = #tpu.dot_dimension_numbers<[1], [0], [0], [1], [0, 0, 1, 1], [], []>} : vector<16x96xbf16>, vector<96x64xbf16>, vector<16x64xf32> -> vector<16x64xf32>
    %96 = vector.extract_strided_slice %22 {offsets = [0, 128], sizes = [1, 64], strides = [1, 1]} : vector<1x1024xf32> to vector<1x64xf32>
    %97 = vector.broadcast %96 : vector<1x64xf32> to vector<16x64xf32>
    %98 = arith.addf %95, %97 : vector<16x64xf32>
    %c1_i32_40 = arith.constant 1 : i32
    %99 = vector.broadcast %c1_i32_40 : i32 to vector<16x1xi32>
    %100 = arith.andi %0, %99 : vector<16x1xi32>
    %c0_i32 = arith.constant 0 : i32
    %101 = vector.broadcast %c0_i32 : i32 to vector<16x1xi32>
    %102 = arith.cmpi eq, %100, %101 : vector<16x1xi32>
    %103 = arith.extui %102 : vector<16x1xi1> to vector<16x1xi32>
    %104 = arith.sitofp %103 : vector<16x1xi32> to vector<16x1xf32>
    %105 = vector.broadcast %104 : vector<16x1xf32> to vector<16x64xf32>
    %106 = arith.mulf %98, %105 : vector<16x64xf32>
    %cst_41 = arith.constant dense<0.000000e+00> : vector<64xf32>
    %107 = vector.multi_reduction <add>, %106, %cst_41 [0] : vector<16x64xf32> to vector<64xf32>
    %108 = vector.shape_cast %107 : vector<64xf32> to vector<1x64xf32>
    %109 = arith.mulf %106, %106 : vector<16x64xf32>
    %cst_42 = arith.constant dense<0.000000e+00> : vector<64xf32>
    %110 = vector.multi_reduction <add>, %109, %cst_42 [0] : vector<16x64xf32> to vector<64xf32>
    %111 = vector.shape_cast %110 : vector<64xf32> to vector<1x64xf32>
    %c0_43 = arith.constant 0 : index
    %c0_44 = arith.constant 0 : index
    %112 = vector.load %arg24[%c0_43, %c0_44] : memref<64x64xf32, #tpu.memory_space<vmem>>, vector<64x64xf32>
    %cst_45 = arith.constant dense<0.000000e+00> : vector<1x64xf32>
    %113 = tpu.matmul %108, %112, %cst_45 {dimension_numbers = #tpu.dot_dimension_numbers<[1], [0], [0], [1], [0, 0, 1, 1], [], []>} : vector<1x64xf32>, vector<64x64xf32>, vector<1x64xf32> -> vector<1x64xf32>
    %c0_46 = arith.constant 0 : index
    %c0_47 = arith.constant 0 : index
    %114 = vector.load %arg24[%c0_46, %c0_47] : memref<64x64xf32, #tpu.memory_space<vmem>>, vector<64x64xf32>
    %cst_48 = arith.constant dense<0.000000e+00> : vector<1x64xf32>
    %115 = tpu.matmul %111, %114, %cst_48 {dimension_numbers = #tpu.dot_dimension_numbers<[1], [0], [0], [1], [0, 0, 1, 1], [], []>} : vector<1x64xf32>, vector<64x64xf32>, vector<1x64xf32> -> vector<1x64xf32>
    %116 = arith.mulf %113, %113 : vector<1x64xf32>
    %117 = arith.subf %115, %116 : vector<1x64xf32>
    %cst_49 = arith.constant 0.000000e+00 : f32
    %118 = vector.broadcast %cst_49 : f32 to vector<1x64xf32>
    %119 = arith.maximumf %117, %118 : vector<1x64xf32>
    %cst_50 = arith.constant 9.99999974E-6 : f32
    %120 = vector.broadcast %cst_50 : f32 to vector<1x64xf32>
    %121 = arith.addf %119, %120 : vector<1x64xf32>
    %122 = math.rsqrt %121 : vector<1x64xf32>
    %123 = vector.extract_strided_slice %23 {offsets = [0, 128], sizes = [1, 64], strides = [1, 1]} : vector<1x1024xf32> to vector<1x64xf32>
    %124 = arith.mulf %122, %123 : vector<1x64xf32>
    %125 = vector.extract_strided_slice %24 {offsets = [0, 128], sizes = [1, 64], strides = [1, 1]} : vector<1x1024xf32> to vector<1x64xf32>
    %126 = arith.mulf %113, %124 : vector<1x64xf32>
    %127 = arith.subf %125, %126 : vector<1x64xf32>
    %128 = vector.broadcast %124 : vector<1x64xf32> to vector<16x64xf32>
    %129 = arith.mulf %98, %128 : vector<16x64xf32>
    %130 = vector.broadcast %127 : vector<1x64xf32> to vector<16x64xf32>
    %131 = arith.addf %129, %130 : vector<16x64xf32>
    %132 = arith.negf %131 : vector<16x64xf32>
    %133 = math.exp %132 : vector<16x64xf32>
    %cst_51 = arith.constant 1.000000e+00 : f32
    %134 = vector.broadcast %cst_51 : f32 to vector<16x64xf32>
    %135 = arith.addf %134, %133 : vector<16x64xf32>
    %136 = arith.divf %134, %135 : vector<16x64xf32>
    %137 = arith.mulf %131, %136 : vector<16x64xf32>
    %c2_i32 = arith.constant 2 : i32
    %138 = tpu.dynamic_rotate %137 by %c2_i32 dim 0 : vector<16x64xf32>, i32 -> vector<16x64xf32>
    %c2_i32_52 = arith.constant 2 : i32
    %139 = vector.broadcast %c2_i32_52 : i32 to vector<16x1xi32>
    %140 = arith.cmpi sge, %0, %139 : vector<16x1xi32>
    %141 = arith.extui %140 : vector<16x1xi1> to vector<16x1xi32>
    %142 = arith.sitofp %141 : vector<16x1xi32> to vector<16x1xf32>
    %143 = vector.broadcast %142 : vector<16x1xf32> to vector<16x64xf32>
    %144 = arith.mulf %138, %143 : vector<16x64xf32>
    %c14_i32 = arith.constant 14 : i32
    %145 = tpu.dynamic_rotate %137 by %c14_i32 dim 0 : vector<16x64xf32>, i32 -> vector<16x64xf32>
    %c14_i32_53 = arith.constant 14 : i32
    %146 = vector.broadcast %c14_i32_53 : i32 to vector<16x1xi32>
    %147 = arith.cmpi slt, %0, %146 : vector<16x1xi32>
    %148 = arith.extui %147 : vector<16x1xi1> to vector<16x1xi32>
    %149 = arith.sitofp %148 : vector<16x1xi32> to vector<16x1xf32>
    %150 = vector.broadcast %149 : vector<16x1xf32> to vector<16x64xf32>
    %151 = arith.mulf %145, %150 : vector<16x64xf32>
    %152 = tpu.concatenate %144, %137, %151 in 1 : vector<16x64xf32>, vector<16x64xf32>, vector<16x64xf32> -> vector<16x192xf32>
    %153 = arith.truncf %152 : vector<16x192xf32> to vector<16x192xbf16>
    %c0_54 = arith.constant 0 : index
    %c0_55 = arith.constant 0 : index
    %154 = vector.load %arg13[%c0_54, %c0_55] : memref<192x128xbf16, #tpu.memory_space<vmem>>, vector<192x128xbf16>
    %cst_56 = arith.constant dense<0.000000e+00> : vector<16x128xf32>
    %155 = tpu.matmul %153, %154, %cst_56 {dimension_numbers = #tpu.dot_dimension_numbers<[1], [0], [0], [1], [0, 0, 1, 1], [], []>} : vector<16x192xbf16>, vector<192x128xbf16>, vector<16x128xf32> -> vector<16x128xf32>
    %156 = vector.extract_strided_slice %22 {offsets = [0, 256], sizes = [1, 128], strides = [1, 1]} : vector<1x1024xf32> to vector<1x128xf32>
    %157 = vector.broadcast %156 : vector<1x128xf32> to vector<16x128xf32>
    %158 = arith.addf %155, %157 : vector<16x128xf32>
    %c3_i32 = arith.constant 3 : i32
    %159 = vector.broadcast %c3_i32 : i32 to vector<16x1xi32>
    %160 = arith.andi %0, %159 : vector<16x1xi32>
    %c0_i32_57 = arith.constant 0 : i32
    %161 = vector.broadcast %c0_i32_57 : i32 to vector<16x1xi32>
    %162 = arith.cmpi eq, %160, %161 : vector<16x1xi32>
    %163 = arith.extui %162 : vector<16x1xi1> to vector<16x1xi32>
    %164 = arith.sitofp %163 : vector<16x1xi32> to vector<16x1xf32>
    %165 = vector.broadcast %164 : vector<16x1xf32> to vector<16x128xf32>
    %166 = arith.mulf %158, %165 : vector<16x128xf32>
    %cst_58 = arith.constant dense<0.000000e+00> : vector<128xf32>
    %167 = vector.multi_reduction <add>, %166, %cst_58 [0] : vector<16x128xf32> to vector<128xf32>
    %168 = vector.shape_cast %167 : vector<128xf32> to vector<1x128xf32>
    %169 = arith.mulf %166, %166 : vector<16x128xf32>
    %cst_59 = arith.constant dense<0.000000e+00> : vector<128xf32>
    %170 = vector.multi_reduction <add>, %169, %cst_59 [0] : vector<16x128xf32> to vector<128xf32>
    %171 = vector.shape_cast %170 : vector<128xf32> to vector<1x128xf32>
    %c0_60 = arith.constant 0 : index
    %c0_61 = arith.constant 0 : index
    %172 = vector.load %arg25[%c0_60, %c0_61] : memref<128x128xf32, #tpu.memory_space<vmem>>, vector<128x128xf32>
    %cst_62 = arith.constant dense<0.000000e+00> : vector<1x128xf32>
    %173 = tpu.matmul %168, %172, %cst_62 {dimension_numbers = #tpu.dot_dimension_numbers<[1], [0], [0], [1], [0, 0, 1, 1], [], []>} : vector<1x128xf32>, vector<128x128xf32>, vector<1x128xf32> -> vector<1x128xf32>
    %c0_63 = arith.constant 0 : index
    %c0_64 = arith.constant 0 : index
    %174 = vector.load %arg25[%c0_63, %c0_64] : memref<128x128xf32, #tpu.memory_space<vmem>>, vector<128x128xf32>
    %cst_65 = arith.constant dense<0.000000e+00> : vector<1x128xf32>
    %175 = tpu.matmul %171, %174, %cst_65 {dimension_numbers = #tpu.dot_dimension_numbers<[1], [0], [0], [1], [0, 0, 1, 1], [], []>} : vector<1x128xf32>, vector<128x128xf32>, vector<1x128xf32> -> vector<1x128xf32>
    %176 = arith.mulf %173, %173 : vector<1x128xf32>
    %177 = arith.subf %175, %176 : vector<1x128xf32>
    %cst_66 = arith.constant 0.000000e+00 : f32
    %178 = vector.broadcast %cst_66 : f32 to vector<1x128xf32>
    %179 = arith.maximumf %177, %178 : vector<1x128xf32>
    %cst_67 = arith.constant 9.99999974E-6 : f32
    %180 = vector.broadcast %cst_67 : f32 to vector<1x128xf32>
    %181 = arith.addf %179, %180 : vector<1x128xf32>
    %182 = math.rsqrt %181 : vector<1x128xf32>
    %183 = vector.extract_strided_slice %23 {offsets = [0, 256], sizes = [1, 128], strides = [1, 1]} : vector<1x1024xf32> to vector<1x128xf32>
    %184 = arith.mulf %182, %183 : vector<1x128xf32>
    %185 = vector.extract_strided_slice %24 {offsets = [0, 256], sizes = [1, 128], strides = [1, 1]} : vector<1x1024xf32> to vector<1x128xf32>
    %186 = arith.mulf %173, %184 : vector<1x128xf32>
    %187 = arith.subf %185, %186 : vector<1x128xf32>
    %188 = vector.broadcast %184 : vector<1x128xf32> to vector<16x128xf32>
    %189 = arith.mulf %158, %188 : vector<16x128xf32>
    %190 = vector.broadcast %187 : vector<1x128xf32> to vector<16x128xf32>
    %191 = arith.addf %189, %190 : vector<16x128xf32>
    %192 = arith.negf %191 : vector<16x128xf32>
    %193 = math.exp %192 : vector<16x128xf32>
    %cst_68 = arith.constant 1.000000e+00 : f32
    %194 = vector.broadcast %cst_68 : f32 to vector<16x128xf32>
    %195 = arith.addf %194, %193 : vector<16x128xf32>
    %196 = arith.divf %194, %195 : vector<16x128xf32>
    %197 = arith.mulf %191, %196 : vector<16x128xf32>
    %c4_i32 = arith.constant 4 : i32
    %198 = tpu.dynamic_rotate %197 by %c4_i32 dim 0 : vector<16x128xf32>, i32 -> vector<16x128xf32>
    %c4_i32_69 = arith.constant 4 : i32
    %199 = vector.broadcast %c4_i32_69 : i32 to vector<16x1xi32>
    %200 = arith.cmpi sge, %0, %199 : vector<16x1xi32>
    %201 = arith.extui %200 : vector<16x1xi1> to vector<16x1xi32>
    %202 = arith.sitofp %201 : vector<16x1xi32> to vector<16x1xf32>
    %203 = vector.broadcast %202 : vector<16x1xf32> to vector<16x128xf32>
    %204 = arith.mulf %198, %203 : vector<16x128xf32>
    %c12_i32 = arith.constant 12 : i32
    %205 = tpu.dynamic_rotate %197 by %c12_i32 dim 0 : vector<16x128xf32>, i32 -> vector<16x128xf32>
    %c12_i32_70 = arith.constant 12 : i32
    %206 = vector.broadcast %c12_i32_70 : i32 to vector<16x1xi32>
    %207 = arith.cmpi slt, %0, %206 : vector<16x1xi32>
    %208 = arith.extui %207 : vector<16x1xi1> to vector<16x1xi32>
    %209 = arith.sitofp %208 : vector<16x1xi32> to vector<16x1xf32>
    %210 = vector.broadcast %209 : vector<16x1xf32> to vector<16x128xf32>
    %211 = arith.mulf %205, %210 : vector<16x128xf32>
    %212 = tpu.concatenate %204, %197, %211 in 1 : vector<16x128xf32>, vector<16x128xf32>, vector<16x128xf32> -> vector<16x384xf32>
    %213 = arith.truncf %212 : vector<16x384xf32> to vector<16x384xbf16>
    %c0_71 = arith.constant 0 : index
    %c0_72 = arith.constant 0 : index
    %214 = vector.load %arg14[%c0_71, %c0_72] : memref<384x256xbf16, #tpu.memory_space<vmem>>, vector<384x256xbf16>
    %cst_73 = arith.constant dense<0.000000e+00> : vector<16x256xf32>
    %215 = tpu.matmul %213, %214, %cst_73 {dimension_numbers = #tpu.dot_dimension_numbers<[1], [0], [0], [1], [0, 0, 1, 1], [], []>} : vector<16x384xbf16>, vector<384x256xbf16>, vector<16x256xf32> -> vector<16x256xf32>
    %216 = vector.extract_strided_slice %22 {offsets = [0, 384], sizes = [1, 256], strides = [1, 1]} : vector<1x1024xf32> to vector<1x256xf32>
    %217 = vector.broadcast %216 : vector<1x256xf32> to vector<16x256xf32>
    %218 = arith.addf %215, %217 : vector<16x256xf32>
    %c7_i32 = arith.constant 7 : i32
    %219 = vector.broadcast %c7_i32 : i32 to vector<16x1xi32>
    %220 = arith.andi %0, %219 : vector<16x1xi32>
    %c0_i32_74 = arith.constant 0 : i32
    %221 = vector.broadcast %c0_i32_74 : i32 to vector<16x1xi32>
    %222 = arith.cmpi eq, %220, %221 : vector<16x1xi32>
    %223 = arith.extui %222 : vector<16x1xi1> to vector<16x1xi32>
    %224 = arith.sitofp %223 : vector<16x1xi32> to vector<16x1xf32>
    %225 = vector.broadcast %224 : vector<16x1xf32> to vector<16x256xf32>
    %226 = arith.mulf %218, %225 : vector<16x256xf32>
    %cst_75 = arith.constant dense<0.000000e+00> : vector<256xf32>
    %227 = vector.multi_reduction <add>, %226, %cst_75 [0] : vector<16x256xf32> to vector<256xf32>
    %228 = vector.shape_cast %227 : vector<256xf32> to vector<1x256xf32>
    %229 = arith.mulf %226, %226 : vector<16x256xf32>
    %cst_76 = arith.constant dense<0.000000e+00> : vector<256xf32>
    %230 = vector.multi_reduction <add>, %229, %cst_76 [0] : vector<16x256xf32> to vector<256xf32>
    %231 = vector.shape_cast %230 : vector<256xf32> to vector<1x256xf32>
    %c0_77 = arith.constant 0 : index
    %c0_78 = arith.constant 0 : index
    %232 = vector.load %arg26[%c0_77, %c0_78] : memref<256x256xf32, #tpu.memory_space<vmem>>, vector<256x256xf32>
    %cst_79 = arith.constant dense<0.000000e+00> : vector<1x256xf32>
    %233 = tpu.matmul %228, %232, %cst_79 {dimension_numbers = #tpu.dot_dimension_numbers<[1], [0], [0], [1], [0, 0, 1, 1], [], []>} : vector<1x256xf32>, vector<256x256xf32>, vector<1x256xf32> -> vector<1x256xf32>
    %c0_80 = arith.constant 0 : index
    %c0_81 = arith.constant 0 : index
    %234 = vector.load %arg26[%c0_80, %c0_81] : memref<256x256xf32, #tpu.memory_space<vmem>>, vector<256x256xf32>
    %cst_82 = arith.constant dense<0.000000e+00> : vector<1x256xf32>
    %235 = tpu.matmul %231, %234, %cst_82 {dimension_numbers = #tpu.dot_dimension_numbers<[1], [0], [0], [1], [0, 0, 1, 1], [], []>} : vector<1x256xf32>, vector<256x256xf32>, vector<1x256xf32> -> vector<1x256xf32>
    %236 = arith.mulf %233, %233 : vector<1x256xf32>
    %237 = arith.subf %235, %236 : vector<1x256xf32>
    %cst_83 = arith.constant 0.000000e+00 : f32
    %238 = vector.broadcast %cst_83 : f32 to vector<1x256xf32>
    %239 = arith.maximumf %237, %238 : vector<1x256xf32>
    %cst_84 = arith.constant 9.99999974E-6 : f32
    %240 = vector.broadcast %cst_84 : f32 to vector<1x256xf32>
    %241 = arith.addf %239, %240 : vector<1x256xf32>
    %242 = math.rsqrt %241 : vector<1x256xf32>
    %243 = vector.extract_strided_slice %23 {offsets = [0, 384], sizes = [1, 256], strides = [1, 1]} : vector<1x1024xf32> to vector<1x256xf32>
    %244 = arith.mulf %242, %243 : vector<1x256xf32>
    %245 = vector.extract_strided_slice %24 {offsets = [0, 384], sizes = [1, 256], strides = [1, 1]} : vector<1x1024xf32> to vector<1x256xf32>
    %246 = arith.mulf %233, %244 : vector<1x256xf32>
    %247 = arith.subf %245, %246 : vector<1x256xf32>
    %248 = vector.broadcast %244 : vector<1x256xf32> to vector<16x256xf32>
    %249 = arith.mulf %218, %248 : vector<16x256xf32>
    %250 = vector.broadcast %247 : vector<1x256xf32> to vector<16x256xf32>
    %251 = arith.addf %249, %250 : vector<16x256xf32>
    %252 = arith.negf %251 : vector<16x256xf32>
    %253 = math.exp %252 : vector<16x256xf32>
    %cst_85 = arith.constant 1.000000e+00 : f32
    %254 = vector.broadcast %cst_85 : f32 to vector<16x256xf32>
    %255 = arith.addf %254, %253 : vector<16x256xf32>
    %256 = arith.divf %254, %255 : vector<16x256xf32>
    %257 = arith.mulf %251, %256 : vector<16x256xf32>
    %c7_i32_86 = arith.constant 7 : i32
    %258 = vector.broadcast %c7_i32_86 : i32 to vector<16x1xi32>
    %259 = arith.andi %0, %258 : vector<16x1xi32>
    %c0_i32_87 = arith.constant 0 : i32
    %260 = vector.broadcast %c0_i32_87 : i32 to vector<16x1xi32>
    %261 = arith.cmpi eq, %259, %260 : vector<16x1xi32>
    %262 = arith.extui %261 : vector<16x1xi1> to vector<16x1xi32>
    %263 = arith.sitofp %262 : vector<16x1xi32> to vector<16x1xf32>
    %264 = vector.broadcast %263 : vector<16x1xf32> to vector<16x256xf32>
    %265 = arith.mulf %257, %264 : vector<16x256xf32>
    %c8_i32 = arith.constant 8 : i32
    %266 = tpu.dynamic_rotate %265 by %c8_i32 dim 0 : vector<16x256xf32>, i32 -> vector<16x256xf32>
    %c8_i32_88 = arith.constant 8 : i32
    %267 = vector.broadcast %c8_i32_88 : i32 to vector<16x1xi32>
    %268 = arith.cmpi slt, %0, %267 : vector<16x1xi32>
    %269 = arith.extui %268 : vector<16x1xi1> to vector<16x1xi32>
    %270 = arith.sitofp %269 : vector<16x1xi32> to vector<16x1xf32>
    %271 = vector.broadcast %270 : vector<16x1xf32> to vector<16x256xf32>
    %272 = arith.mulf %266, %271 : vector<16x256xf32>
    %273 = arith.truncf %265 : vector<16x256xf32> to vector<16x256xbf16>
    %c0_89 = arith.constant 0 : index
    %c0_90 = arith.constant 0 : index
    %274 = vector.load %arg15[%c0_89, %c0_90] : memref<256x128xbf16, #tpu.memory_space<vmem>>, vector<256x128xbf16>
    %cst_91 = arith.constant dense<0.000000e+00> : vector<16x128xf32>
    %275 = tpu.matmul %273, %274, %cst_91 {dimension_numbers = #tpu.dot_dimension_numbers<[1], [0], [0], [1], [0, 0, 1, 1], [], []>} : vector<16x256xbf16>, vector<256x128xbf16>, vector<16x128xf32> -> vector<16x128xf32>
    %276 = arith.truncf %272 : vector<16x256xf32> to vector<16x256xbf16>
    %277 = tpu.concatenate %273, %276 in 1 : vector<16x256xbf16>, vector<16x256xbf16> -> vector<16x512xbf16>
    %c0_92 = arith.constant 0 : index
    %c0_93 = arith.constant 0 : index
    %278 = vector.load %arg16[%c0_92, %c0_93] : memref<512x128xbf16, #tpu.memory_space<vmem>>, vector<512x128xbf16>
    %cst_94 = arith.constant dense<0.000000e+00> : vector<16x128xf32>
    %279 = tpu.matmul %277, %278, %cst_94 {dimension_numbers = #tpu.dot_dimension_numbers<[1], [0], [0], [1], [0, 0, 1, 1], [], []>} : vector<16x512xbf16>, vector<512x128xbf16>, vector<16x128xf32> -> vector<16x128xf32>
    %c4_i32_95 = arith.constant 4 : i32
    %280 = tpu.dynamic_rotate %279 by %c4_i32_95 dim 0 : vector<16x128xf32>, i32 -> vector<16x128xf32>
    %281 = arith.addf %275, %280 : vector<16x128xf32>
    %282 = vector.extract_strided_slice %22 {offsets = [0, 640], sizes = [1, 128], strides = [1, 1]} : vector<1x1024xf32> to vector<1x128xf32>
    %283 = vector.broadcast %282 : vector<1x128xf32> to vector<16x128xf32>
    %284 = arith.addf %281, %283 : vector<16x128xf32>
    %c3_i32_96 = arith.constant 3 : i32
    %285 = vector.broadcast %c3_i32_96 : i32 to vector<16x1xi32>
    %286 = arith.andi %0, %285 : vector<16x1xi32>
    %c0_i32_97 = arith.constant 0 : i32
    %287 = vector.broadcast %c0_i32_97 : i32 to vector<16x1xi32>
    %288 = arith.cmpi eq, %286, %287 : vector<16x1xi32>
    %289 = arith.extui %288 : vector<16x1xi1> to vector<16x1xi32>
    %290 = arith.sitofp %289 : vector<16x1xi32> to vector<16x1xf32>
    %291 = vector.broadcast %290 : vector<16x1xf32> to vector<16x128xf32>
    %292 = arith.mulf %284, %291 : vector<16x128xf32>
    %cst_98 = arith.constant dense<0.000000e+00> : vector<128xf32>
    %293 = vector.multi_reduction <add>, %292, %cst_98 [0] : vector<16x128xf32> to vector<128xf32>
    %294 = vector.shape_cast %293 : vector<128xf32> to vector<1x128xf32>
    %295 = arith.mulf %292, %292 : vector<16x128xf32>
    %cst_99 = arith.constant dense<0.000000e+00> : vector<128xf32>
    %296 = vector.multi_reduction <add>, %295, %cst_99 [0] : vector<16x128xf32> to vector<128xf32>
    %297 = vector.shape_cast %296 : vector<128xf32> to vector<1x128xf32>
    %c0_100 = arith.constant 0 : index
    %c0_101 = arith.constant 0 : index
    %298 = vector.load %arg25[%c0_100, %c0_101] : memref<128x128xf32, #tpu.memory_space<vmem>>, vector<128x128xf32>
    %cst_102 = arith.constant dense<0.000000e+00> : vector<1x128xf32>
    %299 = tpu.matmul %294, %298, %cst_102 {dimension_numbers = #tpu.dot_dimension_numbers<[1], [0], [0], [1], [0, 0, 1, 1], [], []>} : vector<1x128xf32>, vector<128x128xf32>, vector<1x128xf32> -> vector<1x128xf32>
    %c0_103 = arith.constant 0 : index
    %c0_104 = arith.constant 0 : index
    %300 = vector.load %arg25[%c0_103, %c0_104] : memref<128x128xf32, #tpu.memory_space<vmem>>, vector<128x128xf32>
    %cst_105 = arith.constant dense<0.000000e+00> : vector<1x128xf32>
    %301 = tpu.matmul %297, %300, %cst_105 {dimension_numbers = #tpu.dot_dimension_numbers<[1], [0], [0], [1], [0, 0, 1, 1], [], []>} : vector<1x128xf32>, vector<128x128xf32>, vector<1x128xf32> -> vector<1x128xf32>
    %302 = arith.mulf %299, %299 : vector<1x128xf32>
    %303 = arith.subf %301, %302 : vector<1x128xf32>
    %cst_106 = arith.constant 0.000000e+00 : f32
    %304 = vector.broadcast %cst_106 : f32 to vector<1x128xf32>
    %305 = arith.maximumf %303, %304 : vector<1x128xf32>
    %cst_107 = arith.constant 9.99999974E-6 : f32
    %306 = vector.broadcast %cst_107 : f32 to vector<1x128xf32>
    %307 = arith.addf %305, %306 : vector<1x128xf32>
    %308 = math.rsqrt %307 : vector<1x128xf32>
    %309 = vector.extract_strided_slice %23 {offsets = [0, 640], sizes = [1, 128], strides = [1, 1]} : vector<1x1024xf32> to vector<1x128xf32>
    %310 = arith.mulf %308, %309 : vector<1x128xf32>
    %311 = vector.extract_strided_slice %24 {offsets = [0, 640], sizes = [1, 128], strides = [1, 1]} : vector<1x1024xf32> to vector<1x128xf32>
    %312 = arith.mulf %299, %310 : vector<1x128xf32>
    %313 = arith.subf %311, %312 : vector<1x128xf32>
    %314 = vector.broadcast %310 : vector<1x128xf32> to vector<16x128xf32>
    %315 = arith.mulf %284, %314 : vector<16x128xf32>
    %316 = vector.broadcast %313 : vector<1x128xf32> to vector<16x128xf32>
    %317 = arith.addf %315, %316 : vector<16x128xf32>
    %318 = arith.negf %317 : vector<16x128xf32>
    %319 = math.exp %318 : vector<16x128xf32>
    %cst_108 = arith.constant 1.000000e+00 : f32
    %320 = vector.broadcast %cst_108 : f32 to vector<16x128xf32>
    %321 = arith.addf %320, %319 : vector<16x128xf32>
    %322 = arith.divf %320, %321 : vector<16x128xf32>
    %323 = arith.mulf %317, %322 : vector<16x128xf32>
    %324 = tpu.concatenate %323, %197 in 1 : vector<16x128xf32>, vector<16x128xf32> -> vector<16x256xf32>
    %c3_i32_109 = arith.constant 3 : i32
    %325 = vector.broadcast %c3_i32_109 : i32 to vector<16x1xi32>
    %326 = arith.andi %0, %325 : vector<16x1xi32>
    %c0_i32_110 = arith.constant 0 : i32
    %327 = vector.broadcast %c0_i32_110 : i32 to vector<16x1xi32>
    %328 = arith.cmpi eq, %326, %327 : vector<16x1xi32>
    %329 = arith.extui %328 : vector<16x1xi1> to vector<16x1xi32>
    %330 = arith.sitofp %329 : vector<16x1xi32> to vector<16x1xf32>
    %331 = vector.broadcast %330 : vector<16x1xf32> to vector<16x256xf32>
    %332 = arith.mulf %324, %331 : vector<16x256xf32>
    %c12_i32_111 = arith.constant 12 : i32
    %333 = tpu.dynamic_rotate %332 by %c12_i32_111 dim 0 : vector<16x256xf32>, i32 -> vector<16x256xf32>
    %c12_i32_112 = arith.constant 12 : i32
    %334 = vector.broadcast %c12_i32_112 : i32 to vector<16x1xi32>
    %335 = arith.cmpi slt, %0, %334 : vector<16x1xi32>
    %336 = arith.extui %335 : vector<16x1xi1> to vector<16x1xi32>
    %337 = arith.sitofp %336 : vector<16x1xi32> to vector<16x1xf32>
    %338 = vector.broadcast %337 : vector<16x1xf32> to vector<16x256xf32>
    %339 = arith.mulf %333, %338 : vector<16x256xf32>
    %340 = arith.truncf %332 : vector<16x256xf32> to vector<16x256xbf16>
    %c0_113 = arith.constant 0 : index
    %c0_114 = arith.constant 0 : index
    %341 = vector.load %arg17[%c0_113, %c0_114] : memref<256x64xbf16, #tpu.memory_space<vmem>>, vector<256x64xbf16>
    %cst_115 = arith.constant dense<0.000000e+00> : vector<16x64xf32>
    %342 = tpu.matmul %340, %341, %cst_115 {dimension_numbers = #tpu.dot_dimension_numbers<[1], [0], [0], [1], [0, 0, 1, 1], [], []>} : vector<16x256xbf16>, vector<256x64xbf16>, vector<16x64xf32> -> vector<16x64xf32>
    %343 = arith.truncf %339 : vector<16x256xf32> to vector<16x256xbf16>
    %344 = tpu.concatenate %340, %343 in 1 : vector<16x256xbf16>, vector<16x256xbf16> -> vector<16x512xbf16>
    %c0_116 = arith.constant 0 : index
    %c0_117 = arith.constant 0 : index
    %345 = vector.load %arg18[%c0_116, %c0_117] : memref<512x64xbf16, #tpu.memory_space<vmem>>, vector<512x64xbf16>
    %cst_118 = arith.constant dense<0.000000e+00> : vector<16x64xf32>
    %346 = tpu.matmul %344, %345, %cst_118 {dimension_numbers = #tpu.dot_dimension_numbers<[1], [0], [0], [1], [0, 0, 1, 1], [], []>} : vector<16x512xbf16>, vector<512x64xbf16>, vector<16x64xf32> -> vector<16x64xf32>
    %c2_i32_119 = arith.constant 2 : i32
    %347 = tpu.dynamic_rotate %346 by %c2_i32_119 dim 0 : vector<16x64xf32>, i32 -> vector<16x64xf32>
    %348 = arith.addf %342, %347 : vector<16x64xf32>
    %349 = vector.extract_strided_slice %22 {offsets = [0, 768], sizes = [1, 64], strides = [1, 1]} : vector<1x1024xf32> to vector<1x64xf32>
    %350 = vector.broadcast %349 : vector<1x64xf32> to vector<16x64xf32>
    %351 = arith.addf %348, %350 : vector<16x64xf32>
    %c1_i32_120 = arith.constant 1 : i32
    %352 = vector.broadcast %c1_i32_120 : i32 to vector<16x1xi32>
    %353 = arith.andi %0, %352 : vector<16x1xi32>
    %c0_i32_121 = arith.constant 0 : i32
    %354 = vector.broadcast %c0_i32_121 : i32 to vector<16x1xi32>
    %355 = arith.cmpi eq, %353, %354 : vector<16x1xi32>
    %356 = arith.extui %355 : vector<16x1xi1> to vector<16x1xi32>
    %357 = arith.sitofp %356 : vector<16x1xi32> to vector<16x1xf32>
    %358 = vector.broadcast %357 : vector<16x1xf32> to vector<16x64xf32>
    %359 = arith.mulf %351, %358 : vector<16x64xf32>
    %cst_122 = arith.constant dense<0.000000e+00> : vector<64xf32>
    %360 = vector.multi_reduction <add>, %359, %cst_122 [0] : vector<16x64xf32> to vector<64xf32>
    %361 = vector.shape_cast %360 : vector<64xf32> to vector<1x64xf32>
    %362 = arith.mulf %359, %359 : vector<16x64xf32>
    %cst_123 = arith.constant dense<0.000000e+00> : vector<64xf32>
    %363 = vector.multi_reduction <add>, %362, %cst_123 [0] : vector<16x64xf32> to vector<64xf32>
    %364 = vector.shape_cast %363 : vector<64xf32> to vector<1x64xf32>
    %c0_124 = arith.constant 0 : index
    %c0_125 = arith.constant 0 : index
    %365 = vector.load %arg24[%c0_124, %c0_125] : memref<64x64xf32, #tpu.memory_space<vmem>>, vector<64x64xf32>
    %cst_126 = arith.constant dense<0.000000e+00> : vector<1x64xf32>
    %366 = tpu.matmul %361, %365, %cst_126 {dimension_numbers = #tpu.dot_dimension_numbers<[1], [0], [0], [1], [0, 0, 1, 1], [], []>} : vector<1x64xf32>, vector<64x64xf32>, vector<1x64xf32> -> vector<1x64xf32>
    %c0_127 = arith.constant 0 : index
    %c0_128 = arith.constant 0 : index
    %367 = vector.load %arg24[%c0_127, %c0_128] : memref<64x64xf32, #tpu.memory_space<vmem>>, vector<64x64xf32>
    %cst_129 = arith.constant dense<0.000000e+00> : vector<1x64xf32>
    %368 = tpu.matmul %364, %367, %cst_129 {dimension_numbers = #tpu.dot_dimension_numbers<[1], [0], [0], [1], [0, 0, 1, 1], [], []>} : vector<1x64xf32>, vector<64x64xf32>, vector<1x64xf32> -> vector<1x64xf32>
    %369 = arith.mulf %366, %366 : vector<1x64xf32>
    %370 = arith.subf %368, %369 : vector<1x64xf32>
    %cst_130 = arith.constant 0.000000e+00 : f32
    %371 = vector.broadcast %cst_130 : f32 to vector<1x64xf32>
    %372 = arith.maximumf %370, %371 : vector<1x64xf32>
    %cst_131 = arith.constant 9.99999974E-6 : f32
    %373 = vector.broadcast %cst_131 : f32 to vector<1x64xf32>
    %374 = arith.addf %372, %373 : vector<1x64xf32>
    %375 = math.rsqrt %374 : vector<1x64xf32>
    %376 = vector.extract_strided_slice %23 {offsets = [0, 768], sizes = [1, 64], strides = [1, 1]} : vector<1x1024xf32> to vector<1x64xf32>
    %377 = arith.mulf %375, %376 : vector<1x64xf32>
    %378 = vector.extract_strided_slice %24 {offsets = [0, 768], sizes = [1, 64], strides = [1, 1]} : vector<1x1024xf32> to vector<1x64xf32>
    %379 = arith.mulf %366, %377 : vector<1x64xf32>
    %380 = arith.subf %378, %379 : vector<1x64xf32>
    %381 = vector.broadcast %377 : vector<1x64xf32> to vector<16x64xf32>
    %382 = arith.mulf %351, %381 : vector<16x64xf32>
    %383 = vector.broadcast %380 : vector<1x64xf32> to vector<16x64xf32>
    %384 = arith.addf %382, %383 : vector<16x64xf32>
    %385 = arith.negf %384 : vector<16x64xf32>
    %386 = math.exp %385 : vector<16x64xf32>
    %cst_132 = arith.constant 1.000000e+00 : f32
    %387 = vector.broadcast %cst_132 : f32 to vector<16x64xf32>
    %388 = arith.addf %387, %386 : vector<16x64xf32>
    %389 = arith.divf %387, %388 : vector<16x64xf32>
    %390 = arith.mulf %384, %389 : vector<16x64xf32>
    %391 = tpu.concatenate %390, %137 in 1 : vector<16x64xf32>, vector<16x64xf32> -> vector<16x128xf32>
    %c1_i32_133 = arith.constant 1 : i32
    %392 = vector.broadcast %c1_i32_133 : i32 to vector<16x1xi32>
    %393 = arith.andi %0, %392 : vector<16x1xi32>
    %c0_i32_134 = arith.constant 0 : i32
    %394 = vector.broadcast %c0_i32_134 : i32 to vector<16x1xi32>
    %395 = arith.cmpi eq, %393, %394 : vector<16x1xi32>
    %396 = arith.extui %395 : vector<16x1xi1> to vector<16x1xi32>
    %397 = arith.sitofp %396 : vector<16x1xi32> to vector<16x1xf32>
    %398 = vector.broadcast %397 : vector<16x1xf32> to vector<16x128xf32>
    %399 = arith.mulf %391, %398 : vector<16x128xf32>
    %c14_i32_135 = arith.constant 14 : i32
    %400 = tpu.dynamic_rotate %399 by %c14_i32_135 dim 0 : vector<16x128xf32>, i32 -> vector<16x128xf32>
    %c14_i32_136 = arith.constant 14 : i32
    %401 = vector.broadcast %c14_i32_136 : i32 to vector<16x1xi32>
    %402 = arith.cmpi slt, %0, %401 : vector<16x1xi32>
    %403 = arith.extui %402 : vector<16x1xi1> to vector<16x1xi32>
    %404 = arith.sitofp %403 : vector<16x1xi32> to vector<16x1xf32>
    %405 = vector.broadcast %404 : vector<16x1xf32> to vector<16x128xf32>
    %406 = arith.mulf %400, %405 : vector<16x128xf32>
    %407 = arith.truncf %399 : vector<16x128xf32> to vector<16x128xbf16>
    %c0_137 = arith.constant 0 : index
    %c0_138 = arith.constant 0 : index
    %408 = vector.load %arg19[%c0_137, %c0_138] : memref<128x32xbf16, #tpu.memory_space<vmem>>, vector<128x32xbf16>
    %cst_139 = arith.constant dense<0.000000e+00> : vector<16x32xf32>
    %409 = tpu.matmul %407, %408, %cst_139 {dimension_numbers = #tpu.dot_dimension_numbers<[1], [0], [0], [1], [0, 0, 1, 1], [], []>} : vector<16x128xbf16>, vector<128x32xbf16>, vector<16x32xf32> -> vector<16x32xf32>
    %410 = arith.truncf %406 : vector<16x128xf32> to vector<16x128xbf16>
    %411 = tpu.concatenate %407, %410 in 1 : vector<16x128xbf16>, vector<16x128xbf16> -> vector<16x256xbf16>
    %c0_140 = arith.constant 0 : index
    %c0_141 = arith.constant 0 : index
    %412 = vector.load %arg20[%c0_140, %c0_141] : memref<256x32xbf16, #tpu.memory_space<vmem>>, vector<256x32xbf16>
    %cst_142 = arith.constant dense<0.000000e+00> : vector<16x32xf32>
    %413 = tpu.matmul %411, %412, %cst_142 {dimension_numbers = #tpu.dot_dimension_numbers<[1], [0], [0], [1], [0, 0, 1, 1], [], []>} : vector<16x256xbf16>, vector<256x32xbf16>, vector<16x32xf32> -> vector<16x32xf32>
    %c1_i32_143 = arith.constant 1 : i32
    %414 = tpu.dynamic_rotate %413 by %c1_i32_143 dim 0 : vector<16x32xf32>, i32 -> vector<16x32xf32>
    %415 = arith.addf %409, %414 : vector<16x32xf32>
    %416 = vector.extract_strided_slice %22 {offsets = [0, 896], sizes = [1, 32], strides = [1, 1]} : vector<1x1024xf32> to vector<1x32xf32>
    %417 = vector.broadcast %416 : vector<1x32xf32> to vector<16x32xf32>
    %418 = arith.addf %415, %417 : vector<16x32xf32>
    %cst_144 = arith.constant dense<0.000000e+00> : vector<32xf32>
    %419 = vector.multi_reduction <add>, %418, %cst_144 [0] : vector<16x32xf32> to vector<32xf32>
    %420 = vector.shape_cast %419 : vector<32xf32> to vector<1x32xf32>
    %421 = arith.mulf %418, %418 : vector<16x32xf32>
    %cst_145 = arith.constant dense<0.000000e+00> : vector<32xf32>
    %422 = vector.multi_reduction <add>, %421, %cst_145 [0] : vector<16x32xf32> to vector<32xf32>
    %423 = vector.shape_cast %422 : vector<32xf32> to vector<1x32xf32>
    %c0_146 = arith.constant 0 : index
    %c0_147 = arith.constant 0 : index
    %424 = vector.load %arg27[%c0_146, %c0_147] : memref<32x32xf32, #tpu.memory_space<vmem>>, vector<32x32xf32>
    %cst_148 = arith.constant dense<0.000000e+00> : vector<1x32xf32>
    %425 = tpu.matmul %420, %424, %cst_148 {dimension_numbers = #tpu.dot_dimension_numbers<[1], [0], [0], [1], [0, 0, 1, 1], [], []>} : vector<1x32xf32>, vector<32x32xf32>, vector<1x32xf32> -> vector<1x32xf32>
    %c0_149 = arith.constant 0 : index
    %c0_150 = arith.constant 0 : index
    %426 = vector.load %arg27[%c0_149, %c0_150] : memref<32x32xf32, #tpu.memory_space<vmem>>, vector<32x32xf32>
    %cst_151 = arith.constant dense<0.000000e+00> : vector<1x32xf32>
    %427 = tpu.matmul %423, %426, %cst_151 {dimension_numbers = #tpu.dot_dimension_numbers<[1], [0], [0], [1], [0, 0, 1, 1], [], []>} : vector<1x32xf32>, vector<32x32xf32>, vector<1x32xf32> -> vector<1x32xf32>
    %428 = arith.mulf %425, %425 : vector<1x32xf32>
    %429 = arith.subf %427, %428 : vector<1x32xf32>
    %cst_152 = arith.constant 0.000000e+00 : f32
    %430 = vector.broadcast %cst_152 : f32 to vector<1x32xf32>
    %431 = arith.maximumf %429, %430 : vector<1x32xf32>
    %cst_153 = arith.constant 9.99999974E-6 : f32
    %432 = vector.broadcast %cst_153 : f32 to vector<1x32xf32>
    %433 = arith.addf %431, %432 : vector<1x32xf32>
    %434 = math.rsqrt %433 : vector<1x32xf32>
    %435 = vector.extract_strided_slice %23 {offsets = [0, 896], sizes = [1, 32], strides = [1, 1]} : vector<1x1024xf32> to vector<1x32xf32>
    %436 = arith.mulf %434, %435 : vector<1x32xf32>
    %437 = vector.extract_strided_slice %24 {offsets = [0, 896], sizes = [1, 32], strides = [1, 1]} : vector<1x1024xf32> to vector<1x32xf32>
    %438 = arith.mulf %425, %436 : vector<1x32xf32>
    %439 = arith.subf %437, %438 : vector<1x32xf32>
    %440 = vector.broadcast %436 : vector<1x32xf32> to vector<16x32xf32>
    %441 = arith.mulf %418, %440 : vector<16x32xf32>
    %442 = vector.broadcast %439 : vector<1x32xf32> to vector<16x32xf32>
    %443 = arith.addf %441, %442 : vector<16x32xf32>
    %444 = arith.negf %443 : vector<16x32xf32>
    %445 = math.exp %444 : vector<16x32xf32>
    %cst_154 = arith.constant 1.000000e+00 : f32
    %446 = vector.broadcast %cst_154 : f32 to vector<16x32xf32>
    %447 = arith.addf %446, %445 : vector<16x32xf32>
    %448 = arith.divf %446, %447 : vector<16x32xf32>
    %449 = arith.mulf %443, %448 : vector<16x32xf32>
    %450 = tpu.concatenate %449, %77 in 1 : vector<16x32xf32>, vector<16x32xf32> -> vector<16x64xf32>
    %c1_i32_155 = arith.constant 1 : i32
    %451 = tpu.dynamic_rotate %450 by %c1_i32_155 dim 0 : vector<16x64xf32>, i32 -> vector<16x64xf32>
    %c1_i32_156 = arith.constant 1 : i32
    %452 = vector.broadcast %c1_i32_156 : i32 to vector<16x1xi32>
    %453 = arith.cmpi sge, %0, %452 : vector<16x1xi32>
    %454 = arith.extui %453 : vector<16x1xi1> to vector<16x1xi32>
    %455 = arith.sitofp %454 : vector<16x1xi32> to vector<16x1xf32>
    %456 = vector.broadcast %455 : vector<16x1xf32> to vector<16x64xf32>
    %457 = arith.mulf %451, %456 : vector<16x64xf32>
    %c15_i32_157 = arith.constant 15 : i32
    %458 = tpu.dynamic_rotate %450 by %c15_i32_157 dim 0 : vector<16x64xf32>, i32 -> vector<16x64xf32>
    %c15_i32_158 = arith.constant 15 : i32
    %459 = vector.broadcast %c15_i32_158 : i32 to vector<16x1xi32>
    %460 = arith.cmpi slt, %0, %459 : vector<16x1xi32>
    %461 = arith.extui %460 : vector<16x1xi1> to vector<16x1xi32>
    %462 = arith.sitofp %461 : vector<16x1xi32> to vector<16x1xf32>
    %463 = vector.broadcast %462 : vector<16x1xf32> to vector<16x64xf32>
    %464 = arith.mulf %458, %463 : vector<16x64xf32>
    %465 = tpu.concatenate %457, %450, %464 in 1 : vector<16x64xf32>, vector<16x64xf32>, vector<16x64xf32> -> vector<16x192xf32>
    %466 = arith.truncf %465 : vector<16x192xf32> to vector<16x192xbf16>
    %c0_159 = arith.constant 0 : index
    %c0_160 = arith.constant 0 : index
    %467 = vector.load %arg21[%c0_159, %c0_160] : memref<192x32xbf16, #tpu.memory_space<vmem>>, vector<192x32xbf16>
    %cst_161 = arith.constant dense<0.000000e+00> : vector<16x32xf32>
    %468 = tpu.matmul %466, %467, %cst_161 {dimension_numbers = #tpu.dot_dimension_numbers<[1], [0], [0], [1], [0, 0, 1, 1], [], []>} : vector<16x192xbf16>, vector<192x32xbf16>, vector<16x32xf32> -> vector<16x32xf32>
    %c0_162 = arith.constant 0 : index
    %c0_163 = arith.constant 0 : index
    %469 = vector.load %arg22[%c0_162, %c0_163] : memref<1x32xf32, #tpu.memory_space<vmem>>, vector<1x32xf32>
    %470 = vector.broadcast %469 : vector<1x32xf32> to vector<16x32xf32>
    %471 = arith.addf %468, %470 : vector<16x32xf32>
    %472 = arith.index_cast %arg0 : i32 to index
    %473 = memref.load %arg2[%472] : memref<2xf32, #tpu.memory_space<smem>>
    %474 = vector.broadcast %473 : f32 to vector<16x32xf32>
    %475 = arith.mulf %471, %474 : vector<16x32xf32>
    %c0_164 = arith.constant 0 : index
    %c0_165 = arith.constant 0 : index
    %476 = vector.load %arg28[%c0_164, %c0_165] : memref<16x32xf32, #tpu.memory_space<vmem>>, vector<16x32xf32>
    tpu.vector_store %arg28[%c0_164, %c0_165], %475 {strides = array<i32>} : memref<16x32xf32, #tpu.memory_space<vmem>>, vector<16x32xf32>,
    return
  }
  func.func @transform_0(%arg0: i32) -> i32 {
    %c0_i32 = arith.constant 0 : i32
    %c0_i32_0 = arith.constant 0 : i32
    return %c0_i32 : i32
  }
  func.func @transform_1(%arg0: i32) -> i32 {
    %c0_i32 = arith.constant 0 : i32
    %c0_i32_0 = arith.constant 0 : i32
    return %c0_i32 : i32
  }
  func.func @transform_2(%arg0: i32) -> (i32, i32) {
    %c0_i32 = arith.constant 0 : i32
    %c0_i32_0 = arith.constant 0 : i32
    return %arg0, %c0_i32 : i32, i32
  }
  func.func @transform_3(%arg0: i32) -> (i32, i32) {
    %c0_i32 = arith.constant 0 : i32
    %c0_i32_0 = arith.constant 0 : i32
    %c0_i32_1 = arith.constant 0 : i32
    return %c0_i32, %c0_i32_0 : i32, i32
  }
  func.func @transform_4(%arg0: i32) -> (i32, i32) {
    %c0_i32 = arith.constant 0 : i32
    %c0_i32_0 = arith.constant 0 : i32
    %c0_i32_1 = arith.constant 0 : i32
    return %c0_i32, %c0_i32_0 : i32, i32
  }
  func.func @transform_5(%arg0: i32) -> (i32, i32) {
    %c0_i32 = arith.constant 0 : i32
    %c0_i32_0 = arith.constant 0 : i32
    %c0_i32_1 = arith.constant 0 : i32
    return %c0_i32, %c0_i32_0 : i32, i32
  }
  func.func @transform_6(%arg0: i32) -> (i32, i32) {
    %c0_i32 = arith.constant 0 : i32
    %c0_i32_0 = arith.constant 0 : i32
    %c0_i32_1 = arith.constant 0 : i32
    return %c0_i32, %c0_i32_0 : i32, i32
  }
  func.func @transform_7(%arg0: i32) -> (i32, i32) {
    %c0_i32 = arith.constant 0 : i32
    %c0_i32_0 = arith.constant 0 : i32
    %c0_i32_1 = arith.constant 0 : i32
    return %c0_i32, %c0_i32_0 : i32, i32
  }
  func.func @transform_8(%arg0: i32) -> (i32, i32) {
    %c0_i32 = arith.constant 0 : i32
    %c0_i32_0 = arith.constant 0 : i32
    %c0_i32_1 = arith.constant 0 : i32
    return %c0_i32, %c0_i32_0 : i32, i32
  }
  func.func @transform_9(%arg0: i32) -> (i32, i32) {
    %c0_i32 = arith.constant 0 : i32
    %c0_i32_0 = arith.constant 0 : i32
    %c0_i32_1 = arith.constant 0 : i32
    return %c0_i32, %c0_i32_0 : i32, i32
  }
  func.func @transform_10(%arg0: i32) -> (i32, i32) {
    %c0_i32 = arith.constant 0 : i32
    %c0_i32_0 = arith.constant 0 : i32
    %c0_i32_1 = arith.constant 0 : i32
    return %c0_i32, %c0_i32_0 : i32, i32
  }
  func.func @transform_11(%arg0: i32) -> (i32, i32) {
    %c0_i32 = arith.constant 0 : i32
    %c0_i32_0 = arith.constant 0 : i32
    %c0_i32_1 = arith.constant 0 : i32
    return %c0_i32, %c0_i32_0 : i32, i32
  }
  func.func @transform_12(%arg0: i32) -> (i32, i32) {
    %c0_i32 = arith.constant 0 : i32
    %c0_i32_0 = arith.constant 0 : i32
    %c0_i32_1 = arith.constant 0 : i32
    return %c0_i32, %c0_i32_0 : i32, i32
  }
  func.func @transform_13(%arg0: i32) -> (i32, i32) {
    %c0_i32 = arith.constant 0 : i32
    %c0_i32_0 = arith.constant 0 : i32
    %c0_i32_1 = arith.constant 0 : i32
    return %c0_i32, %c0_i32_0 : i32, i32
  }
  func.func @transform_14(%arg0: i32) -> (i32, i32) {
    %c0_i32 = arith.constant 0 : i32
    %c0_i32_0 = arith.constant 0 : i32
    %c0_i32_1 = arith.constant 0 : i32
    return %c0_i32, %c0_i32_0 : i32, i32
  }
  func.func @transform_15(%arg0: i32) -> (i32, i32) {
    %c0_i32 = arith.constant 0 : i32
    %c0_i32_0 = arith.constant 0 : i32
    %c0_i32_1 = arith.constant 0 : i32
    return %c0_i32, %c0_i32_0 : i32, i32
  }
  func.func @transform_16(%arg0: i32) -> (i32, i32) {
    %c0_i32 = arith.constant 0 : i32
    %c0_i32_0 = arith.constant 0 : i32
    %c0_i32_1 = arith.constant 0 : i32
    return %c0_i32, %c0_i32_0 : i32, i32
  }
  func.func @transform_17(%arg0: i32) -> (i32, i32) {
    %c0_i32 = arith.constant 0 : i32
    %c0_i32_0 = arith.constant 0 : i32
    %c0_i32_1 = arith.constant 0 : i32
    return %c0_i32, %c0_i32_0 : i32, i32
  }
  func.func @transform_18(%arg0: i32) -> (i32, i32) {
    %c0_i32 = arith.constant 0 : i32
    %c0_i32_0 = arith.constant 0 : i32
    %c0_i32_1 = arith.constant 0 : i32
    return %c0_i32, %c0_i32_0 : i32, i32
  }
  func.func @transform_19(%arg0: i32) -> (i32, i32) {
    %c0_i32 = arith.constant 0 : i32
    %c0_i32_0 = arith.constant 0 : i32
    %c0_i32_1 = arith.constant 0 : i32
    return %c0_i32, %c0_i32_0 : i32, i32
  }
  func.func @transform_20(%arg0: i32) -> (i32, i32) {
    %c0_i32 = arith.constant 0 : i32
    %c0_i32_0 = arith.constant 0 : i32
    %c0_i32_1 = arith.constant 0 : i32
    return %c0_i32, %c0_i32_0 : i32, i32
  }
  func.func @transform_21(%arg0: i32) -> (i32, i32) {
    %c0_i32 = arith.constant 0 : i32
    %c0_i32_0 = arith.constant 0 : i32
    %c0_i32_1 = arith.constant 0 : i32
    return %c0_i32, %c0_i32_0 : i32, i32
  }
  func.func @transform_22(%arg0: i32) -> (i32, i32) {
    %c0_i32 = arith.constant 0 : i32
    %c0_i32_0 = arith.constant 0 : i32
    %c0_i32_1 = arith.constant 0 : i32
    return %c0_i32, %c0_i32_0 : i32, i32
  }
  func.func @transform_23(%arg0: i32) -> (i32, i32) {
    %c0_i32 = arith.constant 0 : i32
    %c0_i32_0 = arith.constant 0 : i32
    %c0_i32_1 = arith.constant 0 : i32
    return %c0_i32, %c0_i32_0 : i32, i32
  }
  func.func @transform_24(%arg0: i32) -> (i32, i32) {
    %c0_i32 = arith.constant 0 : i32
    %c0_i32_0 = arith.constant 0 : i32
    %c0_i32_1 = arith.constant 0 : i32
    return %c0_i32, %c0_i32_0 : i32, i32
  }
  func.func @transform_25(%arg0: i32) -> (i32, i32) {
    %c0_i32 = arith.constant 0 : i32
    %c0_i32_0 = arith.constant 0 : i32
    %c0_i32_1 = arith.constant 0 : i32
    return %c0_i32, %c0_i32_0 : i32, i32
  }
  func.func @transform_26(%arg0: i32) -> (i32, i32) {
    %c0_i32 = arith.constant 0 : i32
    %c0_i32_0 = arith.constant 0 : i32
    %c0_i32_1 = arith.constant 0 : i32
    return %c0_i32, %c0_i32_0 : i32, i32
  }
  func.func @transform_27(%arg0: i32) -> (i32, i32) {
    %c0_i32 = arith.constant 0 : i32
    %c0_i32_0 = arith.constant 0 : i32
    return %arg0, %c0_i32 : i32, i32
  }
}

</mosaic_0001>

<llo_original>
// kernel: scorenet_forward.1
$region0: #{scorenet_forward.1}
  #allocation0 [shape = 'u32[]', space=smem, size = 0x4, offset = 0x4, fixed_abs, tag = 'smem constant byte address 0x4 - core index']
  #allocation1 [shape = 'u32[72,128]{1,0:T(1,128)}', space=vmem, size = 0x9000, scoped, tag = 'internal scratch']
  %s0 = inlined_call_operand.vmem [shape: f32[2], index: 0, kind: input, shape index: {}]
  %s1 = inlined_call_operand.vmem [shape: f32[2], index: 1, kind: input, shape index: {}]
  %s2 = inlined_call_operand.vmem [shape: f32[32,32], index: 2, kind: input, shape index: {}]
  %s3 = inlined_call_operand.vmem [shape: f32[1,128], index: 3, kind: input, shape index: {}]
  %s4 = inlined_call_operand.vmem [shape: f32[256,256], index: 4, kind: input, shape index: {}]
  %s5 = inlined_call_operand.vmem [shape: f32[1,256], index: 5, kind: input, shape index: {}]
  %s6 = inlined_call_operand.vmem [shape: f32[256,1024], index: 6, kind: input, shape index: {}]
  %s7 = inlined_call_operand.vmem [shape: f32[1,1024], index: 7, kind: input, shape index: {}]
  %s8 = inlined_call_operand.vmem [shape: f32[1,1024], index: 8, kind: input, shape index: {}]
  %s9 = inlined_call_operand.vmem [shape: f32[1,1024], index: 9, kind: input, shape index: {}]
  %s10 = inlined_call_operand.vmem [shape: bf16[96,32], index: 10, kind: input, shape index: {}]
  %s11 = inlined_call_operand.vmem [shape: bf16[96,64], index: 11, kind: input, shape index: {}]
  %s12 = inlined_call_operand.vmem [shape: bf16[192,128], index: 12, kind: input, shape index: {}]
  %s13 = inlined_call_operand.vmem [shape: bf16[384,256], index: 13, kind: input, shape index: {}]
  %s14 = inlined_call_operand.vmem [shape: bf16[256,128], index: 14, kind: input, shape index: {}]
  %s15 = inlined_call_operand.vmem [shape: bf16[512,128], index: 15, kind: input, shape index: {}]
  %s16 = inlined_call_operand.vmem [shape: bf16[256,64], index: 16, kind: input, shape index: {}]
  %s17 = inlined_call_operand.vmem [shape: bf16[512,64], index: 17, kind: input, shape index: {}]
  %s18 = inlined_call_operand.vmem [shape: bf16[128,32], index: 18, kind: input, shape index: {}]
  %s19 = inlined_call_operand.vmem [shape: bf16[256,32], index: 19, kind: input, shape index: {}]
  %s20 = inlined_call_operand.vmem [shape: bf16[192,32], index: 20, kind: input, shape index: {}]
  %s21 = inlined_call_operand.vmem [shape: f32[1,32], index: 21, kind: input, shape index: {}]
  %s22 = inlined_call_operand.vmem [shape: f32[32,32], index: 22, kind: input, shape index: {}]
  %s23 = inlined_call_operand.vmem [shape: f32[64,64], index: 23, kind: input, shape index: {}]
  %s24 = inlined_call_operand.vmem [shape: f32[128,128], index: 24, kind: input, shape index: {}]
  %s25 = inlined_call_operand.vmem [shape: f32[256,256], index: 25, kind: input, shape index: {}]
  %s26 = inlined_call_operand.vmem [shape: f32[32,32], index: 26, kind: input, shape index: {}]
  %s27 = inlined_call_operand.hbm [shape: f32[32,32], index: 27, kind: output, shape index: {}]
  %s28 = sld [smem:[#allocation0]]
  $region149: #{scorenet_forward.1} parent=0
    _
  %s30 = ssub.s32 1, %s28
  %s31 = scalar_select 0, %s30, %s28
  $region1: #{scorenet_forward.1} parent=0
    #allocation2 [shape = 'u8[512]{0}', space=smem, size = 0x200, scoped, tag = 'input window, operand 0, single buffered']
    #allocation3 [shape = 's32[2]{0}', space=sflag, size = 0x8, scoped, tag = 'scoped memory for scorenet_forward.1']
    #allocation4 [shape = 's32[2]{0}', space=sflag, size = 0x8, scoped, tag = 'scoped memory for scorenet_forward.1']
    #allocation5 [shape = 'u8[512]{0}', space=smem, size = 0x200, scoped, tag = 'input window, operand 1, single buffered']
    #allocation6 [shape = 's32[1]{0}', space=sflag, size = 0x4, scoped, tag = 'scoped memory for scorenet_forward.1']
    #allocation7 [shape = 'u8[16384]{0}', space=vmem, size = 0x4000, scoped, tag = 'output window, operand 0']
    %32 = vsyncpa [#allocation4], 0
    %33 = vsyncpa [#allocation6], 0
    %34 = vsyncpa [#allocation3], 0
    %s35 = scalar_lea.sflag [#allocation3], 1
    %36 = vsyncpa %s35, 0
    loop: start=0, step=1, limit=4
    $region2: #{scorenet_forward.1} parent=1 // loop_pre_header
      _
    $region3: #{scorenet_forward.1} parent=1 // loop_header
      %s38 = sphi 0, %s42
      %p39 = scmp.ge.s32.totalorder %s38, 4
      %s46 = sphi 0, %s46
      %s48 = sphi 0, %s46
      %s49 = sphi 0, %s48
      %s63 = sphi 0, %s49
      %s67 = sphi 0, %s67
      %s69 = sphi 0, %s67
      %s70 = sphi 0, %s69
      %s84 = sphi 0, %s70
      %s90 = sphi 0, %s92
      %s93 = sphi 0, %s90
      %s94 = sphi 0, %s93
      %s110 = sphi 0, %s94
      %s114 = sphi 0, %s114
      %s116 = sphi 0, %s114
      %s117 = sphi 0, %s116
      %s131 = sphi 0, %s117
      %s135 = sphi 0, %s135
      %s137 = sphi 0, %s135
      %s138 = sphi 0, %s137
      %s152 = sphi 0, %s138
      %s156 = sphi 0, %s156
      %s158 = sphi 0, %s156
      %s159 = sphi 0, %s158
      %s173 = sphi 0, %s159
      %s177 = sphi 0, %s177
      %s179 = sphi 0, %s177
      %s180 = sphi 0, %s179
      %s194 = sphi 0, %s180
      %s198 = sphi 0, %s198
      %s200 = sphi 0, %s198
      %s201 = sphi 0, %s200
      %s215 = sphi 0, %s201
      %s219 = sphi 0, %s219
      %s221 = sphi 0, %s219
      %s222 = sphi 0, %s221
      %s236 = sphi 0, %s222
      %s240 = sphi 0, %s240
      %s242 = sphi 0, %s240
      %s243 = sphi 0, %s242
      %s257 = sphi 0, %s243
      %s261 = sphi 0, %s261
      %s263 = sphi 0, %s261
      %s264 = sphi 0, %s263
      %s278 = sphi 0, %s264
      %s282 = sphi 0, %s282
      %s284 = sphi 0, %s282
      %s285 = sphi 0, %s284
      %s299 = sphi 0, %s285
      %s303 = sphi 0, %s303
      %s305 = sphi 0, %s303
      %s306 = sphi 0, %s305
      %s320 = sphi 0, %s306
      %s324 = sphi 0, %s324
      %s326 = sphi 0, %s324
      %s327 = sphi 0, %s326
      %s341 = sphi 0, %s327
      %s345 = sphi 0, %s345
      %s347 = sphi 0, %s345
      %s348 = sphi 0, %s347
      %s362 = sphi 0, %s348
      %s366 = sphi 0, %s366
      %s368 = sphi 0, %s366
      %s369 = sphi 0, %s368
      %s383 = sphi 0, %s369
      %s387 = sphi 0, %s387
      %s389 = sphi 0, %s387
      %s390 = sphi 0, %s389
      %s404 = sphi 0, %s390
      %s408 = sphi 0, %s408
      %s410 = sphi 0, %s408
      %s411 = sphi 0, %s410
      %s425 = sphi 0, %s411
      %s429 = sphi 0, %s429
      %s431 = sphi 0, %s429
      %s432 = sphi 0, %s431
      %s446 = sphi 0, %s432
      %s450 = sphi 0, %s450
      %s452 = sphi 0, %s450
      %s453 = sphi 0, %s452
      %s467 = sphi 0, %s453
      %s471 = sphi 0, %s471
      %s473 = sphi 0, %s471
      %s474 = sphi 0, %s473
      %s488 = sphi 0, %s474
      %s492 = sphi 0, %s492
      %s494 = sphi 0, %s492
      %s495 = sphi 0, %s494
      %s509 = sphi 0, %s495
      %s513 = sphi 0, %s513
      %s515 = sphi 0, %s513
      %s516 = sphi 0, %s515
      %s530 = sphi 0, %s516
      %s534 = sphi 0, %s534
      %s536 = sphi 0, %s534
      %s537 = sphi 0, %s536
      %s551 = sphi 0, %s537
      %s555 = sphi 0, %s555
      %s557 = sphi 0, %s555
      %s558 = sphi 0, %s557
      %s572 = sphi 0, %s558
      %s576 = sphi 0, %s576
      %s578 = sphi 0, %s576
      %s579 = sphi 0, %s578
      %s593 = sphi 0, %s579
      %s597 = sphi 0, %s597
      %s599 = sphi 0, %s597
      %s600 = sphi 0, %s599
      %s614 = sphi 0, %s600
      %s620 = sphi 0, %s622
      %s623 = sphi 0, %s620
      %s624 = sphi 0, %s623
      %s640 = sphi 0, %s624
    $region4: #{scorenet_forward.1} parent=1 // loop_header_branch
      %41 = sbr.rel (%p39) target = $region8
    $region5: #{scorenet_forward.1} parent=1 // loop_body
      %s43 = ssub.s32 %s38, 1
      %s44 = ssub.s32 %s38, 2
      %s45 = sadd.s32 %s38, 1
      %s47 = sadd.s32 %s46, 1
      %p50 = scmp.eq.s32.totalorder %s38, 1
      %p51 = scmp.ne.s32.totalorder %s46, %s48
      %p52 = scmp.eq.s32.totalorder %s38, 0
      %p53 = por %p51, %p52
      %p54 = scmp.ne.s32.totalorder %s46, %s48
      %p55 = scmp.eq.s32.totalorder %s43, 1
      %p56 = por %p54, %p55
      %p57 = scmp.ne.s32.totalorder %s48, %s49
      %p58 = scmp.eq.s32.totalorder %s43, 0
      %p59 = por %p57, %p58
      %p60 = scmp.ne.s32.totalorder %s48, %s49
      %p61 = scmp.eq.s32.totalorder %s44, 1
      %p62 = por %p60, %p61
      %p64 = scmp.ne.s32.totalorder %s49, %s63
      %p65 = scmp.eq.s32.totalorder %s44, 0
      %p66 = por %p64, %p65
      %s68 = sadd.s32 %s67, 1
      %p71 = scmp.eq.s32.totalorder %s38, 1
      %p72 = scmp.ne.s32.totalorder %s67, %s69
      %p73 = scmp.eq.s32.totalorder %s38, 0
      %p74 = por %p72, %p73
      %p75 = scmp.ne.s32.totalorder %s67, %s69
      %p76 = scmp.eq.s32.totalorder %s43, 1
      %p77 = por %p75, %p76
      %p78 = scmp.ne.s32.totalorder %s69, %s70
      %p79 = scmp.eq.s32.totalorder %s43, 0
      %p80 = por %p78, %p79
      %p81 = scmp.ne.s32.totalorder %s69, %s70
      %p82 = scmp.eq.s32.totalorder %s44, 1
      %p83 = por %p81, %p82
      %p85 = scmp.ne.s32.totalorder %s70, %s84
      %p86 = scmp.eq.s32.totalorder %s44, 0
      %p87 = por %p85, %p86
      %s88 = ssub.s32 %s38, %s45
      %p89 = scmp.eq.s32.totalorder %s88, 0
      %s91 = sadd.s32 %s90, 1
      %s92 = scalar_select %p89, %s90, %s91
      %p95 = pneg %p89
      %p96 = scmp.eq.s32.totalorder %s38, 1
      %p97 = por %p95, %p96
      %p98 = scmp.ne.s32.totalorder %s90, %s93
      %p99 = scmp.eq.s32.totalorder %s38, 0
      %p100 = por %p98, %p99
      %p101 = scmp.ne.s32.totalorder %s90, %s93
      %p102 = scmp.eq.s32.totalorder %s43, 1
      %p103 = por %p101, %p102
      %p104 = scmp.ne.s32.totalorder %s93, %s94
      %p105 = scmp.eq.s32.totalorder %s43, 0
      %p106 = por %p104, %p105
      %p107 = scmp.ne.s32.totalorder %s93, %s94
      %p108 = scmp.eq.s32.totalorder %s44, 1
      %p109 = por %p107, %p108
      %p111 = scmp.ne.s32.totalorder %s94, %s110
      %p112 = scmp.eq.s32.totalorder %s44, 0
      %p113 = por %p111, %p112
      %s115 = sadd.s32 %s114, 1
      %p118 = scmp.eq.s32.totalorder %s38, 1
      %p119 = scmp.ne.s32.totalorder %s114, %s116
      %p120 = scmp.eq.s32.totalorder %s38, 0
      %p121 = por %p119, %p120
      %p122 = scmp.ne.s32.totalorder %s114, %s116
      %p123 = scmp.eq.s32.totalorder %s43, 1
      %p124 = por %p122, %p123
      %p125 = scmp.ne.s32.totalorder %s116, %s117
      %p126 = scmp.eq.s32.totalorder %s43, 0
      %p127 = por %p125, %p126
      %p128 = scmp.ne.s32.totalorder %s116, %s117
      %p129 = scmp.eq.s32.totalorder %s44, 1
      %p130 = por %p128, %p129
      %p132 = scmp.ne.s32.totalorder %s117, %s131
      %p133 = scmp.eq.s32.totalorder %s44, 0
      %p134 = por %p132, %p133
      %s136 = sadd.s32 %s135, 1
      %p139 = scmp.eq.s32.totalorder %s38, 1
      %p140 = scmp.ne.s32.totalorder %s135, %s137
      %p141 = scmp.eq.s32.totalorder %s38, 0
      %p142 = por %p140, %p141
      %p143 = scmp.ne.s32.totalorder %s135, %s137
      %p144 = scmp.eq.s32.totalorder %s43, 1
      %p145 = por %p143, %p144
      %p146 = scmp.ne.s32.totalorder %s137, %s138
      %p147 = scmp.eq.s32.totalorder %s43, 0
      %p148 = por %p146, %p147
      %p149 = scmp.ne.s32.totalorder %s137, %s138
      %p150 = scmp.eq.s32.totalorder %s44, 1
      %p151 = por %p149, %p150
      %p153 = scmp.ne.s32.totalorder %s138, %s152
      %p154 = scmp.eq.s32.totalorder %s44, 0
      %p155 = por %p153, %p154
      %s157 = sadd.s32 %s156, 1
      %p160 = scmp.eq.s32.totalorder %s38, 1
      %p161 = scmp.ne.s32.totalorder %s156, %s158
      %p162 = scmp.eq.s32.totalorder %s38, 0
      %p163 = por %p161, %p162
      %p164 = scmp.ne.s32.totalorder %s156, %s158
      %p165 = scmp.eq.s32.totalorder %s43, 1
      %p166 = por %p164, %p165
      %p167 = scmp.ne.s32.totalorder %s158, %s159
      %p168 = scmp.eq.s32.totalorder %s43, 0
      %p169 = por %p167, %p168
      %p170 = scmp.ne.s32.totalorder %s158, %s159
      %p171 = scmp.eq.s32.totalorder %s44, 1
      %p172 = por %p170, %p171
      %p174 = scmp.ne.s32.totalorder %s159, %s173
      %p175 = scmp.eq.s32.totalorder %s44, 0
      %p176 = por %p174, %p175
      %s178 = sadd.s32 %s177, 1
      %p181 = scmp.eq.s32.totalorder %s38, 1
      %p182 = scmp.ne.s32.totalorder %s177, %s179
      %p183 = scmp.eq.s32.totalorder %s38, 0
      %p184 = por %p182, %p183
      %p185 = scmp.ne.s32.totalorder %s177, %s179
      %p186 = scmp.eq.s32.totalorder %s43, 1
      %p187 = por %p185, %p186
      %p188 = scmp.ne.s32.totalorder %s179, %s180
      %p189 = scmp.eq.s32.totalorder %s43, 0
      %p190 = por %p188, %p189
      %p191 = scmp.ne.s32.totalorder %s179, %s180
      %p192 = scmp.eq.s32.totalorder %s44, 1
      %p193 = por %p191, %p192
      %p195 = scmp.ne.s32.totalorder %s180, %s194
      %p196 = scmp.eq.s32.totalorder %s44, 0
      %p197 = por %p195, %p196
      %s199 = sadd.s32 %s198, 1
      %p202 = scmp.eq.s32.totalorder %s38, 1
      %p203 = scmp.ne.s32.totalorder %s198, %s200
      %p204 = scmp.eq.s32.totalorder %s38, 0
      %p205 = por %p203, %p204
      %p206 = scmp.ne.s32.totalorder %s198, %s200
      %p207 = scmp.eq.s32.totalorder %s43, 1
      %p208 = por %p206, %p207
      %p209 = scmp.ne.s32.totalorder %s200, %s201
      %p210 = scmp.eq.s32.totalorder %s43, 0
      %p211 = por %p209, %p210
      %p212 = scmp.ne.s32.totalorder %s200, %s201
      %p213 = scmp.eq.s32.totalorder %s44, 1
      %p214 = por %p212, %p213
      %p216 = scmp.ne.s32.totalorder %s201, %s215
      %p217 = scmp.eq.s32.totalorder %s44, 0
      %p218 = por %p216, %p217
      %s220 = sadd.s32 %s219, 1
      %p223 = scmp.eq.s32.totalorder %s38, 1
      %p224 = scmp.ne.s32.totalorder %s219, %s221
      %p225 = scmp.eq.s32.totalorder %s38, 0
      %p226 = por %p224, %p225
      %p227 = scmp.ne.s32.totalorder %s219, %s221
      %p228 = scmp.eq.s32.totalorder %s43, 1
      %p229 = por %p227, %p228
      %p230 = scmp.ne.s32.totalorder %s221, %s222
      %p231 = scmp.eq.s32.totalorder %s43, 0
      %p232 = por %p230, %p231
      %p233 = scmp.ne.s32.totalorder %s221, %s222
      %p234 = scmp.eq.s32.totalorder %s44, 1
      %p235 = por %p233, %p234
      %p237 = scmp.ne.s32.totalorder %s222, %s236
      %p238 = scmp.eq.s32.totalorder %s44, 0
      %p239 = por %p237, %p238
      %s241 = sadd.s32 %s240, 1
      %p244 = scmp.eq.s32.totalorder %s38, 1
      %p245 = scmp.ne.s32.totalorder %s240, %s242
      %p246 = scmp.eq.s32.totalorder %s38, 0
      %p247 = por %p245, %p246
      %p248 = scmp.ne.s32.totalorder %s240, %s242
      %p249 = scmp.eq.s32.totalorder %s43, 1
      %p250 = por %p248, %p249
      %p251 = scmp.ne.s32.totalorder %s242, %s243
      %p252 = scmp.eq.s32.totalorder %s43, 0
      %p253 = por %p251, %p252
      %p254 = scmp.ne.s32.totalorder %s242, %s243
      %p255 = scmp.eq.s32.totalorder %s44, 1
      %p256 = por %p254, %p255
      %p258 = scmp.ne.s32.totalorder %s243, %s257
      %p259 = scmp.eq.s32.totalorder %s44, 0
      %p260 = por %p258, %p259
      %s262 = sadd.s32 %s261, 1
      %p265 = scmp.eq.s32.totalorder %s38, 1
      %p266 = scmp.ne.s32.totalorder %s261, %s263
      %p267 = scmp.eq.s32.totalorder %s38, 0
      %p268 = por %p266, %p267
      %p269 = scmp.ne.s32.totalorder %s261, %s263
      %p270 = scmp.eq.s32.totalorder %s43, 1
      %p271 = por %p269, %p270
      %p272 = scmp.ne.s32.totalorder %s263, %s264
      %p273 = scmp.eq.s32.totalorder %s43, 0
      %p274 = por %p272, %p273
      %p275 = scmp.ne.s32.totalorder %s263, %s264
      %p276 = scmp.eq.s32.totalorder %s44, 1
      %p277 = por %p275, %p276
      %p279 = scmp.ne.s32.totalorder %s264, %s278
      %p280 = scmp.eq.s32.totalorder %s44, 0
      %p281 = por %p279, %p280
      %s283 = sadd.s32 %s282, 1
      %p286 = scmp.eq.s32.totalorder %s38, 1
      %p287 = scmp.ne.s32.totalorder %s282, %s284
      %p288 = scmp.eq.s32.totalorder %s38, 0
      %p289 = por %p287, %p288
      %p290 = scmp.ne.s32.totalorder %s282, %s284
      %p291 = scmp.eq.s32.totalorder %s43, 1
      %p292 = por %p290, %p291
      %p293 = scmp.ne.s32.totalorder %s284, %s285
      %p294 = scmp.eq.s32.totalorder %s43, 0
      %p295 = por %p293, %p294
      %p296 = scmp.ne.s32.totalorder %s284, %s285
      %p297 = scmp.eq.s32.totalorder %s44, 1
      %p298 = por %p296, %p297
      %p300 = scmp.ne.s32.totalorder %s285, %s299
      %p301 = scmp.eq.s32.totalorder %s44, 0
      %p302 = por %p300, %p301
      %s304 = sadd.s32 %s303, 1
      %p307 = scmp.eq.s32.totalorder %s38, 1
      %p308 = scmp.ne.s32.totalorder %s303, %s305
      %p309 = scmp.eq.s32.totalorder %s38, 0
      %p310 = por %p308, %p309
      %p311 = scmp.ne.s32.totalorder %s303, %s305
      %p312 = scmp.eq.s32.totalorder %s43, 1
      %p313 = por %p311, %p312
      %p314 = scmp.ne.s32.totalorder %s305, %s306
      %p315 = scmp.eq.s32.totalorder %s43, 0
      %p316 = por %p314, %p315
      %p317 = scmp.ne.s32.totalorder %s305, %s306
      %p318 = scmp.eq.s32.totalorder %s44, 1
      %p319 = por %p317, %p318
      %p321 = scmp.ne.s32.totalorder %s306, %s320
      %p322 = scmp.eq.s32.totalorder %s44, 0
      %p323 = por %p321, %p322
      %s325 = sadd.s32 %s324, 1
      %p328 = scmp.eq.s32.totalorder %s38, 1
      %p329 = scmp.ne.s32.totalorder %s324, %s326
      %p330 = scmp.eq.s32.totalorder %s38, 0
      %p331 = por %p329, %p330
      %p332 = scmp.ne.s32.totalorder %s324, %s326
      %p333 = scmp.eq.s32.totalorder %s43, 1
      %p334 = por %p332, %p333
      %p335 = scmp.ne.s32.totalorder %s326, %s327
      %p336 = scmp.eq.s32.totalorder %s43, 0
      %p337 = por %p335, %p336
      %p338 = scmp.ne.s32.totalorder %s326, %s327
      %p339 = scmp.eq.s32.totalorder %s44, 1
      %p340 = por %p338, %p339
      %p342 = scmp.ne.s32.totalorder %s327, %s341
      %p343 = scmp.eq.s32.totalorder %s44, 0
      %p344 = por %p342, %p343
      %s346 = sadd.s32 %s345, 1
      %p349 = scmp.eq.s32.totalorder %s38, 1
      %p350 = scmp.ne.s32.totalorder %s345, %s347
      %p351 = scmp.eq.s32.totalorder %s38, 0
      %p352 = por %p350, %p351
      %p353 = scmp.ne.s32.totalorder %s345, %s347
      %p354 = scmp.eq.s32.totalorder %s43, 1
      %p355 = por %p353, %p354
      %p356 = scmp.ne.s32.totalorder %s347, %s348
      %p357 = scmp.eq.s32.totalorder %s43, 0
      %p358 = por %p356, %p357
      %p359 = scmp.ne.s32.totalorder %s347, %s348
      %p360 = scmp.eq.s32.totalorder %s44, 1
      %p361 = por %p359, %p360
      %p363 = scmp.ne.s32.totalorder %s348, %s362
      %p364 = scmp.eq.s32.totalorder %s44, 0
      %p365 = por %p363, %p364
      %s367 = sadd.s32 %s366, 1
      %p370 = scmp.eq.s32.totalorder %s38, 1
      %p371 = scmp.ne.s32.totalorder %s366, %s368
      %p372 = scmp.eq.s32.totalorder %s38, 0
      %p373 = por %p371, %p372
      %p374 = scmp.ne.s32.totalorder %s366, %s368
      %p375 = scmp.eq.s32.totalorder %s43, 1
      %p376 = por %p374, %p375
      %p377 = scmp.ne.s32.totalorder %s368, %s369
      %p378 = scmp.eq.s32.totalorder %s43, 0
      %p379 = por %p377, %p378
      %p380 = scmp.ne.s32.totalorder %s368, %s369
      %p381 = scmp.eq.s32.totalorder %s44, 1
      %p382 = por %p380, %p381
      %p384 = scmp.ne.s32.totalorder %s369, %s383
      %p385 = scmp.eq.s32.totalorder %s44, 0
      %p386 = por %p384, %p385
      %s388 = sadd.s32 %s387, 1
      %p391 = scmp.eq.s32.totalorder %s38, 1
      %p392 = scmp.ne.s32.totalorder %s387, %s389
      %p393 = scmp.eq.s32.totalorder %s38, 0
      %p394 = por %p392, %p393
      %p395 = scmp.ne.s32.totalorder %s387, %s389
      %p396 = scmp.eq.s32.totalorder %s43, 1
      %p397 = por %p395, %p396
      %p398 = scmp.ne.s32.totalorder %s389, %s390
      %p399 = scmp.eq.s32.totalorder %s43, 0
      %p400 = por %p398, %p399
      %p401 = scmp.ne.s32.totalorder %s389, %s390
      %p402 = scmp.eq.s32.totalorder %s44, 1
      %p403 = por %p401, %p402
      %p405 = scmp.ne.s32.totalorder %s390, %s404
      %p406 = scmp.eq.s32.totalorder %s44, 0
      %p407 = por %p405, %p406
      %s409 = sadd.s32 %s408, 1
      %p412 = scmp.eq.s32.totalorder %s38, 1
      %p413 = scmp.ne.s32.totalorder %s408, %s410
      %p414 = scmp.eq.s32.totalorder %s38, 0
      %p415 = por %p413, %p414
      %p416 = scmp.ne.s32.totalorder %s408, %s410
      %p417 = scmp.eq.s32.totalorder %s43, 1
      %p418 = por %p416, %p417
      %p419 = scmp.ne.s32.totalorder %s410, %s411
      %p420 = scmp.eq.s32.totalorder %s43, 0
      %p421 = por %p419, %p420
      %p422 = scmp.ne.s32.totalorder %s410, %s411
      %p423 = scmp.eq.s32.totalorder %s44, 1
      %p424 = por %p422, %p423
      %p426 = scmp.ne.s32.totalorder %s411, %s425
      %p427 = scmp.eq.s32.totalorder %s44, 0
      %p428 = por %p426, %p427
      %s430 = sadd.s32 %s429, 1
      %p433 = scmp.eq.s32.totalorder %s38, 1
      %p434 = scmp.ne.s32.totalorder %s429, %s431
      %p435 = scmp.eq.s32.totalorder %s38, 0
      %p436 = por %p434, %p435
      %p437 = scmp.ne.s32.totalorder %s429, %s431
      %p438 = scmp.eq.s32.totalorder %s43, 1
      %p439 = por %p437, %p438
      %p440 = scmp.ne.s32.totalorder %s431, %s432
      %p441 = scmp.eq.s32.totalorder %s43, 0
      %p442 = por %p440, %p441
      %p443 = scmp.ne.s32.totalorder %s431, %s432
      %p444 = scmp.eq.s32.totalorder %s44, 1
      %p445 = por %p443, %p444
      %p447 = scmp.ne.s32.totalorder %s432, %s446
      %p448 = scmp.eq.s32.totalorder %s44, 0
      %p449 = por %p447, %p448
      %s451 = sadd.s32 %s450, 1
      %p454 = scmp.eq.s32.totalorder %s38, 1
      %p455 = scmp.ne.s32.totalorder %s450, %s452
      %p456 = scmp.eq.s32.totalorder %s38, 0
      %p457 = por %p455, %p456
      %p458 = scmp.ne.s32.totalorder %s450, %s452
      %p459 = scmp.eq.s32.totalorder %s43, 1
      %p460 = por %p458, %p459
      %p461 = scmp.ne.s32.totalorder %s452, %s453
      %p462 = scmp.eq.s32.totalorder %s43, 0
      %p463 = por %p461, %p462
      %p464 = scmp.ne.s32.totalorder %s452, %s453
      %p465 = scmp.eq.s32.totalorder %s44, 1
      %p466 = por %p464, %p465
      %p468 = scmp.ne.s32.totalorder %s453, %s467
      %p469 = scmp.eq.s32.totalorder %s44, 0
      %p470 = por %p468, %p469
      %s472 = sadd.s32 %s471, 1
      %p475 = scmp.eq.s32.totalorder %s38, 1
      %p476 = scmp.ne.s32.totalorder %s471, %s473
      %p477 = scmp.eq.s32.totalorder %s38, 0
      %p478 = por %p476, %p477
      %p479 = scmp.ne.s32.totalorder %s471, %s473
      %p480 = scmp.eq.s32.totalorder %s43, 1
      %p481 = por %p479, %p480
      %p482 = scmp.ne.s32.totalorder %s473, %s474
      %p483 = scmp.eq.s32.totalorder %s43, 0
      %p484 = por %p482, %p483
      %p485 = scmp.ne.s32.totalorder %s473, %s474
      %p486 = scmp.eq.s32.totalorder %s44, 1
      %p487 = por %p485, %p486
      %p489 = scmp.ne.s32.totalorder %s474, %s488
      %p490 = scmp.eq.s32.totalorder %s44, 0
      %p491 = por %p489, %p490
      %s493 = sadd.s32 %s492, 1
      %p496 = scmp.eq.s32.totalorder %s38, 1
      %p497 = scmp.ne.s32.totalorder %s492, %s494
      %p498 = scmp.eq.s32.totalorder %s38, 0
      %p499 = por %p497, %p498
      %p500 = scmp.ne.s32.totalorder %s492, %s494
      %p501 = scmp.eq.s32.totalorder %s43, 1
      %p502 = por %p500, %p501
      %p503 = scmp.ne.s32.totalorder %s494, %s495
      %p504 = scmp.eq.s32.totalorder %s43, 0
      %p505 = por %p503, %p504
      %p506 = scmp.ne.s32.totalorder %s494, %s495
      %p507 = scmp.eq.s32.totalorder %s44, 1
      %p508 = por %p506, %p507
      %p510 = scmp.ne.s32.totalorder %s495, %s509
      %p511 = scmp.eq.s32.totalorder %s44, 0
      %p512 = por %p510, %p511
      %s514 = sadd.s32 %s513, 1
      %p517 = scmp.eq.s32.totalorder %s38, 1
      %p518 = scmp.ne.s32.totalorder %s513, %s515
      %p519 = scmp.eq.s32.totalorder %s38, 0
      %p520 = por %p518, %p519
      %p521 = scmp.ne.s32.totalorder %s513, %s515
      %p522 = scmp.eq.s32.totalorder %s43, 1
      %p523 = por %p521, %p522
      %p524 = scmp.ne.s32.totalorder %s515, %s516
      %p525 = scmp.eq.s32.totalorder %s43, 0
      %p526 = por %p524, %p525
      %p527 = scmp.ne.s32.totalorder %s515, %s516
      %p528 = scmp.eq.s32.totalorder %s44, 1
      %p529 = por %p527, %p528
      %p531 = scmp.ne.s32.totalorder %s516, %s530
      %p532 = scmp.eq.s32.totalorder %s44, 0
      %p533 = por %p531, %p532
      %s535 = sadd.s32 %s534, 1
      %p538 = scmp.eq.s32.totalorder %s38, 1
      %p539 = scmp.ne.s32.totalorder %s534, %s536
      %p540 = scmp.eq.s32.totalorder %s38, 0
      %p541 = por %p539, %p540
      %p542 = scmp.ne.s32.totalorder %s534, %s536
      %p543 = scmp.eq.s32.totalorder %s43, 1
      %p544 = por %p542, %p543
      %p545 = scmp.ne.s32.totalorder %s536, %s537
      %p546 = scmp.eq.s32.totalorder %s43, 0
      %p547 = por %p545, %p546
      %p548 = scmp.ne.s32.totalorder %s536, %s537
      %p549 = scmp.eq.s32.totalorder %s44, 1
      %p550 = por %p548, %p549
      %p552 = scmp.ne.s32.totalorder %s537, %s551
      %p553 = scmp.eq.s32.totalorder %s44, 0
      %p554 = por %p552, %p553
      %s556 = sadd.s32 %s555, 1
      %p559 = scmp.eq.s32.totalorder %s38, 1
      %p560 = scmp.ne.s32.totalorder %s555, %s557
      %p561 = scmp.eq.s32.totalorder %s38, 0
      %p562 = por %p560, %p561
      %p563 = scmp.ne.s32.totalorder %s555, %s557
      %p564 = scmp.eq.s32.totalorder %s43, 1
      %p565 = por %p563, %p564
      %p566 = scmp.ne.s32.totalorder %s557, %s558
      %p567 = scmp.eq.s32.totalorder %s43, 0
      %p568 = por %p566, %p567
      %p569 = scmp.ne.s32.totalorder %s557, %s558
      %p570 = scmp.eq.s32.totalorder %s44, 1
      %p571 = por %p569, %p570
      %p573 = scmp.ne.s32.totalorder %s558, %s572
      %p574 = scmp.eq.s32.totalorder %s44, 0
      %p575 = por %p573, %p574
      %s577 = sadd.s32 %s576, 1
      %p580 = scmp.eq.s32.totalorder %s38, 1
      %p581 = scmp.ne.s32.totalorder %s576, %s578
      %p582 = scmp.eq.s32.totalorder %s38, 0
      %p583 = por %p581, %p582
      %p584 = scmp.ne.s32.totalorder %s576, %s578
      %p585 = scmp.eq.s32.totalorder %s43, 1
      %p586 = por %p584, %p585
      %p587 = scmp.ne.s32.totalorder %s578, %s579
      %p588 = scmp.eq.s32.totalorder %s43, 0
      %p589 = por %p587, %p588
      %p590 = scmp.ne.s32.totalorder %s578, %s579
      %p591 = scmp.eq.s32.totalorder %s44, 1
      %p592 = por %p590, %p591
      %p594 = scmp.ne.s32.totalorder %s579, %s593
      %p595 = scmp.eq.s32.totalorder %s44, 0
      %p596 = por %p594, %p595
      %s598 = sadd.s32 %s597, 1
      %p601 = scmp.eq.s32.totalorder %s38, 1
      %p602 = scmp.ne.s32.totalorder %s597, %s599
      %p603 = scmp.eq.s32.totalorder %s38, 0
      %p604 = por %p602, %p603
      %p605 = scmp.ne.s32.totalorder %s597, %s599
      %p606 = scmp.eq.s32.totalorder %s43, 1
      %p607 = por %p605, %p606
      %p608 = scmp.ne.s32.totalorder %s599, %s600
      %p609 = scmp.eq.s32.totalorder %s43, 0
      %p610 = por %p608, %p609
      %p611 = scmp.ne.s32.totalorder %s599, %s600
      %p612 = scmp.eq.s32.totalorder %s44, 1
      %p613 = por %p611, %p612
      %p615 = scmp.ne.s32.totalorder %s600, %s614
      %p616 = scmp.eq.s32.totalorder %s44, 0
      %p617 = por %p615, %p616
      %s618 = ssub.s32 %s38, %s45
      %p619 = scmp.eq.s32.totalorder %s618, 0
      %s621 = sadd.s32 %s620, 1
      %s622 = scalar_select %p619, %s620, %s621
      %p625 = pneg %p619
      %p626 = scmp.eq.s32.totalorder %s38, 1
      %p627 = por %p625, %p626
      %p628 = scmp.ne.s32.totalorder %s620, %s623
      %p629 = scmp.eq.s32.totalorder %s38, 0
      %p630 = por %p628, %p629
      %p631 = scmp.ne.s32.totalorder %s620, %s623
      %p632 = scmp.eq.s32.totalorder %s43, 1
      %p633 = por %p631, %p632
      %p634 = scmp.ne.s32.totalorder %s623, %s624
      %p635 = scmp.eq.s32.totalorder %s43, 0
      %p636 = por %p634, %p635
      %p637 = scmp.ne.s32.totalorder %s623, %s624
      %p638 = scmp.eq.s32.totalorder %s44, 1
      %p639 = por %p637, %p638
      %p641 = scmp.ne.s32.totalorder %s624, %s640
      %p642 = scmp.eq.s32.totalorder %s44, 0
      %p643 = por %p641, %p642
      %p644 = scmp.le.s32.totalorder 1, %s38
      %p645 = scmp.lt.s32.totalorder %s38, 3
      %p646 = pnand %p644, %p645
      %p647 = pneg %p646
      // Predicated region
      $region9: #{scorenet_forward.1} parent=5 // pred_check
        _
      $region10: #{scorenet_forward.1} parent=5 // pred_check_branch
        %649 = sbr.rel (%p646) target = $region12
      $region11: #{scorenet_forward.1} parent=5 // pred_region
        %s650 = ssub.s32 %s38, 1
        // Predicated region
        $region13: #{scorenet_forward.1} parent=11 // pred_check
          %p651 = pneg %p59
        $region14: #{scorenet_forward.1} parent=11 // pred_check_branch
          %653 = sbr.rel (%p651) target = $region16
        $region15: #{scorenet_forward.1} parent=11 // pred_region
          %655 = vsyncadd [#allocation4], 0
          %s657 = sshll.u32 %s0, 4
          %s658 = int_to_ptr.vmem [resolvable:$true] %s657
          %660 = dma.vmem_to_smem %s658, 16, [#allocation2], [#allocation4]
        $region16: #{scorenet_forward.1} parent=11 // pred_fallthru
          _
        // Predicated region
        $region17: #{scorenet_forward.1} parent=11 // pred_check
          %p661 = pneg %p80
        $region18: #{scorenet_forward.1} parent=11 // pred_check_branch
          %663 = sbr.rel (%p661) target = $region20
        $region19: #{scorenet_forward.1} parent=11 // pred_region
          %665 = vsyncadd [#allocation6], 0
          %s667 = sshll.u32 %s1, 4
          %s668 = int_to_ptr.vmem [resolvable:$true] %s667
          %670 = dma.vmem_to_smem %s668, 16, [#allocation5], [#allocation6]
        $region20: #{scorenet_forward.1} parent=11 // pred_fallthru
          _
        // Predicated region
        $region21: #{scorenet_forward.1} parent=11 // pred_check
          %p671 = pneg %p127
        $region22: #{scorenet_forward.1} parent=11 // pred_check_branch
          %673 = sbr.rel (%p671) target = $region24
        $region23: #{scorenet_forward.1} parent=11 // pred_region
          _
        $region24: #{scorenet_forward.1} parent=11 // pred_fallthru
          _
        // Predicated region
        $region25: #{scorenet_forward.1} parent=11 // pred_check
          %p674 = pneg %p148
        $region26: #{scorenet_forward.1} parent=11 // pred_check_branch
          %676 = sbr.rel (%p674) target = $region28
        $region27: #{scorenet_forward.1} parent=11 // pred_region
          _
        $region28: #{scorenet_forward.1} parent=11 // pred_fallthru
          _
        // Predicated region
        $region29: #{scorenet_forward.1} parent=11 // pred_check
          %p677 = pneg %p169
        $region30: #{scorenet_forward.1} parent=11 // pred_check_branch
          %679 = sbr.rel (%p677) target = $region32
        $region31: #{scorenet_forward.1} parent=11 // pred_region
          _
        $region32: #{scorenet_forward.1} parent=11 // pred_fallthru
          _
        // Predicated region
        $region33: #{scorenet_forward.1} parent=11 // pred_check
          %p680 = pneg %p190
        $region34: #{scorenet_forward.1} parent=11 // pred_check_branch
          %682 = sbr.rel (%p680) target = $region36
        $region35: #{scorenet_forward.1} parent=11 // pred_region
          _
        $region36: #{scorenet_forward.1} parent=11 // pred_fallthru
          _
        // Predicated region
        $region37: #{scorenet_forward.1} parent=11 // pred_check
          %p683 = pneg %p211
        $region38: #{scorenet_forward.1} parent=11 // pred_check_branch
          %685 = sbr.rel (%p683) target = $region40
        $region39: #{scorenet_forward.1} parent=11 // pred_region
          _
        $region40: #{scorenet_forward.1} parent=11 // pred_fallthru
          _
        // Predicated region
        $region41: #{scorenet_forward.1} parent=11 // pred_check
          %p686 = pneg %p232
        $region42: #{scorenet_forward.1} parent=11 // pred_check_branch
          %688 = sbr.rel (%p686) target = $region44
        $region43: #{scorenet_forward.1} parent=11 // pred_region
          _
        $region44: #{scorenet_forward.1} parent=11 // pred_fallthru
          _
        // Predicated region
        $region45: #{scorenet_forward.1} parent=11 // pred_check
          %p689 = pneg %p253
        $region46: #{scorenet_forward.1} parent=11 // pred_check_branch
          %691 = sbr.rel (%p689) target = $region48
        $region47: #{scorenet_forward.1} parent=11 // pred_region
          _
        $region48: #{scorenet_forward.1} parent=11 // pred_fallthru
          _
        // Predicated region
        $region49: #{scorenet_forward.1} parent=11 // pred_check
          %p692 = pneg %p274
        $region50: #{scorenet_forward.1} parent=11 // pred_check_branch
          %694 = sbr.rel (%p692) target = $region52
        $region51: #{scorenet_forward.1} parent=11 // pred_region
          _
        $region52: #{scorenet_forward.1} parent=11 // pred_fallthru
          _
        // Predicated region
        $region53: #{scorenet_forward.1} parent=11 // pred_check
          %p695 = pneg %p295
        $region54: #{scorenet_forward.1} parent=11 // pred_check_branch
          %697 = sbr.rel (%p695) target = $region56
        $region55: #{scorenet_forward.1} parent=11 // pred_region
          _
        $region56: #{scorenet_forward.1} parent=11 // pred_fallthru
          _
        // Predicated region
        $region57: #{scorenet_forward.1} parent=11 // pred_check
          %p698 = pneg %p316
        $region58: #{scorenet_forward.1} parent=11 // pred_check_branch
          %700 = sbr.rel (%p698) target = $region60
        $region59: #{scorenet_forward.1} parent=11 // pred_region
          _
        $region60: #{scorenet_forward.1} parent=11 // pred_fallthru
          _
        // Predicated region
        $region61: #{scorenet_forward.1} parent=11 // pred_check
          %p701 = pneg %p337
        $region62: #{scorenet_forward.1} parent=11 // pred_check_branch
          %703 = sbr.rel (%p701) target = $region64
        $region63: #{scorenet_forward.1} parent=11 // pred_region
          _
        $region64: #{scorenet_forward.1} parent=11 // pred_fallthru
          _
        // Predicated region
        $region65: #{scorenet_forward.1} parent=11 // pred_check
          %p704 = pneg %p358
        $region66: #{scorenet_forward.1} parent=11 // pred_check_branch
          %706 = sbr.rel (%p704) target = $region68
        $region67: #{scorenet_forward.1} parent=11 // pred_region
          _
        $region68: #{scorenet_forward.1} parent=11 // pred_fallthru
          _
        // Predicated region
        $region69: #{scorenet_forward.1} parent=11 // pred_check
          %p707 = pneg %p379
        $region70: #{scorenet_forward.1} parent=11 // pred_check_branch
          %709 = sbr.rel (%p707) target = $region72
        $region71: #{scorenet_forward.1} parent=11 // pred_region
          _
        $region72: #{scorenet_forward.1} parent=11 // pred_fallthru
          _
        // Predicated region
        $region73: #{scorenet_forward.1} parent=11 // pred_check
          %p710 = pneg %p400
        $region74: #{scorenet_forward.1} parent=11 // pred_check_branch
          %712 = sbr.rel (%p710) target = $region76
        $region75: #{scorenet_forward.1} parent=11 // pred_region
          _
        $region76: #{scorenet_forward.1} parent=11 // pred_fallthru
          _
        // Predicated region
        $region77: #{scorenet_forward.1} parent=11 // pred_check
          %p713 = pneg %p421
        $region78: #{scorenet_forward.1} parent=11 // pred_check_branch
          %715 = sbr.rel (%p713) target = $region80
        $region79: #{scorenet_forward.1} parent=11 // pred_region
          _
        $region80: #{scorenet_forward.1} parent=11 // pred_fallthru
          _
        // Predicated region
        $region81: #{scorenet_forward.1} parent=11 // pred_check
          %p716 = pneg %p442
        $region82: #{scorenet_forward.1} parent=11 // pred_check_branch
          %718 = sbr.rel (%p716) target = $region84
        $region83: #{scorenet_forward.1} parent=11 // pred_region
          _
        $region84: #{scorenet_forward.1} parent=11 // pred_fallthru
          _
        // Predicated region
        $region85: #{scorenet_forward.1} parent=11 // pred_check
          %p719 = pneg %p463
        $region86: #{scorenet_forward.1} parent=11 // pred_check_branch
          %721 = sbr.rel (%p719) target = $region88
        $region87: #{scorenet_forward.1} parent=11 // pred_region
          _
        $region88: #{scorenet_forward.1} parent=11 // pred_fallthru
          _
        // Predicated region
        $region89: #{scorenet_forward.1} parent=11 // pred_check
          %p722 = pneg %p484
        $region90: #{scorenet_forward.1} parent=11 // pred_check_branch
          %724 = sbr.rel (%p722) target = $region92
        $region91: #{scorenet_forward.1} parent=11 // pred_region
          _
        $region92: #{scorenet_forward.1} parent=11 // pred_fallthru
          _
        // Predicated region
        $region93: #{scorenet_forward.1} parent=11 // pred_check
          %p725 = pneg %p505
        $region94: #{scorenet_forward.1} parent=11 // pred_check_branch
          %727 = sbr.rel (%p725) target = $region96
        $region95: #{scorenet_forward.1} parent=11 // pred_region
          _
        $region96: #{scorenet_forward.1} parent=11 // pred_fallthru
          _
        // Predicated region
        $region97: #{scorenet_forward.1} parent=11 // pred_check
          %p728 = pneg %p526
        $region98: #{scorenet_forward.1} parent=11 // pred_check_branch
          %730 = sbr.rel (%p728) target = $region100
        $region99: #{scorenet_forward.1} parent=11 // pred_region
          _
        $region100: #{scorenet_forward.1} parent=11 // pred_fallthru
          _
        // Predicated region
        $region101: #{scorenet_forward.1} parent=11 // pred_check
          %p731 = pneg %p547
        $region102: #{scorenet_forward.1} parent=11 // pred_check_branch
          %733 = sbr.rel (%p731) target = $region104
        $region103: #{scorenet_forward.1} parent=11 // pred_region
          _
        $region104: #{scorenet_forward.1} parent=11 // pred_fallthru
          _
        // Predicated region
        $region105: #{scorenet_forward.1} parent=11 // pred_check
          %p734 = pneg %p568
        $region106: #{scorenet_forward.1} parent=11 // pred_check_branch
          %736 = sbr.rel (%p734) target = $region108
        $region107: #{scorenet_forward.1} parent=11 // pred_region
          _
        $region108: #{scorenet_forward.1} parent=11 // pred_fallthru
          _
        // Predicated region
        $region109: #{scorenet_forward.1} parent=11 // pred_check
          %p737 = pneg %p589
        $region110: #{scorenet_forward.1} parent=11 // pred_check_branch
          %739 = sbr.rel (%p737) target = $region112
        $region111: #{scorenet_forward.1} parent=11 // pred_region
          _
        $region112: #{scorenet_forward.1} parent=11 // pred_fallthru
          _
        // Predicated region
        $region113: #{scorenet_forward.1} parent=11 // pred_check
          %p740 = pneg %p610
        $region114: #{scorenet_forward.1} parent=11 // pred_check_branch
          %742 = sbr.rel (%p740) target = $region116
        $region115: #{scorenet_forward.1} parent=11 // pred_region
          _
        $region116: #{scorenet_forward.1} parent=11 // pred_fallthru
          _
      $region12: #{scorenet_forward.1} parent=5 // pred_fallthru
        _
      %p743 = scmp.lt.s32.totalorder %s38, 2
      // Predicated region
      $region117: #{scorenet_forward.1} parent=5 // pred_check
        %p744 = pneg %p743
      $region118: #{scorenet_forward.1} parent=5 // pred_check_branch
        %746 = sbr.rel (%p744) target = $region120
      $region119: #{scorenet_forward.1} parent=5 // pred_region
        // Predicated region
        $region121: #{scorenet_forward.1} parent=119 // pred_check
          %p747 = pneg %p100
        $region122: #{scorenet_forward.1} parent=119 // pred_check_branch
          %749 = sbr.rel (%p747) target = $region124
        $region123: #{scorenet_forward.1} parent=119 // pred_region
          %s750 = smul.u32 2, %s38
          %p751 = scmp.lt.s32.totalorder %s750, 3
          %s752 = scalar_select %p751, %s750, 3
          %s753 = smul.addr %s752, 8
          %s754 = scalar_lea.vmem %s2, %s753
          %s755 = smul.u32 2, %s38
        $region124: #{scorenet_forward.1} parent=119 // pred_fallthru
          _
      $region120: #{scorenet_forward.1} parent=5 // pred_fallthru
        _
      %p756 = scmp.le.s32.totalorder 1, %s38
      %p757 = scmp.lt.s32.totalorder %s38, 3
      %p758 = pnand %p756, %p757
      %p759 = pneg %p758
      // Predicated region
      $region125: #{scorenet_forward.1} parent=5 // pred_check
        _
      $region126: #{scorenet_forward.1} parent=5 // pred_check_branch
        %761 = sbr.rel (%p758) target = $region128
      $region127: #{scorenet_forward.1} parent=5 // pred_region
        %s762 = ssub.s32 %s38, 1
        // Predicated region
        $region129: #{scorenet_forward.1} parent=127 // pred_check
          %p763 = pneg %p59
        $region130: #{scorenet_forward.1} parent=127 // pred_check_branch
          %765 = sbr.rel (%p763) target = $region132
        $region131: #{scorenet_forward.1} parent=127 // pred_region
          %767 = dma.done [#allocation4], 16
        $region132: #{scorenet_forward.1} parent=127 // pred_fallthru
          _
        // Predicated region
        $region133: #{scorenet_forward.1} parent=127 // pred_check
          %p768 = pneg %p80
        $region134: #{scorenet_forward.1} parent=127 // pred_check_branch
          %770 = sbr.rel (%p768) target = $region136
        $region135: #{scorenet_forward.1} parent=127 // pred_region
          %772 = dma.done [#allocation6], 16
        $region136: #{scorenet_forward.1} parent=127 // pred_fallthru
          _
        %773 = sfence
        %p774 = pneg %p59
        %p775 = pneg %p56
        %p776 = pneg %p80
        %p777 = pneg %p77
        %s778 = smul.u32 2, %s43
        %p779 = scmp.lt.s32.totalorder %s778, 3
        %s780 = scalar_select %p779, %s778, 3
        %s781 = smul.addr %s780, 8
        %s782 = scalar_lea.vmem %s2, %s781
        %p783 = pneg %p106
        %p784 = pneg %p103
        %p785 = pneg %p127
        %p786 = pneg %p124
        %p787 = pneg %p148
        %p788 = pneg %p145
        %p789 = pneg %p169
        %p790 = pneg %p166
        %p791 = pneg %p190
        %p792 = pneg %p187
        %p793 = pneg %p211
        %p794 = pneg %p208
        %p795 = pneg %p232
        %p796 = pneg %p229
        %p797 = pneg %p253
        %p798 = pneg %p250
        %p799 = pneg %p274
        %p800 = pneg %p271
        %p801 = pneg %p295
        %p802 = pneg %p292
        %p803 = pneg %p316
        %p804 = pneg %p313
        %p805 = pneg %p337
        %p806 = pneg %p334
        %p807 = pneg %p358
        %p808 = pneg %p355
        %p809 = pneg %p379
        %p810 = pneg %p376
        %p811 = pneg %p400
        %p812 = pneg %p397
        %p813 = pneg %p421
        %p814 = pneg %p418
        %p815 = pneg %p442
        %p816 = pneg %p439
        %p817 = pneg %p463
        %p818 = pneg %p460
        %p819 = pneg %p484
        %p820 = pneg %p481
        %p821 = pneg %p505
        %p822 = pneg %p502
        %p823 = pneg %p526
        %p824 = pneg %p523
        %p825 = pneg %p547
        %p826 = pneg %p544
        %p827 = pneg %p568
        %p828 = pneg %p565
        %p829 = pneg %p589
        %p830 = pneg %p586
        %p831 = pneg %p610
        %p832 = pneg %p607
        %p833 = pneg %p636
        %p834 = pneg %p633
        %s835 = sand.u32 %s623, 1
        %s836 = scalar_lea.sflag [#allocation3], %s835
        %s837 = sand.u32 %s623, 1
        %s838 = smul.addr %s837, 16
        %s839 = scalar_lea.vmem [#allocation7], %s838
        %s840 = smul.u32 2, %s43
        %p841 = scmp.lt.s32.totalorder %s840, 3
        %s842 = scalar_select %p841, %s840, 3
        %s843 = smul.addr %s842, 8
        %s844 = scalar_lea.vmem %s2, %s843
        %s845 = smul.u32 2, %s43
        %s846 = smul.u32 2, %s43
        %v848 = vlaneseq
        %v849 = vshrl.u32 %v848, 7
        %v850 = vadd.s32 %v849, 8
        %s851 = sld [smem:[#allocation2 + %s43]]
        %v852 = vld [vmem:[%s3] sm:$0x1]
        %v853 = vstv %s851
        %v854 = vmul.f32 %v853, %v852
        %v855 = vand.u32 2147483647, %v854
        %vm856 = vcmp.le.f32.partialorder %v855, 0.7853982
        %vm857 = vcmp.lt.s32.totalorder %v854, 0
        %v858 = vand.u32 %v854, 2139095040
        %v859 = vshrl.u32 %v858, 23
        %v860 = vsub.s32 %v859, 127
        %v861 = vand.u32 2147483647, %v854
        %v862 = vand.u32 %v861, 8388607
        %v863 = vor.u32 %v862, 8388608
        %v864 = vsub.s32 0, %v863
        %v865 = vadd.s32 %v860, 1
        %vm866 = vcmp.gt.s32.totalorder %v865, 0
        %v867 = vsel %vm866, %v865, 0
        %v868 = vshrl.u32 %v867, 5
        %v869 = vand.u32 %v867, 31
        %v870 = vsub.s32 32, %v869
        %v871 = vshrl.u32 683565275, %v870
        %v872 = vshll.u32 683565275, %v869
        %v873 = vshrl.u32 2475754826, %v870
        %v874 = vor.u32 %v872, %v873
        %v875 = vshll.u32 2475754826, %v869
        %v876 = vshrl.u32 2131351028, %v870
        %v877 = vor.u32 %v875, %v876
        %v878 = vshll.u32 2131351028, %v869
        %v879 = vshrl.u32 2102212464, %v870
        %v880 = vor.u32 %v878, %v879
        %v881 = vshll.u32 2102212464, %v869
        %v882 = vshrl.u32 920167782, %v870
        %v883 = vor.u32 %v881, %v882
        %v884 = vshll.u32 920167782, %v869
        %v885 = vshrl.u32 1326507024, %v870
        %v886 = vor.u32 %v884, %v885
        %vm887 = vcmp.lt.s32.totalorder %v868, 1
        %vm888 = vcmp.lt.s32.totalorder %v868, 2
        %vm889 = vcmp.lt.s32.totalorder %v868, 3
        %vm890 = vcmp.lt.s32.totalorder %v868, 4
        %v891 = vsel %vm887, %v871, %v874
        %v892 = vsel %vm890, %v880, 2102212464
        %v893 = vsel %vm889, %v877, %v892
        %v894 = vsel %vm888, %v891, %v893
        %v895 = vsel %vm887, %v874, %v877
        %v896 = vsel %vm890, %v883, 920167782
        %v897 = vsel %vm889, %v880, %v896
        %v898 = vsel %vm888, %v895, %v897
        %v899 = vsel %vm887, %v877, %v880
        %v900 = vsel %vm890, %v886, 1326507024
        %v901 = vsel %vm889, %v883, %v900
        %v902 = vsel %vm888, %v899, %v901
        %v903 = vshll.u32 %v863, 8
        %v904 = vand.u32 %v903, 65535
        %v905 = vshrl.u32 %v903, 16
        %v906 = vand.u32 %v902, 65535
        %v907 = vshrl.u32 %v902, 16
        %v908 = vmul.u32 %v904, %v906
        %v909 = vmul.u32 %v904, %v907
        %v910 = vmul.u32 %v905, %v906
        %v911 = vmul.u32 %v905, %v907
        %v912 = vshll.u32 %v909, 16
        %v913 = vshrl.u32 %v909, 16
        %v914 = vshll.u32 %v910, 16
        %v915 = vshrl.u32 %v910, 16
        %vm916 = vc.u32 %v908, %v912
        %v917 = vsel %vm916, 1, 0
        %v918 = vadd.s32 %v908, %v912
        %v919 = vadd.s32 %v911, %v917
        %vm920 = vc.u32 %v918, %v914
        %v921 = vsel %vm920, 1, 0
        %v922 = vadd.s32 %v918, %v914
        %v923 = vadd.s32 %v919, %v921
        %v924 = vadd.s32 %v923, %v913
        %v925 = vadd.s32 %v924, %v915
        %v926 = vand.u32 %v903, 65535
        %v927 = vshrl.u32 %v903, 16
        %v928 = vand.u32 %v898, 65535
        %v929 = vshrl.u32 %v898, 16
        %v930 = vmul.u32 %v926, %v928
        %v931 = vmul.u32 %v926, %v929
        %v932 = vmul.u32 %v927, %v928
        %v933 = vmul.u32 %v927, %v929
        %v934 = vshll.u32 %v931, 16
        %v935 = vshrl.u32 %v931, 16
        %v936 = vshll.u32 %v932, 16
        %v937 = vshrl.u32 %v932, 16
        %vm938 = vc.u32 %v930, %v934
        %v939 = vsel %vm938, 1, 0
        %v940 = vadd.s32 %v930, %v934
        %v941 = vadd.s32 %v933, %v939
        %vm942 = vc.u32 %v940, %v936
        %v943 = vsel %vm942, 1, 0
        %v944 = vadd.s32 %v940, %v936
        %v945 = vadd.s32 %v941, %v943
        %v946 = vadd.s32 %v945, %v935
        %v947 = vadd.s32 %v946, %v937
        %v948 = vmul.u32 %v903, %v894
        %v949 = vadd.s32 %v925, %v944
        %vm950 = vc.u32 %v925, %v944
        %v951 = vadd.s32 %v947, 1
        %v952 = vsel %vm950, %v951, %v947
        %v953 = vadd.s32 %v948, %v952
        %v954 = vadd.s32 %v953, 536870912
        %v955 = vshrl.u32 %v954, 30
        %v956 = vshll.u32 %v955, 30
        %v957 = vsub.s32 %v953, %v956
        %vm958 = vcmp.lt.s32.totalorder %v957, 0
        %v959 = vsub.s32 0, %v957
        %v960 = vsel %vm958, %v959, %v957
        %v961 = vclz %v960
        %v962 = vsub.s32 %v961, 2
        %vm963 = vcmp.gt.s32.totalorder 0, %v962
        %v964 = vsel %vm963, 0, %v962
        %v965 = vsub.s32 32, %v964
        %v966 = vshll.u32 %v957, %v964
        %v967 = vshrl.u32 %v949, %v965
        %v968 = vor.u32 %v966, %v967
        %v969 = vsub.s32 4294967266, %v964
        %v970 = vadd.s32 %v969, 127
        %v971 = vshll.u32 %v970, 23
        %v972 = vor.u32 4788187, %v971
        %v973 = vand.u32 2147483647, %v972
        %v975 = vcvt.s32.f32 %v968
        %v976 = vmul.f32 %v975, %v973
        %v977 = vxor.u32 %v976, 2147483648
        %v978 = vsel %vm857, %v977, %v976
        %v979 = vsub.s32 4, %v955
        %v980 = vsel %vm857, %v979, %v955
        %v981 = vsel %vm856, %v854, %v978
        %v982 = vsel %vm856, 0, %v980
        %v983 = vmul.f32 %v981, %v981
        %v984 = vmul.f32 %v983, -0.001358992
        %v985 = vadd.f32 %v984, 0.041655596
        %v986 = vmul.f32 %v983, %v985
        %v987 = vadd.f32 %v986, -0.4999988
        %v988 = vmul.f32 %v983, %v987
        %v989 = vadd.f32 1.0, %v988
        %v990 = vmul.f32 %v981, %v981
        %v991 = vmul.f32 %v990, -0.00019511016
        %v992 = vadd.f32 %v991, 0.008332121
        %v993 = vmul.f32 %v990, %v992
        %v994 = vadd.f32 %v993, -0.16666654
        %v995 = vmul.f32 %v990, %v994
        %v996 = vadd.f32 %v995, 1.0
        %v997 = vmul.f32 %v996, %v981
        %vm998 = vweird.f32 %v854
        %v999 = vadd.s32 %v982, 3
        %v1000 = vand.u32 %v999, 3
        %vm1001 = vcmp.lt.s32.totalorder %v1000, 2
        %vm1002 = vcmp.eq.s32.totalorder %v1000, 0
        %v1003 = vxor.u32 %v997, 2147483648
        %v1004 = vsel %vm1002, %v989, %v1003
        %vm1005 = vcmp.eq.s32.totalorder %v1000, 2
        %v1006 = vxor.u32 %v989, 2147483648
        %v1007 = vsel %vm1005, %v1006, %v997
        %v1008 = vsel %vm1001, %v1004, %v1007
        %v1009 = vsel %vm998, nan, %v1008
        %v1010 = vand.u32 2147483647, %v854
        %vm1011 = vcmp.le.f32.partialorder %v1010, 0.7853982
        %vm1012 = vcmp.lt.s32.totalorder %v854, 0
        %v1013 = vand.u32 %v854, 2139095040
        %v1014 = vshrl.u32 %v1013, 23
        %v1015 = vsub.s32 %v1014, 127
        %v1016 = vand.u32 2147483647, %v854
        %v1017 = vand.u32 %v1016, 8388607
        %v1018 = vor.u32 %v1017, 8388608
        %v1019 = vsub.s32 0, %v1018
        %v1020 = vadd.s32 %v1015, 1
        %vm1021 = vcmp.gt.s32.totalorder %v1020, 0
        %v1022 = vsel %vm1021, %v1020, 0
        %v1023 = vshrl.u32 %v1022, 5
        %v1024 = vand.u32 %v1022, 31
        %v1025 = vsub.s32 32, %v1024
        %v1026 = vshrl.u32 683565275, %v1025
        %v1027 = vshll.u32 683565275, %v1024
        %v1028 = vshrl.u32 2475754826, %v1025
        %v1029 = vor.u32 %v1027, %v1028
        %v1030 = vshll.u32 2475754826, %v1024
        %v1031 = vshrl.u32 2131351028, %v1025
        %v1032 = vor.u32 %v1030, %v1031
        %v1033 = vshll.u32 2131351028, %v1024
        %v1034 = vshrl.u32 2102212464, %v1025
        %v1035 = vor.u32 %v1033, %v1034
        %v1036 = vshll.u32 2102212464, %v1024
        %v1037 = vshrl.u32 920167782, %v1025
        %v1038 = vor.u32 %v1036, %v1037
        %v1039 = vshll.u32 920167782, %v1024
        %v1040 = vshrl.u32 1326507024, %v1025
        %v1041 = vor.u32 %v1039, %v1040
        %vm1042 = vcmp.lt.s32.totalorder %v1023, 1
        %vm1043 = vcmp.lt.s32.totalorder %v1023, 2
        %vm1044 = vcmp.lt.s32.totalorder %v1023, 3
        %vm1045 = vcmp.lt.s32.totalorder %v1023, 4
        %v1046 = vsel %vm1042, %v1026, %v1029
        %v1047 = vsel %vm1045, %v1035, 2102212464
        %v1048 = vsel %vm1044, %v1032, %v1047
        %v1049 = vsel %vm1043, %v1046, %v1048
        %v1050 = vsel %vm1042, %v1029, %v1032
        %v1051 = vsel %vm1045, %v1038, 920167782
        %v1052 = vsel %vm1044, %v1035, %v1051
        %v1053 = vsel %vm1043, %v1050, %v1052
        %v1054 = vsel %vm1042, %v1032, %v1035
        %v1055 = vsel %vm1045, %v1041, 1326507024
        %v1056 = vsel %vm1044, %v1038, %v1055
        %v1057 = vsel %vm1043, %v1054, %v1056
        %v1058 = vshll.u32 %v1018, 8
        %v1059 = vand.u32 %v1058, 65535
        %v1060 = vshrl.u32 %v1058, 16
        %v1061 = vand.u32 %v1057, 65535
        %v1062 = vshrl.u32 %v1057, 16
        %v1063 = vmul.u32 %v1059, %v1061
        %v1064 = vmul.u32 %v1059, %v1062
        %v1065 = vmul.u32 %v1060, %v1061
        %v1066 = vmul.u32 %v1060, %v1062
        %v1067 = vshll.u32 %v1064, 16
        %v1068 = vshrl.u32 %v1064, 16
        %v1069 = vshll.u32 %v1065, 16
        %v1070 = vshrl.u32 %v1065, 16
        %vm1071 = vc.u32 %v1063, %v1067
        %v1072 = vsel %vm1071, 1, 0
        %v1073 = vadd.s32 %v1063, %v1067
        %v1074 = vadd.s32 %v1066, %v1072
        %vm1075 = vc.u32 %v1073, %v1069
        %v1076 = vsel %vm1075, 1, 0
        %v1077 = vadd.s32 %v1073, %v1069
        %v1078 = vadd.s32 %v1074, %v1076
        %v1079 = vadd.s32 %v1078, %v1068
        %v1080 = vadd.s32 %v1079, %v1070
        %v1081 = vand.u32 %v1058, 65535
        %v1082 = vshrl.u32 %v1058, 16
        %v1083 = vand.u32 %v1053, 65535
        %v1084 = vshrl.u32 %v1053, 16
        %v1085 = vmul.u32 %v1081, %v1083
        %v1086 = vmul.u32 %v1081, %v1084
        %v1087 = vmul.u32 %v1082, %v1083
        %v1088 = vmul.u32 %v1082, %v1084
        %v1089 = vshll.u32 %v1086, 16
        %v1090 = vshrl.u32 %v1086, 16
        %v1091 = vshll.u32 %v1087, 16
        %v1092 = vshrl.u32 %v1087, 16
        %vm1093 = vc.u32 %v1085, %v1089
        %v1094 = vsel %vm1093, 1, 0
        %v1095 = vadd.s32 %v1085, %v1089
        %v1096 = vadd.s32 %v1088, %v1094
        %vm1097 = vc.u32 %v1095, %v1091
        %v1098 = vsel %vm1097, 1, 0
        %v1099 = vadd.s32 %v1095, %v1091
        %v1100 = vadd.s32 %v1096, %v1098
        %v1101 = vadd.s32 %v1100, %v1090
        %v1102 = vadd.s32 %v1101, %v1092
        %v1103 = vmul.u32 %v1058, %v1049
        %v1104 = vadd.s32 %v1080, %v1099
        %vm1105 = vc.u32 %v1080, %v1099
        %v1106 = vadd.s32 %v1102, 1
        %v1107 = vsel %vm1105, %v1106, %v1102
        %v1108 = vadd.s32 %v1103, %v1107
        %v1109 = vadd.s32 %v1108, 536870912
        %v1110 = vshrl.u32 %v1109, 30
        %v1111 = vshll.u32 %v1110, 30
        %v1112 = vsub.s32 %v1108, %v1111
        %vm1113 = vcmp.lt.s32.totalorder %v1112, 0
        %v1114 = vsub.s32 0, %v1112
        %v1115 = vsel %vm1113, %v1114, %v1112
        %v1116 = vclz %v1115
        %v1117 = vsub.s32 %v1116, 2
        %vm1118 = vcmp.gt.s32.totalorder 0, %v1117
        %v1119 = vsel %vm1118, 0, %v1117
        %v1120 = vsub.s32 32, %v1119
        %v1121 = vshll.u32 %v1112, %v1119
        %v1122 = vshrl.u32 %v1104, %v1120
        %v1123 = vor.u32 %v1121, %v1122
        %v1124 = vsub.s32 4294967266, %v1119
        %v1125 = vadd.s32 %v1124, 127
        %v1126 = vshll.u32 %v1125, 23
        %v1127 = vor.u32 4788187, %v1126
        %v1128 = vand.u32 2147483647, %v1127
        %v1130 = vcvt.s32.f32 %v1123
        %v1131 = vmul.f32 %v1130, %v1128
        %v1132 = vxor.u32 %v1131, 2147483648
        %v1133 = vsel %vm1012, %v1132, %v1131
        %v1134 = vsub.s32 4, %v1110
        %v1135 = vsel %vm1012, %v1134, %v1110
        %v1136 = vsel %vm1011, %v854, %v1133
        %v1137 = vsel %vm1011, 0, %v1135
        %v1138 = vmul.f32 %v1136, %v1136
        %v1139 = vmul.f32 %v1138, -0.001358992
        %v1140 = vadd.f32 %v1139, 0.041655596
        %v1141 = vmul.f32 %v1138, %v1140
        %v1142 = vadd.f32 %v1141, -0.4999988
        %v1143 = vmul.f32 %v1138, %v1142
        %v1144 = vadd.f32 1.0, %v1143
        %v1145 = vmul.f32 %v1136, %v1136
        %v1146 = vmul.f32 %v1145, -0.00019511016
        %v1147 = vadd.f32 %v1146, 0.008332121
        %v1148 = vmul.f32 %v1145, %v1147
        %v1149 = vadd.f32 %v1148, -0.16666654
        %v1150 = vmul.f32 %v1145, %v1149
        %v1151 = vadd.f32 %v1150, 1.0
        %v1152 = vmul.f32 %v1151, %v1136
        %vm1153 = vweird.f32 %v854
        %v1154 = vand.u32 %v1137, 3
        %vm1155 = vcmp.lt.s32.totalorder %v1154, 2
        %vm1156 = vcmp.eq.s32.totalorder %v1154, 0
        %v1157 = vxor.u32 %v1152, 2147483648
        %v1158 = vsel %vm1156, %v1144, %v1157
        %vm1159 = vcmp.eq.s32.totalorder %v1154, 2
        %v1160 = vxor.u32 %v1144, 2147483648
        %v1161 = vsel %vm1159, %v1160, %v1152
        %v1162 = vsel %vm1155, %v1158, %v1161
        %v1163 = vsel %vm1153, nan, %v1162
        %v1164 = vld [vmem:[%s4] sm:$0xff]
        %v1165 = vld [vmem:[%s4 + $0x8] sm:$0xff]
        %v1166 = vld [vmem:[%s4 + $0x10] sm:$0xff]
        %v1167 = vld [vmem:[%s4 + $0x18] sm:$0xff]
        %v1168 = vld [vmem:[%s4 + $0x20] sm:$0xff]
        %v1169 = vld [vmem:[%s4 + $0x28] sm:$0xff]
        %v1170 = vld [vmem:[%s4 + $0x30] sm:$0xff]
        %v1171 = vld [vmem:[%s4 + $0x38] sm:$0xff]
        %v1172 = vld [vmem:[%s4 + $0x40] sm:$0xff]
        %v1173 = vld [vmem:[%s4 + $0x48] sm:$0xff]
        %v1174 = vld [vmem:[%s4 + $0x50] sm:$0xff]
        %v1175 = vld [vmem:[%s4 + $0x58] sm:$0xff]
        %v1176 = vld [vmem:[%s4 + $0x60] sm:$0xff]
        %v1177 = vld [vmem:[%s4 + $0x68] sm:$0xff]
        %v1178 = vld [vmem:[%s4 + $0x70] sm:$0xff]
        %v1179 = vld [vmem:[%s4 + $0x78] sm:$0xff]
        %v1180 = vld [vmem:[%s4 + $0x80] sm:$0xff]
        %v1181 = vld [vmem:[%s4 + $0x88] sm:$0xff]
        %v1182 = vld [vmem:[%s4 + $0x90] sm:$0xff]
        %v1183 = vld [vmem:[%s4 + $0x98] sm:$0xff]
        %v1184 = vld [vmem:[%s4 + $0xa0] sm:$0xff]
        %v1185 = vld [vmem:[%s4 + $0xa8] sm:$0xff]
        %v1186 = vld [vmem:[%s4 + $0xb0] sm:$0xff]
        %v1187 = vld [vmem:[%s4 + $0xb8] sm:$0xff]
        %v1188 = vld [vmem:[%s4 + $0xc0] sm:$0xff]
        %v1189 = vld [vmem:[%s4 + $0xc8] sm:$0xff]
        %v1190 = vld [vmem:[%s4 + $0xd0] sm:$0xff]
        %v1191 = vld [vmem:[%s4 + $0xd8] sm:$0xff]
        %v1192 = vld [vmem:[%s4 + $0xe0] sm:$0xff]
        %v1193 = vld [vmem:[%s4 + $0xe8] sm:$0xff]
        %v1194 = vld [vmem:[%s4 + $0xf0] sm:$0xff]
        %v1195 = vld [vmem:[%s4 + $0xf8] sm:$0xff]
        %v1196 = vld [vmem:[%s4 + $0x100] sm:$0xff]
        %v1197 = vld [vmem:[%s4 + $0x108] sm:$0xff]
        %v1198 = vld [vmem:[%s4 + $0x110] sm:$0xff]
        %v1199 = vld [vmem:[%s4 + $0x118] sm:$0xff]
        %v1200 = vld [vmem:[%s4 + $0x120] sm:$0xff]
        %v1201 = vld [vmem:[%s4 + $0x128] sm:$0xff]
        %v1202 = vld [vmem:[%s4 + $0x130] sm:$0xff]
        %v1203 = vld [vmem:[%s4 + $0x138] sm:$0xff]
        %v1204 = vld [vmem:[%s4 + $0x140] sm:$0xff]
        %v1205 = vld [vmem:[%s4 + $0x148] sm:$0xff]
        %v1206 = vld [vmem:[%s4 + $0x150] sm:$0xff]
        %v1207 = vld [vmem:[%s4 + $0x158] sm:$0xff]
        %v1208 = vld [vmem:[%s4 + $0x160] sm:$0xff]
        %v1209 = vld [vmem:[%s4 + $0x168] sm:$0xff]
        %v1210 = vld [vmem:[%s4 + $0x170] sm:$0xff]
        %v1211 = vld [vmem:[%s4 + $0x178] sm:$0xff]
        %v1212 = vld [vmem:[%s4 + $0x180] sm:$0xff]
        %v1213 = vld [vmem:[%s4 + $0x188] sm:$0xff]
        %v1214 = vld [vmem:[%s4 + $0x190] sm:$0xff]
        %v1215 = vld [vmem:[%s4 + $0x198] sm:$0xff]
        %v1216 = vld [vmem:[%s4 + $0x1a0] sm:$0xff]
        %v1217 = vld [vmem:[%s4 + $0x1a8] sm:$0xff]
        %v1218 = vld [vmem:[%s4 + $0x1b0] sm:$0xff]
        %v1219 = vld [vmem:[%s4 + $0x1b8] sm:$0xff]
        %v1220 = vld [vmem:[%s4 + $0x1c0] sm:$0xff]
        %v1221 = vld [vmem:[%s4 + $0x1c8] sm:$0xff]
        %v1222 = vld [vmem:[%s4 + $0x1d0] sm:$0xff]
        %v1223 = vld [vmem:[%s4 + $0x1d8] sm:$0xff]
        %v1224 = vld [vmem:[%s4 + $0x1e0] sm:$0xff]
        %v1225 = vld [vmem:[%s4 + $0x1e8] sm:$0xff]
        %v1226 = vld [vmem:[%s4 + $0x1f0] sm:$0xff]
        %v1227 = vld [vmem:[%s4 + $0x1f8] sm:$0xff]
        %v1228 = vld [vmem:[%s5] sm:$0x3]
        %v1230 = vperm.slane %v1228, 0
        %v1231 = vperm.slane %v1228, 1
        %1234 = vmatpush.msra.mxu0 %v1194
        %1235 = vmatpush.msra.mxu0 %v1192
        %1236 = vmatpush.msra.mxu0 %v1190
        %1237 = vmatpush.msra.mxu0 %v1188
        %1238 = vmatpush.msra.mxu0 %v1186
        %1239 = vmatpush.msra.mxu0 %v1184
        %1240 = vmatpush.msra.mxu0 %v1182
        %1241 = vmatpush.msra.mxu0 %v1180
        %1242 = vmatpush.msra.mxu0 %v1178
        %1243 = vmatpush.msra.mxu0 %v1176
        %1244 = vmatpush.msra.mxu0 %v1174
        %1245 = vmatpush.msra.mxu0 %v1172
        %1246 = vmatpush.msra.mxu0 %v1170
        %1247 = vmatpush.msra.mxu0 %v1168
        %1248 = vmatpush.msra.mxu0 %v1166
        %1249 = vmatpush.msra.mxu0 %v1164
        %1250 = vmatmul.f32.gmra.mxu0 %v1009
        %v1251 = vpop.f32.mrf.mxu0
        %v1252 = vadd.f32 %v1230, %v1251
        %1253 = vdwg.mxu0
        %1254 = vmatpush.msra.mxu0 %v1226
        %1255 = vmatpush.msra.mxu0 %v1224
        %1256 = vmatpush.msra.mxu0 %v1222
        %1257 = vmatpush.msra.mxu0 %v1220
        %1258 = vmatpush.msra.mxu0 %v1218
        %1259 = vmatpush.msra.mxu0 %v1216
        %1260 = vmatpush.msra.mxu0 %v1214
        %1261 = vmatpush.msra.mxu0 %v1212
        %1262 = vmatpush.msra.mxu0 %v1210
        %1263 = vmatpush.msra.mxu0 %v1208
        %1264 = vmatpush.msra.mxu0 %v1206
        %1265 = vmatpush.msra.mxu0 %v1204
        %1266 = vmatpush.msra.mxu0 %v1202
        %1267 = vmatpush.msra.mxu0 %v1200
        %1268 = vmatpush.msra.mxu0 %v1198
        %1269 = vmatpush.msra.mxu0 %v1196
        %1270 = vmatmul.f32.gmra.mxu0 %v1163
        %v1271 = vpop.f32.mrf.mxu0
        %v1272 = vadd.f32 %v1252, %v1271
        %1273 = vdwg.mxu0
        %1274 = vmatpush.msra.mxu0 %v1195
        %1275 = vmatpush.msra.mxu0 %v1193
        %1276 = vmatpush.msra.mxu0 %v1191
        %1277 = vmatpush.msra.mxu0 %v1189
        %1278 = vmatpush.msra.mxu0 %v1187
        %1279 = vmatpush.msra.mxu0 %v1185
        %1280 = vmatpush.msra.mxu0 %v1183
        %1281 = vmatpush.msra.mxu0 %v1181
        %1282 = vmatpush.msra.mxu0 %v1179
        %1283 = vmatpush.msra.mxu0 %v1177
        %1284 = vmatpush.msra.mxu0 %v1175
        %1285 = vmatpush.msra.mxu0 %v1173
        %1286 = vmatpush.msra.mxu0 %v1171
        %1287 = vmatpush.msra.mxu0 %v1169
        %1288 = vmatpush.msra.mxu0 %v1167
        %1289 = vmatpush.msra.mxu0 %v1165
        %1290 = vmatmul.f32.gmra.mxu0 %v1009
        %v1291 = vpop.f32.mrf.mxu0
        %v1292 = vadd.f32 %v1231, %v1291
        %1293 = vdwg.mxu0
        %1294 = vmatpush.msra.mxu0 %v1227
        %1295 = vmatpush.msra.mxu0 %v1225
        %1296 = vmatpush.msra.mxu0 %v1223
        %1297 = vmatpush.msra.mxu0 %v1221
        %1298 = vmatpush.msra.mxu0 %v1219
        %1299 = vmatpush.msra.mxu0 %v1217
        %1300 = vmatpush.msra.mxu0 %v1215
        %1301 = vmatpush.msra.mxu0 %v1213
        %1302 = vmatpush.msra.mxu0 %v1211
        %1303 = vmatpush.msra.mxu0 %v1209
        %1304 = vmatpush.msra.mxu0 %v1207
        %1305 = vmatpush.msra.mxu0 %v1205
        %1306 = vmatpush.msra.mxu0 %v1203
        %1307 = vmatpush.msra.mxu0 %v1201
        %1308 = vmatpush.msra.mxu0 %v1199
        %1309 = vmatpush.msra.mxu0 %v1197
        %1310 = vmatmul.f32.gmra.mxu0 %v1163
        %v1311 = vpop.f32.mrf.mxu0
        %v1312 = vadd.f32 %v1292, %v1311
        %1313 = vdwg.mxu0
        %v1314 = vxor.u32 %v1272, 2147483648
        %v1315 = vxor.u32 %v1312, 2147483648
        %v1316 = vmul.f32 %v1314, 1.442695
        %v1317 = vpow.pop %v1316
        %v1318 = vmul.f32 %v1315, 1.442695
        %v1319 = vpow.pop %v1318
        %v1320 = vadd.f32 %v1317, 1.0
        %v1321 = vadd.f32 %v1319, 1.0
        %v1322 = vrcp.pop %v1320
        %v1323 = vmul.f32 %v1320, %v1322
        %v1324 = vsub.f32 1.0, %v1323
        %v1325 = vmul.f32 %v1322, %v1324
        %v1326 = vadd.f32 %v1322, %v1325
        %vm1327 = vweird.f32 %v1320
        %vm1328 = vweird.f32 %v1322
        %vm1329 = vmor %vm1327, %vm1328
        %v1330 = vsel %vm1329, %v1322, %v1326
        %v1331 = vand.u32 2147483647, %v1320
        %vm1332 = vcmp.eq.f32.partialorder %v1331, 8.507059e+37
        %v1333 = vand.u32 %v1320, 2147483648
        %v1334 = vor.u32 1.1754944e-38, %v1333
        %v1335 = vsel %vm1332, %v1334, %v1330
        %v1336 = vmul.f32 1.0, %v1335
        %v1337 = vrcp.pop %v1321
        %v1338 = vmul.f32 %v1321, %v1337
        %v1339 = vsub.f32 1.0, %v1338
        %v1340 = vmul.f32 %v1337, %v1339
        %v1341 = vadd.f32 %v1337, %v1340
        %vm1342 = vweird.f32 %v1321
        %vm1343 = vweird.f32 %v1337
        %vm1344 = vmor %vm1342, %vm1343
        %v1345 = vsel %vm1344, %v1337, %v1341
        %v1346 = vand.u32 2147483647, %v1321
        %vm1347 = vcmp.eq.f32.partialorder %v1346, 8.507059e+37
        %v1348 = vand.u32 %v1321, 2147483648
        %v1349 = vor.u32 1.1754944e-38, %v1348
        %v1350 = vsel %vm1347, %v1349, %v1345
        %v1351 = vmul.f32 1.0, %v1350
        %v1352 = vmul.f32 %v1272, %v1336
        %v1353 = vmul.f32 %v1312, %v1351
        %v1354 = vld [vmem:[%s6] sm:$0xff]
        %v1355 = vld [vmem:[%s6 + $0x8] sm:$0xff]
        %v1356 = vld [vmem:[%s6 + $0x10] sm:$0xff]
        %v1357 = vld [vmem:[%s6 + $0x18] sm:$0xff]
        %v1358 = vld [vmem:[%s6 + $0x20] sm:$0xff]
        %v1359 = vld [vmem:[%s6 + $0x28] sm:$0xff]
        %v1360 = vld [vmem:[%s6 + $0x30] sm:$0xff]
        %v1361 = vld [vmem:[%s6 + $0x38] sm:$0xff]
        %v1362 = vld [vmem:[%s6 + $0x40] sm:$0xff]
        %v1363 = vld [vmem:[%s6 + $0x48] sm:$0xff]
        %v1364 = vld [vmem:[%s6 + $0x50] sm:$0xff]
        %v1365 = vld [vmem:[%s6 + $0x58] sm:$0xff]
        %v1366 = vld [vmem:[%s6 + $0x60] sm:$0xff]
        %v1367 = vld [vmem:[%s6 + $0x68] sm:$0xff]
        %v1368 = vld [vmem:[%s6 + $0x70] sm:$0xff]
        %v1369 = vld [vmem:[%s6 + $0x78] sm:$0xff]
        %v1370 = vld [vmem:[%s6 + $0x80] sm:$0xff]
        %v1371 = vld [vmem:[%s6 + $0x88] sm:$0xff]
        %v1372 = vld [vmem:[%s6 + $0x90] sm:$0xff]
        %v1373 = vld [vmem:[%s6 + $0x98] sm:$0xff]
        %v1374 = vld [vmem:[%s6 + $0xa0] sm:$0xff]
        %v1375 = vld [vmem:[%s6 + $0xa8] sm:$0xff]
        %v1376 = vld [vmem:[%s6 + $0xb0] sm:$0xff]
        %v1377 = vld [vmem:[%s6 + $0xb8] sm:$0xff]
        %v1378 = vld [vmem:[%s6 + $0xc0] sm:$0xff]
        %v1379 = vld [vmem:[%s6 + $0xc8] sm:$0xff]
        %v1380 = vld [vmem:[%s6 + $0xd0] sm:$0xff]
        %v1381 = vld [vmem:[%s6 + $0xd8] sm:$0xff]
        %v1382 = vld [vmem:[%s6 + $0xe0] sm:$0xff]
        %v1383 = vld [vmem:[%s6 + $0xe8] sm:$0xff]
        %v1384 = vld [vmem:[%s6 + $0xf0] sm:$0xff]
        %v1385 = vld [vmem:[%s6 + $0xf8] sm:$0xff]
        %v1386 = vld [vmem:[%s6 + $0x100] sm:$0xff]
        %v1387 = vld [vmem:[%s6 + $0x108] sm:$0xff]
        %v1388 = vld [vmem:[%s6 + $0x110] sm:$0xff]
        %v1389 = vld [vmem:[%s6 + $0x118] sm:$0xff]
        %v1390 = vld [vmem:[%s6 + $0x120] sm:$0xff]
        %v1391 = vld [vmem:[%s6 + $0x128] sm:$0xff]
        %v1392 = vld [vmem:[%s6 + $0x130] sm:$0xff]
        %v1393 = vld [vmem:[%s6 + $0x138] sm:$0xff]
        %v1394 = vld [vmem:[%s6 + $0x140] sm:$0xff]
        %v1395 = vld [vmem:[%s6 + $0x148] sm:$0xff]
        %v1396 = vld [vmem:[%s6 + $0x150] sm:$0xff]
        %v1397 = vld [vmem:[%s6 + $0x158] sm:$0xff]
        %v1398 = vld [vmem:[%s6 + $0x160] sm:$0xff]
        %v1399 = vld [vmem:[%s6 + $0x168] sm:$0xff]
        %v1400 = vld [vmem:[%s6 + $0x170] sm:$0xff]
        %v1401 = vld [vmem:[%s6 + $0x178] sm:$0xff]
        %v1402 = vld [vmem:[%s6 + $0x180] sm:$0xff]
        %v1403 = vld [vmem:[%s6 + $0x188] sm:$0xff]
        %v1404 = vld [vmem:[%s6 + $0x190] sm:$0xff]
        %v1405 = vld [vmem:[%s6 + $0x198] sm:$0xff]
        %v1406 = vld [vmem:[%s6 + $0x1a0] sm:$0xff]
        %v1407 = vld [vmem:[%s6 + $0x1a8] sm:$0xff]
        %v1408 = vld [vmem:[%s6 + $0x1b0] sm:$0xff]
        %v1409 = vld [vmem:[%s6 + $0x1b8] sm:$0xff]
        %v1410 = vld [vmem:[%s6 + $0x1c0] sm:$0xff]
        %v1411 = vld [vmem:[%s6 + $0x1c8] sm:$0xff]
        %v1412 = vld [vmem:[%s6 + $0x1d0] sm:$0xff]
        %v1413 = vld [vmem:[%s6 + $0x1d8] sm:$0xff]
        %v1414 = vld [vmem:[%s6 + $0x1e0] sm:$0xff]
        %v1415 = vld [vmem:[%s6 + $0x1e8] sm:$0xff]
        %v1416 = vld [vmem:[%s6 + $0x1f0] sm:$0xff]
        %v1417 = vld [vmem:[%s6 + $0x1f8] sm:$0xff]
        %v1418 = vld [vmem:[%s6 + $0x200] sm:$0xff]
        %v1419 = vld [vmem:[%s6 + $0x208] sm:$0xff]
        %v1420 = vld [vmem:[%s6 + $0x210] sm:$0xff]
        %v1421 = vld [vmem:[%s6 + $0x218] sm:$0xff]
        %v1422 = vld [vmem:[%s6 + $0x220] sm:$0xff]
        %v1423 = vld [vmem:[%s6 + $0x228] sm:$0xff]
        %v1424 = vld [vmem:[%s6 + $0x230] sm:$0xff]
        %v1425 = vld [vmem:[%s6 + $0x238] sm:$0xff]
        %v1426 = vld [vmem:[%s6 + $0x240] sm:$0xff]
        %v1427 = vld [vmem:[%s6 + $0x248] sm:$0xff]
        %v1428 = vld [vmem:[%s6 + $0x250] sm:$0xff]
        %v1429 = vld [vmem:[%s6 + $0x258] sm:$0xff]
        %v1430 = vld [vmem:[%s6 + $0x260] sm:$0xff]
        %v1431 = vld [vmem:[%s6 + $0x268] sm:$0xff]
        %v1432 = vld [vmem:[%s6 + $0x270] sm:$0xff]
        %v1433 = vld [vmem:[%s6 + $0x278] sm:$0xff]
        %v1434 = vld [vmem:[%s6 + $0x280] sm:$0xff]
        %v1435 = vld [vmem:[%s6 + $0x288] sm:$0xff]
        %v1436 = vld [vmem:[%s6 + $0x290] sm:$0xff]
        %v1437 = vld [vmem:[%s6 + $0x298] sm:$0xff]
        %v1438 = vld [vmem:[%s6 + $0x2a0] sm:$0xff]
        %v1439 = vld [vmem:[%s6 + $0x2a8] sm:$0xff]
        %v1440 = vld [vmem:[%s6 + $0x2b0] sm:$0xff]
        %v1441 = vld [vmem:[%s6 + $0x2b8] sm:$0xff]
        %v1442 = vld [vmem:[%s6 + $0x2c0] sm:$0xff]
        %v1443 = vld [vmem:[%s6 + $0x2c8] sm:$0xff]
        %v1444 = vld [vmem:[%s6 + $0x2d0] sm:$0xff]
        %v1445 = vld [vmem:[%s6 + $0x2d8] sm:$0xff]
        %v1446 = vld [vmem:[%s6 + $0x2e0] sm:$0xff]
        %v1447 = vld [vmem:[%s6 + $0x2e8] sm:$0xff]
        %v1448 = vld [vmem:[%s6 + $0x2f0] sm:$0xff]
        %v1449 = vld [vmem:[%s6 + $0x2f8] sm:$0xff]
        %v1450 = vld [vmem:[%s6 + $0x300] sm:$0xff]
        %v1451 = vld [vmem:[%s6 + $0x308] sm:$0xff]
        %v1452 = vld [vmem:[%s6 + $0x310] sm:$0xff]
        %v1453 = vld [vmem:[%s6 + $0x318] sm:$0xff]
        %v1454 = vld [vmem:[%s6 + $0x320] sm:$0xff]
        %v1455 = vld [vmem:[%s6 + $0x328] sm:$0xff]
        %v1456 = vld [vmem:[%s6 + $0x330] sm:$0xff]
        %v1457 = vld [vmem:[%s6 + $0x338] sm:$0xff]
        %v1458 = vld [vmem:[%s6 + $0x340] sm:$0xff]
        %v1459 = vld [vmem:[%s6 + $0x348] sm:$0xff]
        %v1460 = vld [vmem:[%s6 + $0x350] sm:$0xff]
        %v1461 = vld [vmem:[%s6 + $0x358] sm:$0xff]
        %v1462 = vld [vmem:[%s6 + $0x360] sm:$0xff]
        %v1463 = vld [vmem:[%s6 + $0x368] sm:$0xff]
        %v1464 = vld [vmem:[%s6 + $0x370] sm:$0xff]
        %v1465 = vld [vmem:[%s6 + $0x378] sm:$0xff]
        %v1466 = vld [vmem:[%s6 + $0x380] sm:$0xff]
        %v1467 = vld [vmem:[%s6 + $0x388] sm:$0xff]
        %v1468 = vld [vmem:[%s6 + $0x390] sm:$0xff]
        %v1469 = vld [vmem:[%s6 + $0x398] sm:$0xff]
        %v1470 = vld [vmem:[%s6 + $0x3a0] sm:$0xff]
        %v1471 = vld [vmem:[%s6 + $0x3a8] sm:$0xff]
        %v1472 = vld [vmem:[%s6 + $0x3b0] sm:$0xff]
        %v1473 = vld [vmem:[%s6 + $0x3b8] sm:$0xff]
        %v1474 = vld [vmem:[%s6 + $0x3c0] sm:$0xff]
        %v1475 = vld [vmem:[%s6 + $0x3c8] sm:$0xff]
        %v1476 = vld [vmem:[%s6 + $0x3d0] sm:$0xff]
        %v1477 = vld [vmem:[%s6 + $0x3d8] sm:$0xff]
        %v1478 = vld [vmem:[%s6 + $0x3e0] sm:$0xff]
        %v1479 = vld [vmem:[%s6 + $0x3e8] sm:$0xff]
        %v1480 = vld [vmem:[%s6 + $0x3f0] sm:$0xff]
        %v1481 = vld [vmem:[%s6 + $0x3f8] sm:$0xff]
        %v1482 = vld [vmem:[%s6 + $0x400] sm:$0xff]
        %v1483 = vld [vmem:[%s6 + $0x408] sm:$0xff]
        %v1484 = vld [vmem:[%s6 + $0x410] sm:$0xff]
        %v1485 = vld [vmem:[%s6 + $0x418] sm:$0xff]
        %v1486 = vld [vmem:[%s6 + $0x420] sm:$0xff]
        %v1487 = vld [vmem:[%s6 + $0x428] sm:$0xff]
        %v1488 = vld [vmem:[%s6 + $0x430] sm:$0xff]
        %v1489 = vld [vmem:[%s6 + $0x438] sm:$0xff]
        %v1490 = vld [vmem:[%s6 + $0x440] sm:$0xff]
        %v1491 = vld [vmem:[%s6 + $0x448] sm:$0xff]
        %v1492 = vld [vmem:[%s6 + $0x450] sm:$0xff]
        %v1493 = vld [vmem:[%s6 + $0x458] sm:$0xff]
        %v1494 = vld [vmem:[%s6 + $0x460] sm:$0xff]
        %v1495 = vld [vmem:[%s6 + $0x468] sm:$0xff]
        %v1496 = vld [vmem:[%s6 + $0x470] sm:$0xff]
        %v1497 = vld [vmem:[%s6 + $0x478] sm:$0xff]
        %v1498 = vld [vmem:[%s6 + $0x480] sm:$0xff]
        %v1499 = vld [vmem:[%s6 + $0x488] sm:$0xff]
        %v1500 = vld [vmem:[%s6 + $0x490] sm:$0xff]
        %v1501 = vld [vmem:[%s6 + $0x498] sm:$0xff]
        %v1502 = vld [vmem:[%s6 + $0x4a0] sm:$0xff]
        %v1503 = vld [vmem:[%s6 + $0x4a8] sm:$0xff]
        %v1504 = vld [vmem:[%s6 + $0x4b0] sm:$0xff]
        %v1505 = vld [vmem:[%s6 + $0x4b8] sm:$0xff]
        %v1506 = vld [vmem:[%s6 + $0x4c0] sm:$0xff]
        %v1507 = vld [vmem:[%s6 + $0x4c8] sm:$0xff]
        %v1508 = vld [vmem:[%s6 + $0x4d0] sm:$0xff]
        %v1509 = vld [vmem:[%s6 + $0x4d8] sm:$0xff]
        %v1510 = vld [vmem:[%s6 + $0x4e0] sm:$0xff]
        %v1511 = vld [vmem:[%s6 + $0x4e8] sm:$0xff]
        %v1512 = vld [vmem:[%s6 + $0x4f0] sm:$0xff]
        %v1513 = vld [vmem:[%s6 + $0x4f8] sm:$0xff]
        %v1514 = vld [vmem:[%s6 + $0x500] sm:$0xff]
        %v1515 = vld [vmem:[%s6 + $0x508] sm:$0xff]
        %v1516 = vld [vmem:[%s6 + $0x510] sm:$0xff]
        %v1517 = vld [vmem:[%s6 + $0x518] sm:$0xff]
        %v1518 = vld [vmem:[%s6 + $0x520] sm:$0xff]
        %v1519 = vld [vmem:[%s6 + $0x528] sm:$0xff]
        %v1520 = vld [vmem:[%s6 + $0x530] sm:$0xff]
        %v1521 = vld [vmem:[%s6 + $0x538] sm:$0xff]
        %v1522 = vld [vmem:[%s6 + $0x540] sm:$0xff]
        %v1523 = vld [vmem:[%s6 + $0x548] sm:$0xff]
        %v1524 = vld [vmem:[%s6 + $0x550] sm:$0xff]
        %v1525 = vld [vmem:[%s6 + $0x558] sm:$0xff]
        %v1526 = vld [vmem:[%s6 + $0x560] sm:$0xff]
        %v1527 = vld [vmem:[%s6 + $0x568] sm:$0xff]
        %v1528 = vld [vmem:[%s6 + $0x570] sm:$0xff]
        %v1529 = vld [vmem:[%s6 + $0x578] sm:$0xff]
        %v1530 = vld [vmem:[%s6 + $0x580] sm:$0xff]
        %v1531 = vld [vmem:[%s6 + $0x588] sm:$0xff]
        %v1532 = vld [vmem:[%s6 + $0x590] sm:$0xff]
        %v1533 = vld [vmem:[%s6 + $0x598] sm:$0xff]
        %v1534 = vld [vmem:[%s6 + $0x5a0] sm:$0xff]
        %v1535 = vld [vmem:[%s6 + $0x5a8] sm:$0xff]
        %v1536 = vld [vmem:[%s6 + $0x5b0] sm:$0xff]
        %v1537 = vld [vmem:[%s6 + $0x5b8] sm:$0xff]
        %v1538 = vld [vmem:[%s6 + $0x5c0] sm:$0xff]
        %v1539 = vld [vmem:[%s6 + $0x5c8] sm:$0xff]
        %v1540 = vld [vmem:[%s6 + $0x5d0] sm:$0xff]
        %v1541 = vld [vmem:[%s6 + $0x5d8] sm:$0xff]
        %v1542 = vld [vmem:[%s6 + $0x5e0] sm:$0xff]
        %v1543 = vld [vmem:[%s6 + $0x5e8] sm:$0xff]
        %v1544 = vld [vmem:[%s6 + $0x5f0] sm:$0xff]
        %v1545 = vld [vmem:[%s6 + $0x5f8] sm:$0xff]
        %v1546 = vld [vmem:[%s6 + $0x600] sm:$0xff]
        %v1547 = vld [vmem:[%s6 + $0x608] sm:$0xff]
        %v1548 = vld [vmem:[%s6 + $0x610] sm:$0xff]
        %v1549 = vld [vmem:[%s6 + $0x618] sm:$0xff]
        %v1550 = vld [vmem:[%s6 + $0x620] sm:$0xff]
        %v1551 = vld [vmem:[%s6 + $0x628] sm:$0xff]
        %v1552 = vld [vmem:[%s6 + $0x630] sm:$0xff]
        %v1553 = vld [vmem:[%s6 + $0x638] sm:$0xff]
        %v1554 = vld [vmem:[%s6 + $0x640] sm:$0xff]
        %v1555 = vld [vmem:[%s6 + $0x648] sm:$0xff]
        %v1556 = vld [vmem:[%s6 + $0x650] sm:$0xff]
        %v1557 = vld [vmem:[%s6 + $0x658] sm:$0xff]
        %v1558 = vld [vmem:[%s6 + $0x660] sm:$0xff]
        %v1559 = vld [vmem:[%s6 + $0x668] sm:$0xff]
        %v1560 = vld [vmem:[%s6 + $0x670] sm:$0xff]
        %v1561 = vld [vmem:[%s6 + $0x678] sm:$0xff]
        %v1562 = vld [vmem:[%s6 + $0x680] sm:$0xff]
        %v1563 = vld [vmem:[%s6 + $0x688] sm:$0xff]
        %v1564 = vld [vmem:[%s6 + $0x690] sm:$0xff]
        %v1565 = vld [vmem:[%s6 + $0x698] sm:$0xff]
        %v1566 = vld [vmem:[%s6 + $0x6a0] sm:$0xff]
        %v1567 = vld [vmem:[%s6 + $0x6a8] sm:$0xff]
        %v1568 = vld [vmem:[%s6 + $0x6b0] sm:$0xff]
        %v1569 = vld [vmem:[%s6 + $0x6b8] sm:$0xff]
        %v1570 = vld [vmem:[%s6 + $0x6c0] sm:$0xff]
        %v1571 = vld [vmem:[%s6 + $0x6c8] sm:$0xff]
        %v1572 = vld [vmem:[%s6 + $0x6d0] sm:$0xff]
        %v1573 = vld [vmem:[%s6 + $0x6d8] sm:$0xff]
        %v1574 = vld [vmem:[%s6 + $0x6e0] sm:$0xff]
        %v1575 = vld [vmem:[%s6 + $0x6e8] sm:$0xff]
        %v1576 = vld [vmem:[%s6 + $0x6f0] sm:$0xff]
        %v1577 = vld [vmem:[%s6 + $0x6f8] sm:$0xff]
        %v1578 = vld [vmem:[%s6 + $0x700] sm:$0xff]
        %v1579 = vld [vmem:[%s6 + $0x708] sm:$0xff]
        %v1580 = vld [vmem:[%s6 + $0x710] sm:$0xff]
        %v1581 = vld [vmem:[%s6 + $0x718] sm:$0xff]
        %v1582 = vld [vmem:[%s6 + $0x720] sm:$0xff]
        %v1583 = vld [vmem:[%s6 + $0x728] sm:$0xff]
        %v1584 = vld [vmem:[%s6 + $0x730] sm:$0xff]
        %v1585 = vld [vmem:[%s6 + $0x738] sm:$0xff]
        %v1586 = vld [vmem:[%s6 + $0x740] sm:$0xff]
        %v1587 = vld [vmem:[%s6 + $0x748] sm:$0xff]
        %v1588 = vld [vmem:[%s6 + $0x750] sm:$0xff]
        %v1589 = vld [vmem:[%s6 + $0x758] sm:$0xff]
        %v1590 = vld [vmem:[%s6 + $0x760] sm:$0xff]
        %v1591 = vld [vmem:[%s6 + $0x768] sm:$0xff]
        %v1592 = vld [vmem:[%s6 + $0x770] sm:$0xff]
        %v1593 = vld [vmem:[%s6 + $0x778] sm:$0xff]
        %v1594 = vld [vmem:[%s6 + $0x780] sm:$0xff]
        %v1595 = vld [vmem:[%s6 + $0x788] sm:$0xff]
        %v1596 = vld [vmem:[%s6 + $0x790] sm:$0xff]
        %v1597 = vld [vmem:[%s6 + $0x798] sm:$0xff]
        %v1598 = vld [vmem:[%s6 + $0x7a0] sm:$0xff]
        %v1599 = vld [vmem:[%s6 + $0x7a8] sm:$0xff]
        %v1600 = vld [vmem:[%s6 + $0x7b0] sm:$0xff]
        %v1601 = vld [vmem:[%s6 + $0x7b8] sm:$0xff]
        %v1602 = vld [vmem:[%s6 + $0x7c0] sm:$0xff]
        %v1603 = vld [vmem:[%s6 + $0x7c8] sm:$0xff]
        %v1604 = vld [vmem:[%s6 + $0x7d0] sm:$0xff]
        %v1605 = vld [vmem:[%s6 + $0x7d8] sm:$0xff]
        %v1606 = vld [vmem:[%s6 + $0x7e0] sm:$0xff]
        %v1607 = vld [vmem:[%s6 + $0x7e8] sm:$0xff]
        %v1608 = vld [vmem:[%s6 + $0x7f0] sm:$0xff]
        %v1609 = vld [vmem:[%s6 + $0x7f8] sm:$0xff]
        %v1610 = vld [vmem:[%s7] sm:$0xff]
        %v1612 = vperm.slane %v1610, 0
        %v1613 = vperm.slane %v1610, 1
        %v1614 = vperm.slane %v1610, 2
        %v1615 = vperm.slane %v1610, 3
        %v1616 = vperm.slane %v1610, 4
        %v1617 = vperm.slane %v1610, 5
        %v1618 = vperm.slane %v1610, 6
        %v1619 = vperm.slane %v1610, 7
        %1628 = vmatpush.msra.mxu0 %v1474
        %1629 = vmatpush.msra.mxu0 %v1466
        %1630 = vmatpush.msra.mxu0 %v1458
        %1631 = vmatpush.msra.mxu0 %v1450
        %1632 = vmatpush.msra.mxu0 %v1442
        %1633 = vmatpush.msra.mxu0 %v1434
        %1634 = vmatpush.msra.mxu0 %v1426
        %1635 = vmatpush.msra.mxu0 %v1418
        %1636 = vmatpush.msra.mxu0 %v1410
        %1637 = vmatpush.msra.mxu0 %v1402
        %1638 = vmatpush.msra.mxu0 %v1394
        %1639 = vmatpush.msra.mxu0 %v1386
        %1640 = vmatpush.msra.mxu0 %v1378
        %1641 = vmatpush.msra.mxu0 %v1370
        %1642 = vmatpush.msra.mxu0 %v1362
        %1643 = vmatpush.msra.mxu0 %v1354
        %1644 = vmatmul.f32.gmra.mxu0 %v1352
        %v1645 = vpop.f32.mrf.mxu0
        %v1646 = vadd.f32 %v1612, %v1645
        %1647 = vdwg.mxu0
        %1648 = vmatpush.msra.mxu0 %v1602
        %1649 = vmatpush.msra.mxu0 %v1594
        %1650 = vmatpush.msra.mxu0 %v1586
        %1651 = vmatpush.msra.mxu0 %v1578
        %1652 = vmatpush.msra.mxu0 %v1570
        %1653 = vmatpush.msra.mxu0 %v1562
        %1654 = vmatpush.msra.mxu0 %v1554
        %1655 = vmatpush.msra.mxu0 %v1546
        %1656 = vmatpush.msra.mxu0 %v1538
        %1657 = vmatpush.msra.mxu0 %v1530
        %1658 = vmatpush.msra.mxu0 %v1522
        %1659 = vmatpush.msra.mxu0 %v1514
        %1660 = vmatpush.msra.mxu0 %v1506
        %1661 = vmatpush.msra.mxu0 %v1498
        %1662 = vmatpush.msra.mxu0 %v1490
        %1663 = vmatpush.msra.mxu0 %v1482
        %1664 = vmatmul.f32.gmra.mxu0 %v1353
        %v1665 = vpop.f32.mrf.mxu0
        %v1666 = vadd.f32 %v1646, %v1665
        %1667 = vdwg.mxu0
        %1668 = vmatpush.msra.mxu0 %v1475
        %1669 = vmatpush.msra.mxu0 %v1467
        %1670 = vmatpush.msra.mxu0 %v1459
        %1671 = vmatpush.msra.mxu0 %v1451
        %1672 = vmatpush.msra.mxu0 %v1443
        %1673 = vmatpush.msra.mxu0 %v1435
        %1674 = vmatpush.msra.mxu0 %v1427
        %1675 = vmatpush.msra.mxu0 %v1419
        %1676 = vmatpush.msra.mxu0 %v1411
        %1677 = vmatpush.msra.mxu0 %v1403
        %1678 = vmatpush.msra.mxu0 %v1395
        %1679 = vmatpush.msra.mxu0 %v1387
        %1680 = vmatpush.msra.mxu0 %v1379
        %1681 = vmatpush.msra.mxu0 %v1371
        %1682 = vmatpush.msra.mxu0 %v1363
        %1683 = vmatpush.msra.mxu0 %v1355
        %1684 = vmatmul.f32.gmra.mxu0 %v1352
        %v1685 = vpop.f32.mrf.mxu0
        %v1686 = vadd.f32 %v1613, %v1685
        %1687 = vdwg.mxu0
        %1688 = vmatpush.msra.mxu0 %v1603
        %1689 = vmatpush.msra.mxu0 %v1595
        %1690 = vmatpush.msra.mxu0 %v1587
        %1691 = vmatpush.msra.mxu0 %v1579
        %1692 = vmatpush.msra.mxu0 %v1571
        %1693 = vmatpush.msra.mxu0 %v1563
        %1694 = vmatpush.msra.mxu0 %v1555
        %1695 = vmatpush.msra.mxu0 %v1547
        %1696 = vmatpush.msra.mxu0 %v1539
        %1697 = vmatpush.msra.mxu0 %v1531
        %1698 = vmatpush.msra.mxu0 %v1523
        %1699 = vmatpush.msra.mxu0 %v1515
        %1700 = vmatpush.msra.mxu0 %v1507
        %1701 = vmatpush.msra.mxu0 %v1499
        %1702 = vmatpush.msra.mxu0 %v1491
        %1703 = vmatpush.msra.mxu0 %v1483
        %1704 = vmatmul.f32.gmra.mxu0 %v1353
        %v1705 = vpop.f32.mrf.mxu0
        %v1706 = vadd.f32 %v1686, %v1705
        %1707 = vdwg.mxu0
        %1708 = vmatpush.msra.mxu0 %v1476
        %1709 = vmatpush.msra.mxu0 %v1468
        %1710 = vmatpush.msra.mxu0 %v1460
        %1711 = vmatpush.msra.mxu0 %v1452
        %1712 = vmatpush.msra.mxu0 %v1444
        %1713 = vmatpush.msra.mxu0 %v1436
        %1714 = vmatpush.msra.mxu0 %v1428
        %1715 = vmatpush.msra.mxu0 %v1420
        %1716 = vmatpush.msra.mxu0 %v1412
        %1717 = vmatpush.msra.mxu0 %v1404
        %1718 = vmatpush.msra.mxu0 %v1396
        %1719 = vmatpush.msra.mxu0 %v1388
        %1720 = vmatpush.msra.mxu0 %v1380
        %1721 = vmatpush.msra.mxu0 %v1372
        %1722 = vmatpush.msra.mxu0 %v1364
        %1723 = vmatpush.msra.mxu0 %v1356
        %1724 = vmatmul.f32.gmra.mxu0 %v1352
        %v1725 = vpop.f32.mrf.mxu0
        %v1726 = vadd.f32 %v1614, %v1725
        %1727 = vdwg.mxu0
        %1728 = vmatpush.msra.mxu0 %v1604
        %1729 = vmatpush.msra.mxu0 %v1596
        %1730 = vmatpush.msra.mxu0 %v1588
        %1731 = vmatpush.msra.mxu0 %v1580
        %1732 = vmatpush.msra.mxu0 %v1572
        %1733 = vmatpush.msra.mxu0 %v1564
        %1734 = vmatpush.msra.mxu0 %v1556
        %1735 = vmatpush.msra.mxu0 %v1548
        %1736 = vmatpush.msra.mxu0 %v1540
        %1737 = vmatpush.msra.mxu0 %v1532
        %1738 = vmatpush.msra.mxu0 %v1524
        %1739 = vmatpush.msra.mxu0 %v1516
        %1740 = vmatpush.msra.mxu0 %v1508
        %1741 = vmatpush.msra.mxu0 %v1500
        %1742 = vmatpush.msra.mxu0 %v1492
        %1743 = vmatpush.msra.mxu0 %v1484
        %1744 = vmatmul.f32.gmra.mxu0 %v1353
        %v1745 = vpop.f32.mrf.mxu0
        %v1746 = vadd.f32 %v1726, %v1745
        %1747 = vdwg.mxu0
        %1748 = vmatpush.msra.mxu0 %v1477
        %1749 = vmatpush.msra.mxu0 %v1469
        %1750 = vmatpush.msra.mxu0 %v1461
        %1751 = vmatpush.msra.mxu0 %v1453
        %1752 = vmatpush.msra.mxu0 %v1445
        %1753 = vmatpush.msra.mxu0 %v1437
        %1754 = vmatpush.msra.mxu0 %v1429
        %1755 = vmatpush.msra.mxu0 %v1421
        %1756 = vmatpush.msra.mxu0 %v1413
        %1757 = vmatpush.msra.mxu0 %v1405
        %1758 = vmatpush.msra.mxu0 %v1397
        %1759 = vmatpush.msra.mxu0 %v1389
        %1760 = vmatpush.msra.mxu0 %v1381
        %1761 = vmatpush.msra.mxu0 %v1373
        %1762 = vmatpush.msra.mxu0 %v1365
        %1763 = vmatpush.msra.mxu0 %v1357
        %1764 = vmatmul.f32.gmra.mxu0 %v1352
        %v1765 = vpop.f32.mrf.mxu0
        %v1766 = vadd.f32 %v1615, %v1765
        %1767 = vdwg.mxu0
        %1768 = vmatpush.msra.mxu0 %v1605
        %1769 = vmatpush.msra.mxu0 %v1597
        %1770 = vmatpush.msra.mxu0 %v1589
        %1771 = vmatpush.msra.mxu0 %v1581
        %1772 = vmatpush.msra.mxu0 %v1573
        %1773 = vmatpush.msra.mxu0 %v1565
        %1774 = vmatpush.msra.mxu0 %v1557
        %1775 = vmatpush.msra.mxu0 %v1549
        %1776 = vmatpush.msra.mxu0 %v1541
        %1777 = vmatpush.msra.mxu0 %v1533
        %1778 = vmatpush.msra.mxu0 %v1525
        %1779 = vmatpush.msra.mxu0 %v1517
        %1780 = vmatpush.msra.mxu0 %v1509
        %1781 = vmatpush.msra.mxu0 %v1501
        %1782 = vmatpush.msra.mxu0 %v1493
        %1783 = vmatpush.msra.mxu0 %v1485
        %1784 = vmatmul.f32.gmra.mxu0 %v1353
        %v1785 = vpop.f32.mrf.mxu0
        %v1786 = vadd.f32 %v1766, %v1785
        %1787 = vdwg.mxu0
        %1788 = vmatpush.msra.mxu0 %v1478
        %1789 = vmatpush.msra.mxu0 %v1470
        %1790 = vmatpush.msra.mxu0 %v1462
        %1791 = vmatpush.msra.mxu0 %v1454
        %1792 = vmatpush.msra.mxu0 %v1446
        %1793 = vmatpush.msra.mxu0 %v1438
        %1794 = vmatpush.msra.mxu0 %v1430
        %1795 = vmatpush.msra.mxu0 %v1422
        %1796 = vmatpush.msra.mxu0 %v1414
        %1797 = vmatpush.msra.mxu0 %v1406
        %1798 = vmatpush.msra.mxu0 %v1398
        %1799 = vmatpush.msra.mxu0 %v1390
        %1800 = vmatpush.msra.mxu0 %v1382
        %1801 = vmatpush.msra.mxu0 %v1374
        %1802 = vmatpush.msra.mxu0 %v1366
        %1803 = vmatpush.msra.mxu0 %v1358
        %1804 = vmatmul.f32.gmra.mxu0 %v1352
        %v1805 = vpop.f32.mrf.mxu0
        %v1806 = vadd.f32 %v1616, %v1805
        %1807 = vdwg.mxu0
        %1808 = vmatpush.msra.mxu0 %v1606
        %1809 = vmatpush.msra.mxu0 %v1598
        %1810 = vmatpush.msra.mxu0 %v1590
        %1811 = vmatpush.msra.mxu0 %v1582
        %1812 = vmatpush.msra.mxu0 %v1574
        %1813 = vmatpush.msra.mxu0 %v1566
        %1814 = vmatpush.msra.mxu0 %v1558
        %1815 = vmatpush.msra.mxu0 %v1550
        %1816 = vmatpush.msra.mxu0 %v1542
        %1817 = vmatpush.msra.mxu0 %v1534
        %1818 = vmatpush.msra.mxu0 %v1526
        %1819 = vmatpush.msra.mxu0 %v1518
        %1820 = vmatpush.msra.mxu0 %v1510
        %1821 = vmatpush.msra.mxu0 %v1502
        %1822 = vmatpush.msra.mxu0 %v1494
        %1823 = vmatpush.msra.mxu0 %v1486
        %1824 = vmatmul.f32.gmra.mxu0 %v1353
        %v1825 = vpop.f32.mrf.mxu0
        %v1826 = vadd.f32 %v1806, %v1825
        %1827 = vdwg.mxu0
        %1828 = vmatpush.msra.mxu0 %v1479
        %1829 = vmatpush.msra.mxu0 %v1471
        %1830 = vmatpush.msra.mxu0 %v1463
        %1831 = vmatpush.msra.mxu0 %v1455
        %1832 = vmatpush.msra.mxu0 %v1447
        %1833 = vmatpush.msra.mxu0 %v1439
        %1834 = vmatpush.msra.mxu0 %v1431
        %1835 = vmatpush.msra.mxu0 %v1423
        %1836 = vmatpush.msra.mxu0 %v1415
        %1837 = vmatpush.msra.mxu0 %v1407
        %1838 = vmatpush.msra.mxu0 %v1399
        %1839 = vmatpush.msra.mxu0 %v1391
        %1840 = vmatpush.msra.mxu0 %v1383
        %1841 = vmatpush.msra.mxu0 %v1375
        %1842 = vmatpush.msra.mxu0 %v1367
        %1843 = vmatpush.msra.mxu0 %v1359
        %1844 = vmatmul.f32.gmra.mxu0 %v1352
        %v1845 = vpop.f32.mrf.mxu0
        %v1846 = vadd.f32 %v1617, %v1845
        %1847 = vdwg.mxu0
        %1848 = vmatpush.msra.mxu0 %v1607
        %1849 = vmatpush.msra.mxu0 %v1599
        %1850 = vmatpush.msra.mxu0 %v1591
        %1851 = vmatpush.msra.mxu0 %v1583
        %1852 = vmatpush.msra.mxu0 %v1575
        %1853 = vmatpush.msra.mxu0 %v1567
        %1854 = vmatpush.msra.mxu0 %v1559
        %1855 = vmatpush.msra.mxu0 %v1551
        %1856 = vmatpush.msra.mxu0 %v1543
        %1857 = vmatpush.msra.mxu0 %v1535
        %1858 = vmatpush.msra.mxu0 %v1527
        %1859 = vmatpush.msra.mxu0 %v1519
        %1860 = vmatpush.msra.mxu0 %v1511
        %1861 = vmatpush.msra.mxu0 %v1503
        %1862 = vmatpush.msra.mxu0 %v1495
        %1863 = vmatpush.msra.mxu0 %v1487
        %1864 = vmatmul.f32.gmra.mxu0 %v1353
        %v1865 = vpop.f32.mrf.mxu0
        %v1866 = vadd.f32 %v1846, %v1865
        %1867 = vdwg.mxu0
        %1868 = vmatpush.msra.mxu0 %v1480
        %1869 = vmatpush.msra.mxu0 %v1472
        %1870 = vmatpush.msra.mxu0 %v1464
        %1871 = vmatpush.msra.mxu0 %v1456
        %1872 = vmatpush.msra.mxu0 %v1448
        %1873 = vmatpush.msra.mxu0 %v1440
        %1874 = vmatpush.msra.mxu0 %v1432
        %1875 = vmatpush.msra.mxu0 %v1424
        %1876 = vmatpush.msra.mxu0 %v1416
        %1877 = vmatpush.msra.mxu0 %v1408
        %1878 = vmatpush.msra.mxu0 %v1400
        %1879 = vmatpush.msra.mxu0 %v1392
        %1880 = vmatpush.msra.mxu0 %v1384
        %1881 = vmatpush.msra.mxu0 %v1376
        %1882 = vmatpush.msra.mxu0 %v1368
        %1883 = vmatpush.msra.mxu0 %v1360
        %1884 = vmatmul.f32.gmra.mxu0 %v1352
        %v1885 = vpop.f32.mrf.mxu0
        %v1886 = vadd.f32 %v1618, %v1885
        %1887 = vdwg.mxu0
        %1888 = vmatpush.msra.mxu0 %v1608
        %1889 = vmatpush.msra.mxu0 %v1600
        %1890 = vmatpush.msra.mxu0 %v1592
        %1891 = vmatpush.msra.mxu0 %v1584
        %1892 = vmatpush.msra.mxu0 %v1576
        %1893 = vmatpush.msra.mxu0 %v1568
        %1894 = vmatpush.msra.mxu0 %v1560
        %1895 = vmatpush.msra.mxu0 %v1552
        %1896 = vmatpush.msra.mxu0 %v1544
        %1897 = vmatpush.msra.mxu0 %v1536
        %1898 = vmatpush.msra.mxu0 %v1528
        %1899 = vmatpush.msra.mxu0 %v1520
        %1900 = vmatpush.msra.mxu0 %v1512
        %1901 = vmatpush.msra.mxu0 %v1504
        %1902 = vmatpush.msra.mxu0 %v1496
        %1903 = vmatpush.msra.mxu0 %v1488
        %1904 = vmatmul.f32.gmra.mxu0 %v1353
        %v1905 = vpop.f32.mrf.mxu0
        %v1906 = vadd.f32 %v1886, %v1905
        %1907 = vdwg.mxu0
        %1908 = vmatpush.msra.mxu0 %v1481
        %1909 = vmatpush.msra.mxu0 %v1473
        %1910 = vmatpush.msra.mxu0 %v1465
        %1911 = vmatpush.msra.mxu0 %v1457
        %1912 = vmatpush.msra.mxu0 %v1449
        %1913 = vmatpush.msra.mxu0 %v1441
        %1914 = vmatpush.msra.mxu0 %v1433
        %1915 = vmatpush.msra.mxu0 %v1425
        %1916 = vmatpush.msra.mxu0 %v1417
        %1917 = vmatpush.msra.mxu0 %v1409
        %1918 = vmatpush.msra.mxu0 %v1401
        %1919 = vmatpush.msra.mxu0 %v1393
        %1920 = vmatpush.msra.mxu0 %v1385
        %1921 = vmatpush.msra.mxu0 %v1377
        %1922 = vmatpush.msra.mxu0 %v1369
        %1923 = vmatpush.msra.mxu0 %v1361
        %1924 = vmatmul.f32.gmra.mxu0 %v1352
        %v1925 = vpop.f32.mrf.mxu0
        %v1926 = vadd.f32 %v1619, %v1925
        %1927 = vdwg.mxu0
        %1928 = vmatpush.msra.mxu0 %v1609
        %1929 = vmatpush.msra.mxu0 %v1601
        %1930 = vmatpush.msra.mxu0 %v1593
        %1931 = vmatpush.msra.mxu0 %v1585
        %1932 = vmatpush.msra.mxu0 %v1577
        %1933 = vmatpush.msra.mxu0 %v1569
        %1934 = vmatpush.msra.mxu0 %v1561
        %1935 = vmatpush.msra.mxu0 %v1553
        %1936 = vmatpush.msra.mxu0 %v1545
        %1937 = vmatpush.msra.mxu0 %v1537
        %1938 = vmatpush.msra.mxu0 %v1529
        %1939 = vmatpush.msra.mxu0 %v1521
        %1940 = vmatpush.msra.mxu0 %v1513
        %1941 = vmatpush.msra.mxu0 %v1505
        %1942 = vmatpush.msra.mxu0 %v1497
        %1943 = vmatpush.msra.mxu0 %v1489
        %1944 = vmatmul.f32.gmra.mxu0 %v1353
        %v1945 = vpop.f32.mrf.mxu0
        %v1946 = vadd.f32 %v1926, %v1945
        %1947 = vdwg.mxu0
        %v1948 = vld [vmem:[%s8] sm:$0xff]
        %v1949 = vld [vmem:[%s9] sm:$0xff]
        %v1950 = vld [vmem:[%s844] sm:$0xff]
        %v1951 = vld [vmem:[%s844 + $0x8] sm:$0xff]
        %v1952 = vrot.slane %v1950, 7
        %v1953 = vrot.slane %v1951, 7
        %vm1954 = vcmp.lt.s32.totalorder %v849, 1
        %v1955 = vsel %vm1954, %v1952, %v1953
        %v1956 = vsel %vm1954, %v1953, %v1952
        %vm1957 = vcmp.ge.s32.totalorder %v849, 1
        %vm1958 = vcmp.ge.s32.totalorder %v850, 1
        %v1959 = vsel %vm1957, 1, 0
        %v1960 = vsel %vm1958, 1, 0
        %v1961 = vcvt.s32.f32 %v1959
        %v1962 = vcvt.s32.f32 %v1960
        %v1963 = vmul.f32 %v1956, %v1961
        %v1964 = vmul.f32 %v1955, %v1962
        %v1965 = vrot.slane %v1950, 1
        %v1966 = vrot.slane %v1951, 1
        %vm1967 = vcmp.lt.s32.totalorder %v849, 7
        %v1968 = vsel %vm1967, %v1965, %v1966
        %v1969 = vsel %vm1967, %v1966, %v1965
        %vm1970 = vcmp.lt.s32.totalorder %v849, 15
        %vm1971 = vcmp.lt.s32.totalorder %v850, 15
        %v1972 = vsel %vm1970, 1, 0
        %v1973 = vsel %vm1971, 1, 0
        %v1974 = vcvt.s32.f32 %v1972
        %v1975 = vcvt.s32.f32 %v1973
        %v1976 = vmul.f32 %v1968, %v1974
        %v1977 = vmul.f32 %v1969, %v1975
        %1980 = vrot.lane.b32.xlu0 %v1950, 32
        %v1981 = vpop.permute.xlu0 %1980
        %1982 = vrot.lane.b32.xlu0 %v1951, 32
        %v1983 = vpop.permute.xlu0 %1982
        %1988 = vrot.lane.b32.xlu0 %v1976, 64
        %v1989 = vpop.permute.xlu0 %1988
        %1990 = vrot.lane.b32.xlu0 %v1977, 64
        %v1991 = vpop.permute.xlu0 %1990
        %vm1994 = vcmask 261120
        %v1995 = vsel %vm1994, %v1963, %v1981
        %v1996 = vsel %vm1994, %v1964, %v1983
        %vm1997 = vcmask 523264
        %v1998 = vsel %vm1997, %v1995, %v1989
        %v1999 = vsel %vm1997, %v1996, %v1991
        %v2000 = vpack.c.bf16 %v1999, %v1998
        %v2001 = vld [vmem:[%s10] sm:$0xf]
        %v2002 = vld [vmem:[%s10 + $0x4] sm:$0xf]
        %v2003 = vld [vmem:[%s10 + $0x8] sm:$0xf]
        %v2004 = vld [vmem:[%s10 + $0xc] sm:$0xf]
        %v2005 = vld [vmem:[%s10 + $0x10] sm:$0xf]
        %v2006 = vld [vmem:[%s10 + $0x14] sm:$0xf]
        %v2007 = vld [vmem:[%s10 + $0x18] sm:$0xf]
        %v2008 = vld [vmem:[%s10 + $0x1c] sm:$0xf]
        %v2009 = vld [vmem:[%s10 + $0x20] sm:$0xf]
        %v2010 = vld [vmem:[%s10 + $0x24] sm:$0xf]
        %v2011 = vld [vmem:[%s10 + $0x28] sm:$0xf]
        %v2012 = vld [vmem:[%s10 + $0x2c] sm:$0xf]
        %v2013 = vperm.slane %v1666, 0
        %v2026 = vunpack.c.l.b16 %v2001
        %v2027 = vunpack.c.l.b16 %v2002
        %v2028 = vunpack.c.l.b16 %v2003
        %v2029 = vunpack.c.l.b16 %v2004
        %v2030 = vunpack.c.l.b16 %v2005
        %v2031 = vunpack.c.l.b16 %v2006
        %v2032 = vunpack.c.l.b16 %v2007
        %v2033 = vunpack.c.l.b16 %v2008
        %v2034 = vunpack.c.l.b16 %v2009
        %v2035 = vunpack.c.l.b16 %v2010
        %v2036 = vunpack.c.l.b16 %v2011
        %v2037 = vunpack.c.l.b16 %v2012
        %v2038 = vpack.c.b16 %v2027, %v2026
        %v2039 = vpack.c.b16 %v2029, %v2028
        %v2040 = vpack.c.b16 %v2031, %v2030
        %v2041 = vpack.c.b16 %v2033, %v2032
        %v2042 = vpack.c.b16 %v2035, %v2034
        %v2043 = vpack.c.b16 %v2037, %v2036
        %vm2050 = vcmask 785408
        %v2052 = vsel %vm2050, %v2000, 0
        %2054 = vmatpush.bf16.msra.mxu0 0
        %2055 = vmatpush.bf16.msra.mxu0 0
        %2056 = vmatpush.bf16.msra.mxu0 %v2043
        %2057 = vmatpush.bf16.msra.mxu0 %v2042
        %2058 = vmatpush.bf16.msra.mxu0 %v2041
        %2059 = vmatpush.bf16.msra.mxu0 %v2040
        %2060 = vmatpush.bf16.msra.mxu0 %v2039
        %2061 = vmatpush.bf16.msra.mxu0 %v2038
        %2062 = vmatmul.bf16.gmra.mxu0 %v2052
        %v2063 = vpop.f32.mrf.mxu0
        %v2064 = vadd.f32 %v2013, %v2063
        %v2065 = vpop.f32.mrf.mxu0
        %v2066 = vadd.f32 %v2013, %v2065
        %2067 = vdwg.mxu0
        %v2068 = vsel %vm1994, %v2064, 0.0
        %v2069 = vsel %vm1994, %v2066, 0.0
        %v2070 = vadd.f32 %v2068, %v2069
        %v2071 = vrot.slane %v2070, 4
        %v2072 = vadd.f32 %v2070, %v2071
        %v2073 = vrot.slane %v2072, 2
        %v2074 = vadd.f32 %v2072, %v2073
        %v2075 = vrot.slane %v2074, 1
        %v2076 = vadd.f32 %v2074, %v2075
        %v2077 = vmul.f32 %v2064, %v2064
        %v2078 = vmul.f32 %v2066, %v2066
        %v2079 = vsel %vm1994, %v2077, 0.0
        %v2080 = vsel %vm1994, %v2078, 0.0
        %v2081 = vadd.f32 %v2079, %v2080
        %v2082 = vrot.slane %v2081, 4
        %v2083 = vadd.f32 %v2081, %v2082
        %v2084 = vrot.slane %v2083, 2
        %v2085 = vadd.f32 %v2083, %v2084
        %v2086 = vrot.slane %v2085, 1
        %v2087 = vadd.f32 %v2085, %v2086
        %v2088 = vld [vmem:[%s22] sm:$0xff]
        %v2089 = vld [vmem:[%s22 + $0x8] sm:$0xff]
        %v2090 = vld [vmem:[%s22 + $0x10] sm:$0xff]
        %v2091 = vld [vmem:[%s22 + $0x18] sm:$0xff]
        %v2093 = vsel %vm1994, %v2076, 0
        %2095 = vmatpush.msra.mxu0 0.0
        %2096 = vmatpush.msra.mxu0 0.0
        %2097 = vmatpush.msra.mxu0 0.0
        %2098 = vmatpush.msra.mxu0 0.0
        %2099 = vmatpush.msra.mxu0 0.0
        %2100 = vmatpush.msra.mxu0 0.0
        %2101 = vmatpush.msra.mxu0 0.0
        %2102 = vmatpush.msra.mxu0 0.0
        %2103 = vmatpush.msra.mxu0 0.0
        %2104 = vmatpush.msra.mxu0 0.0
        %2105 = vmatpush.msra.mxu0 0.0
        %2106 = vmatpush.msra.mxu0 0.0
        %2107 = vmatpush.msra.mxu0 %v2091
        %2108 = vmatpush.msra.mxu0 %v2090
        %2109 = vmatpush.msra.mxu0 %v2089
        %2110 = vmatpush.msra.mxu0 %v2088
        %2111 = vmatmul.f32.gmra.mxu0 %v2093
        %v2112 = vpop.f32.mrf.mxu0
        %v2113 = vadd.f32 0.0, %v2112
        %2114 = vdwg.mxu0
        %v2116 = vsel %vm1994, %v2087, 0
        %2118 = vmatpush.msra.mxu0 0.0
        %2119 = vmatpush.msra.mxu0 0.0
        %2120 = vmatpush.msra.mxu0 0.0
        %2121 = vmatpush.msra.mxu0 0.0
        %2122 = vmatpush.msra.mxu0 0.0
        %2123 = vmatpush.msra.mxu0 0.0
        %2124 = vmatpush.msra.mxu0 0.0
        %2125 = vmatpush.msra.mxu0 0.0
        %2126 = vmatpush.msra.mxu0 0.0
        %2127 = vmatpush.msra.mxu0 0.0
        %2128 = vmatpush.msra.mxu0 0.0
        %2129 = vmatpush.msra.mxu0 0.0
        %2130 = vmatpush.msra.mxu0 %v2091
        %2131 = vmatpush.msra.mxu0 %v2090
        %2132 = vmatpush.msra.mxu0 %v2089
        %2133 = vmatpush.msra.mxu0 %v2088
        %2134 = vmatmul.f32.gmra.mxu0 %v2116
        %v2135 = vpop.f32.mrf.mxu0
        %v2136 = vadd.f32 0.0, %v2135
        %2137 = vdwg.mxu0
        %v2138 = vmul.f32 %v2113, %v2113
        %v2139 = vsub.f32 %v2136, %v2138
        %v2140 = vmax.f32 %v2139, 0.0
        %v2141 = vadd.f32 %v2140, 1e-05
        %v2142 = vrsqrt.pop %v2141
        %v2143 = vmul.f32 %v2142, %v2141
        %v2144 = vmul.f32 %v2143, %v2142
        %v2145 = vmul.f32 0.5, %v2144
        %v2146 = vsub.f32 1.5, %v2145
        %v2147 = vmul.f32 %v2142, %v2146
        %vm2148 = vweird.f32 %v2141
        %vm2149 = vweird.f32 %v2142
        %vm2150 = vmor %vm2148, %vm2149
        %v2151 = vsel %vm2150, %v2142, %v2147
        %v2152 = vmul.f32 %v2151, %v1948
        %v2153 = vmul.f32 %v2113, %v2152
        %v2154 = vsub.f32 %v1949, %v2153
        %v2155 = vperm.slane %v2152, 0
        %v2156 = vmul.f32 %v2064, %v2155
        %v2157 = vmul.f32 %v2066, %v2155
        %v2159 = vperm.slane %v2154, 0
        %v2161 = vadd.f32 %v2156, %v2159
        %v2162 = vadd.f32 %v2157, %v2159
        %v2163 = vxor.u32 %v2161, 2147483648
        %v2164 = vxor.u32 %v2162, 2147483648
        %v2165 = vmul.f32 %v2163, 1.442695
        %v2166 = vpow.pop %v2165
        %v2167 = vmul.f32 %v2164, 1.442695
        %v2168 = vpow.pop %v2167
        %v2169 = vadd.f32 %v2166, 1.0
        %v2170 = vadd.f32 %v2168, 1.0
        %v2171 = vrcp.pop %v2169
        %v2172 = vmul.f32 %v2169, %v2171
        %v2173 = vsub.f32 1.0, %v2172
        %v2174 = vmul.f32 %v2171, %v2173
        %v2175 = vadd.f32 %v2171, %v2174
        %vm2176 = vweird.f32 %v2169
        %vm2177 = vweird.f32 %v2171
        %vm2178 = vmor %vm2176, %vm2177
        %v2179 = vsel %vm2178, %v2171, %v2175
        %v2180 = vand.u32 2147483647, %v2169
        %vm2181 = vcmp.eq.f32.partialorder %v2180, 8.507059e+37
        %v2182 = vand.u32 %v2169, 2147483648
        %v2183 = vor.u32 1.1754944e-38, %v2182
        %v2184 = vsel %vm2181, %v2183, %v2179
        %v2185 = vmul.f32 1.0, %v2184
        %v2186 = vrcp.pop %v2170
        %v2187 = vmul.f32 %v2170, %v2186
        %v2188 = vsub.f32 1.0, %v2187
        %v2189 = vmul.f32 %v2186, %v2188
        %v2190 = vadd.f32 %v2186, %v2189
        %vm2191 = vweird.f32 %v2170
        %vm2192 = vweird.f32 %v2186
        %vm2193 = vmor %vm2191, %vm2192
        %v2194 = vsel %vm2193, %v2186, %v2190
        %v2195 = vand.u32 2147483647, %v2170
        %vm2196 = vcmp.eq.f32.partialorder %v2195, 8.507059e+37
        %v2197 = vand.u32 %v2170, 2147483648
        %v2198 = vor.u32 1.1754944e-38, %v2197
        %v2199 = vsel %vm2196, %v2198, %v2194
        %v2200 = vmul.f32 1.0, %v2199
        %v2201 = vmul.f32 %v2161, %v2185
        %v2202 = vmul.f32 %v2162, %v2200
        %v2203 = vrot.slane %v2201, 7
        %v2204 = vrot.slane %v2202, 7
        %v2205 = vsel %vm1954, %v2203, %v2204
        %v2206 = vsel %vm1954, %v2204, %v2203
        %v2207 = vmul.f32 %v2206, %v1961
        %v2208 = vmul.f32 %v2205, %v1962
        %v2209 = vrot.slane %v2201, 1
        %v2210 = vrot.slane %v2202, 1
        %v2211 = vsel %vm1967, %v2209, %v2210
        %v2212 = vsel %vm1967, %v2210, %v2209
        %v2213 = vmul.f32 %v2211, %v1974
        %v2214 = vmul.f32 %v2212, %v1975
        %2217 = vrot.lane.b32.xlu0 %v2201, 32
        %v2218 = vpop.permute.xlu0 %2217
        %2219 = vrot.lane.b32.xlu0 %v2202, 32
        %v2220 = vpop.permute.xlu0 %2219
        %2225 = vrot.lane.b32.xlu0 %v2213, 64
        %v2226 = vpop.permute.xlu0 %2225
        %2227 = vrot.lane.b32.xlu0 %v2214, 64
        %v2228 = vpop.permute.xlu0 %2227
        %v2231 = vsel %vm1994, %v2207, %v2218
        %v2232 = vsel %vm1994, %v2208, %v2220
        %v2233 = vsel %vm1997, %v2231, %v2226
        %v2234 = vsel %vm1997, %v2232, %v2228
        %v2235 = vpack.c.bf16 %v2234, %v2233
        %v2236 = vld [vmem:[%s11] sm:$0xf]
        %v2237 = vld [vmem:[%s11 + $0x4] sm:$0xf]
        %v2238 = vld [vmem:[%s11 + $0x8] sm:$0xf]
        %v2239 = vld [vmem:[%s11 + $0xc] sm:$0xf]
        %v2240 = vld [vmem:[%s11 + $0x10] sm:$0xf]
        %v2241 = vld [vmem:[%s11 + $0x14] sm:$0xf]
        %v2242 = vld [vmem:[%s11 + $0x18] sm:$0xf]
        %v2243 = vld [vmem:[%s11 + $0x1c] sm:$0xf]
        %v2244 = vld [vmem:[%s11 + $0x20] sm:$0xf]
        %v2245 = vld [vmem:[%s11 + $0x24] sm:$0xf]
        %v2246 = vld [vmem:[%s11 + $0x28] sm:$0xf]
        %v2247 = vld [vmem:[%s11 + $0x2c] sm:$0xf]
        %v2248 = vperm.slane %v1706, 0
        %v2261 = vunpack.c.l.b16 %v2236
        %v2262 = vunpack.c.l.b16 %v2237
        %v2263 = vunpack.c.l.b16 %v2238
        %v2264 = vunpack.c.l.b16 %v2239
        %v2265 = vunpack.c.l.b16 %v2240
        %v2266 = vunpack.c.l.b16 %v2241
        %v2267 = vunpack.c.l.b16 %v2242
        %v2268 = vunpack.c.l.b16 %v2243
        %v2269 = vunpack.c.l.b16 %v2244
        %v2270 = vunpack.c.l.b16 %v2245
        %v2271 = vunpack.c.l.b16 %v2246
        %v2272 = vunpack.c.l.b16 %v2247
        %v2273 = vpack.c.b16 %v2262, %v2261
        %v2274 = vpack.c.b16 %v2264, %v2263
        %v2275 = vpack.c.b16 %v2266, %v2265
        %v2276 = vpack.c.b16 %v2268, %v2267
        %v2277 = vpack.c.b16 %v2270, %v2269
        %v2278 = vpack.c.b16 %v2272, %v2271
        %v2286 = vsel %vm2050, %v2235, 0
        %2288 = vmatpush.bf16.msra.mxu0 0
        %2289 = vmatpush.bf16.msra.mxu0 0
        %2290 = vmatpush.bf16.msra.mxu0 %v2278
        %2291 = vmatpush.bf16.msra.mxu0 %v2277
        %2292 = vmatpush.bf16.msra.mxu0 %v2276
        %2293 = vmatpush.bf16.msra.mxu0 %v2275
        %2294 = vmatpush.bf16.msra.mxu0 %v2274
        %2295 = vmatpush.bf16.msra.mxu0 %v2273
        %2296 = vmatmul.bf16.gmra.mxu0 %v2286
        %v2297 = vpop.f32.mrf.mxu0
        %v2298 = vadd.f32 %v2248, %v2297
        %v2299 = vpop.f32.mrf.mxu0
        %v2300 = vadd.f32 %v2248, %v2299
        %2301 = vdwg.mxu0
        %v2302 = vand.u32 %v849, 1
        %v2303 = vand.u32 %v850, 1
        %vm2304 = vcmp.eq.s32.totalorder %v2302, 0
        %vm2305 = vcmp.eq.s32.totalorder %v2303, 0
        %v2306 = vsel %vm2304, 1, 0
        %v2307 = vsel %vm2305, 1, 0
        %v2308 = vcvt.s32.f32 %v2306
        %v2309 = vcvt.s32.f32 %v2307
        %v2310 = vmul.f32 %v2298, %v2308
        %v2311 = vmul.f32 %v2300, %v2309
        %v2312 = vsel %vm1997, %v2310, 0.0
        %v2313 = vsel %vm1997, %v2311, 0.0
        %v2314 = vadd.f32 %v2312, %v2313
        %v2315 = vrot.slane %v2314, 4
        %v2316 = vadd.f32 %v2314, %v2315
        %v2317 = vrot.slane %v2316, 2
        %v2318 = vadd.f32 %v2316, %v2317
        %v2319 = vrot.slane %v2318, 1
        %v2320 = vadd.f32 %v2318, %v2319
        %v2321 = vmul.f32 %v2310, %v2310
        %v2322 = vmul.f32 %v2311, %v2311
        %v2323 = vsel %vm1997, %v2321, 0.0
        %v2324 = vsel %vm1997, %v2322, 0.0
        %v2325 = vadd.f32 %v2323, %v2324
        %v2326 = vrot.slane %v2325, 4
        %v2327 = vadd.f32 %v2325, %v2326
        %v2328 = vrot.slane %v2327, 2
        %v2329 = vadd.f32 %v2327, %v2328
        %v2330 = vrot.slane %v2329, 1
        %v2331 = vadd.f32 %v2329, %v2330
        %v2332 = vld [vmem:[%s23] sm:$0xff]
        %v2333 = vld [vmem:[%s23 + $0x8] sm:$0xff]
        %v2334 = vld [vmem:[%s23 + $0x10] sm:$0xff]
        %v2335 = vld [vmem:[%s23 + $0x18] sm:$0xff]
        %v2336 = vld [vmem:[%s23 + $0x20] sm:$0xff]
        %v2337 = vld [vmem:[%s23 + $0x28] sm:$0xff]
        %v2338 = vld [vmem:[%s23 + $0x30] sm:$0xff]
        %v2339 = vld [vmem:[%s23 + $0x38] sm:$0xff]
        %v2341 = vsel %vm1997, %v2320, 0
        %2343 = vmatpush.msra.mxu0 0.0
        %2344 = vmatpush.msra.mxu0 0.0
        %2345 = vmatpush.msra.mxu0 0.0
        %2346 = vmatpush.msra.mxu0 0.0
        %2347 = vmatpush.msra.mxu0 0.0
        %2348 = vmatpush.msra.mxu0 0.0
        %2349 = vmatpush.msra.mxu0 0.0
        %2350 = vmatpush.msra.mxu0 0.0
        %2351 = vmatpush.msra.mxu0 %v2339
        %2352 = vmatpush.msra.mxu0 %v2338
        %2353 = vmatpush.msra.mxu0 %v2337
        %2354 = vmatpush.msra.mxu0 %v2336
        %2355 = vmatpush.msra.mxu0 %v2335
        %2356 = vmatpush.msra.mxu0 %v2334
        %2357 = vmatpush.msra.mxu0 %v2333
        %2358 = vmatpush.msra.mxu0 %v2332
        %2359 = vmatmul.f32.gmra.mxu0 %v2341
        %v2360 = vpop.f32.mrf.mxu0
        %v2361 = vadd.f32 0.0, %v2360
        %2362 = vdwg.mxu0
        %v2364 = vsel %vm1997, %v2331, 0
        %2366 = vmatpush.msra.mxu0 0.0
        %2367 = vmatpush.msra.mxu0 0.0
        %2368 = vmatpush.msra.mxu0 0.0
        %2369 = vmatpush.msra.mxu0 0.0
        %2370 = vmatpush.msra.mxu0 0.0
        %2371 = vmatpush.msra.mxu0 0.0
        %2372 = vmatpush.msra.mxu0 0.0
        %2373 = vmatpush.msra.mxu0 0.0
        %2374 = vmatpush.msra.mxu0 %v2339
        %2375 = vmatpush.msra.mxu0 %v2338
        %2376 = vmatpush.msra.mxu0 %v2337
        %2377 = vmatpush.msra.mxu0 %v2336
        %2378 = vmatpush.msra.mxu0 %v2335
        %2379 = vmatpush.msra.mxu0 %v2334
        %2380 = vmatpush.msra.mxu0 %v2333
        %2381 = vmatpush.msra.mxu0 %v2332
        %2382 = vmatmul.f32.gmra.mxu0 %v2364
        %v2383 = vpop.f32.mrf.mxu0
        %v2384 = vadd.f32 0.0, %v2383
        %2385 = vdwg.mxu0
        %v2386 = vmul.f32 %v2361, %v2361
        %v2387 = vsub.f32 %v2384, %v2386
        %v2388 = vmax.f32 %v2387, 0.0
        %v2389 = vadd.f32 %v2388, 1e-05
        %v2390 = vrsqrt.pop %v2389
        %v2391 = vmul.f32 %v2390, %v2389
        %v2392 = vmul.f32 %v2391, %v2390
        %v2393 = vmul.f32 0.5, %v2392
        %v2394 = vsub.f32 1.5, %v2393
        %v2395 = vmul.f32 %v2390, %v2394
        %vm2396 = vweird.f32 %v2389
        %vm2397 = vweird.f32 %v2390
        %vm2398 = vmor %vm2396, %vm2397
        %v2399 = vsel %vm2398, %v2390, %v2395
        %v2401 = vperm.slane %v1948, 1
        %v2403 = vmul.f32 %v2399, %v2401
        %v2404 = vmul.f32 %v2361, %v2403
        %v2406 = vrot.slane %v1949, 1
        %v2408 = vsub.f32 %v2406, %v2404
        %v2409 = vperm.slane %v2403, 0
        %v2410 = vmul.f32 %v2298, %v2409
        %v2411 = vmul.f32 %v2300, %v2409
        %v2413 = vperm.slane %v2408, 0
        %v2415 = vadd.f32 %v2410, %v2413
        %v2416 = vadd.f32 %v2411, %v2413
        %v2417 = vxor.u32 %v2415, 2147483648
        %v2418 = vxor.u32 %v2416, 2147483648
        %v2419 = vmul.f32 %v2417, 1.442695
        %v2420 = vpow.pop %v2419
        %v2421 = vmul.f32 %v2418, 1.442695
        %v2422 = vpow.pop %v2421
        %v2423 = vadd.f32 %v2420, 1.0
        %v2424 = vadd.f32 %v2422, 1.0
        %v2425 = vrcp.pop %v2423
        %v2426 = vmul.f32 %v2423, %v2425
        %v2427 = vsub.f32 1.0, %v2426
        %v2428 = vmul.f32 %v2425, %v2427
        %v2429 = vadd.f32 %v2425, %v2428
        %vm2430 = vweird.f32 %v2423
        %vm2431 = vweird.f32 %v2425
        %vm2432 = vmor %vm2430, %vm2431
        %v2433 = vsel %vm2432, %v2425, %v2429
        %v2434 = vand.u32 2147483647, %v2423
        %vm2435 = vcmp.eq.f32.partialorder %v2434, 8.507059e+37
        %v2436 = vand.u32 %v2423, 2147483648
        %v2437 = vor.u32 1.1754944e-38, %v2436
        %v2438 = vsel %vm2435, %v2437, %v2433
        %v2439 = vmul.f32 1.0, %v2438
        %v2440 = vrcp.pop %v2424
        %v2441 = vmul.f32 %v2424, %v2440
        %v2442 = vsub.f32 1.0, %v2441
        %v2443 = vmul.f32 %v2440, %v2442
        %v2444 = vadd.f32 %v2440, %v2443
        %vm2445 = vweird.f32 %v2424
        %vm2446 = vweird.f32 %v2440
        %vm2447 = vmor %vm2445, %vm2446
        %v2448 = vsel %vm2447, %v2440, %v2444
        %v2449 = vand.u32 2147483647, %v2424
        %vm2450 = vcmp.eq.f32.partialorder %v2449, 8.507059e+37
        %v2451 = vand.u32 %v2424, 2147483648
        %v2452 = vor.u32 1.1754944e-38, %v2451
        %v2453 = vsel %vm2450, %v2452, %v2448
        %v2454 = vmul.f32 1.0, %v2453
        %v2455 = vmul.f32 %v2415, %v2439
        %v2456 = vmul.f32 %v2416, %v2454
        %v2457 = vrot.slane %v2455, 6
        %v2458 = vrot.slane %v2456, 6
        %vm2459 = vcmp.lt.s32.totalorder %v849, 2
        %v2460 = vsel %vm2459, %v2457, %v2458
        %v2461 = vsel %vm2459, %v2458, %v2457
        %vm2462 = vcmp.ge.s32.totalorder %v849, 2
        %vm2463 = vcmp.ge.s32.totalorder %v850, 2
        %v2464 = vsel %vm2462, 1, 0
        %v2465 = vsel %vm2463, 1, 0
        %v2466 = vcvt.s32.f32 %v2464
        %v2467 = vcvt.s32.f32 %v2465
        %v2468 = vmul.f32 %v2461, %v2466
        %v2469 = vmul.f32 %v2460, %v2467
        %v2470 = vrot.slane %v2455, 2
        %v2471 = vrot.slane %v2456, 2
        %vm2472 = vcmp.lt.s32.totalorder %v849, 6
        %v2473 = vsel %vm2472, %v2470, %v2471
        %v2474 = vsel %vm2472, %v2471, %v2470
        %vm2475 = vcmp.lt.s32.totalorder %v849, 14
        %vm2476 = vcmp.lt.s32.totalorder %v850, 14
        %v2477 = vsel %vm2475, 1, 0
        %v2478 = vsel %vm2476, 1, 0
        %v2479 = vcvt.s32.f32 %v2477
        %v2480 = vcvt.s32.f32 %v2478
        %v2481 = vmul.f32 %v2473, %v2479
        %v2482 = vmul.f32 %v2474, %v2480
        %2485 = vrot.lane.b32.xlu0 %v2455, 64
        %v2486 = vpop.permute.xlu0 %2485
        %2487 = vrot.lane.b32.xlu0 %v2456, 64
        %v2488 = vpop.permute.xlu0 %2487
        %v2491 = vsel %vm1997, %v2468, %v2486
        %v2492 = vsel %vm1997, %v2469, %v2488
        %v2493 = vpack.c.bf16 %v2492, %v2491
        %v2494 = vpack.c.bf16 %v2482, %v2481
        %v2495 = vld [vmem:[%s12] sm:$0xf]
        %v2496 = vld [vmem:[%s12 + $0x4] sm:$0xf]
        %v2497 = vld [vmem:[%s12 + $0x8] sm:$0xf]
        %v2498 = vld [vmem:[%s12 + $0xc] sm:$0xf]
        %v2499 = vld [vmem:[%s12 + $0x10] sm:$0xf]
        %v2500 = vld [vmem:[%s12 + $0x14] sm:$0xf]
        %v2501 = vld [vmem:[%s12 + $0x18] sm:$0xf]
        %v2502 = vld [vmem:[%s12 + $0x1c] sm:$0xf]
        %v2503 = vld [vmem:[%s12 + $0x20] sm:$0xf]
        %v2504 = vld [vmem:[%s12 + $0x24] sm:$0xf]
        %v2505 = vld [vmem:[%s12 + $0x28] sm:$0xf]
        %v2506 = vld [vmem:[%s12 + $0x2c] sm:$0xf]
        %v2507 = vld [vmem:[%s12 + $0x30] sm:$0xf]
        %v2508 = vld [vmem:[%s12 + $0x34] sm:$0xf]
        %v2509 = vld [vmem:[%s12 + $0x38] sm:$0xf]
        %v2510 = vld [vmem:[%s12 + $0x3c] sm:$0xf]
        %v2511 = vld [vmem:[%s12 + $0x40] sm:$0xf]
        %v2512 = vld [vmem:[%s12 + $0x44] sm:$0xf]
        %v2513 = vld [vmem:[%s12 + $0x48] sm:$0xf]
        %v2514 = vld [vmem:[%s12 + $0x4c] sm:$0xf]
        %v2515 = vld [vmem:[%s12 + $0x50] sm:$0xf]
        %v2516 = vld [vmem:[%s12 + $0x54] sm:$0xf]
        %v2517 = vld [vmem:[%s12 + $0x58] sm:$0xf]
        %v2518 = vld [vmem:[%s12 + $0x5c] sm:$0xf]
        %v2519 = vperm.slane %v1746, 0
        %v2544 = vunpack.c.l.b16 %v2495
        %v2545 = vunpack.c.l.b16 %v2496
        %v2546 = vunpack.c.l.b16 %v2497
        %v2547 = vunpack.c.l.b16 %v2498
        %v2548 = vunpack.c.l.b16 %v2499
        %v2549 = vunpack.c.l.b16 %v2500
        %v2550 = vunpack.c.l.b16 %v2501
        %v2551 = vunpack.c.l.b16 %v2502
        %v2552 = vunpack.c.l.b16 %v2503
        %v2553 = vunpack.c.l.b16 %v2504
        %v2554 = vunpack.c.l.b16 %v2505
        %v2555 = vunpack.c.l.b16 %v2506
        %v2556 = vunpack.c.l.b16 %v2507
        %v2557 = vunpack.c.l.b16 %v2508
        %v2558 = vunpack.c.l.b16 %v2509
        %v2559 = vunpack.c.l.b16 %v2510
        %v2560 = vunpack.c.l.b16 %v2511
        %v2561 = vunpack.c.l.b16 %v2512
        %v2562 = vunpack.c.l.b16 %v2513
        %v2563 = vunpack.c.l.b16 %v2514
        %v2564 = vunpack.c.l.b16 %v2515
        %v2565 = vunpack.c.l.b16 %v2516
        %v2566 = vunpack.c.l.b16 %v2517
        %v2567 = vunpack.c.l.b16 %v2518
        %v2568 = vpack.c.b16 %v2545, %v2544
        %v2569 = vpack.c.b16 %v2547, %v2546
        %v2570 = vpack.c.b16 %v2549, %v2548
        %v2571 = vpack.c.b16 %v2551, %v2550
        %v2572 = vpack.c.b16 %v2553, %v2552
        %v2573 = vpack.c.b16 %v2555, %v2554
        %v2574 = vpack.c.b16 %v2557, %v2556
        %v2575 = vpack.c.b16 %v2559, %v2558
        %v2576 = vpack.c.b16 %v2561, %v2560
        %v2577 = vpack.c.b16 %v2563, %v2562
        %v2578 = vpack.c.b16 %v2565, %v2564
        %v2579 = vpack.c.b16 %v2567, %v2566
        %v2593 = vsel %vm1997, %v2494, 0
        %2595 = vmatpush.bf16.msra.mxu0 %v2575
        %2596 = vmatpush.bf16.msra.mxu0 %v2574
        %2597 = vmatpush.bf16.msra.mxu0 %v2573
        %2598 = vmatpush.bf16.msra.mxu0 %v2572
        %2599 = vmatpush.bf16.msra.mxu0 %v2571
        %2600 = vmatpush.bf16.msra.mxu0 %v2570
        %2601 = vmatpush.bf16.msra.mxu0 %v2569
        %2602 = vmatpush.bf16.msra.mxu0 %v2568
        %2603 = vmatmul.bf16.gmra.mxu0 %v2493
        %v2604 = vpop.f32.mrf.mxu0
        %v2605 = vadd.f32 %v2519, %v2604
        %v2606 = vpop.f32.mrf.mxu0
        %v2607 = vadd.f32 %v2519, %v2606
        %2608 = vdwg.mxu0
        %2609 = vmatpush.bf16.msra.mxu0 0
        %2610 = vmatpush.bf16.msra.mxu0 0
        %2611 = vmatpush.bf16.msra.mxu0 0
        %2612 = vmatpush.bf16.msra.mxu0 0
        %2613 = vmatpush.bf16.msra.mxu0 %v2579
        %2614 = vmatpush.bf16.msra.mxu0 %v2578
        %2615 = vmatpush.bf16.msra.mxu0 %v2577
        %2616 = vmatpush.bf16.msra.mxu0 %v2576
        %2617 = vmatmul.bf16.gmra.mxu0 %v2593
        %v2618 = vpop.f32.mrf.mxu0
        %v2619 = vadd.f32 %v2605, %v2618
        %v2620 = vpop.f32.mrf.mxu0
        %v2621 = vadd.f32 %v2607, %v2620
        %2622 = vdwg.mxu0
        %v2623 = vand.u32 %v849, 3
        %v2624 = vand.u32 %v850, 3
        %vm2625 = vcmp.eq.s32.totalorder %v2623, 0
        %vm2626 = vcmp.eq.s32.totalorder %v2624, 0
        %v2627 = vsel %vm2625, 1, 0
        %v2628 = vsel %vm2626, 1, 0
        %v2629 = vcvt.s32.f32 %v2627
        %v2630 = vcvt.s32.f32 %v2628
        %v2631 = vmul.f32 %v2619, %v2629
        %v2632 = vmul.f32 %v2621, %v2630
        %v2633 = vadd.f32 %v2631, %v2632
        %v2634 = vrot.slane %v2633, 4
        %v2635 = vadd.f32 %v2633, %v2634
        %v2636 = vrot.slane %v2635, 2
        %v2637 = vadd.f32 %v2635, %v2636
        %v2638 = vrot.slane %v2637, 1
        %v2639 = vadd.f32 %v2637, %v2638
        %v2640 = vmul.f32 %v2631, %v2631
        %v2641 = vmul.f32 %v2632, %v2632
        %v2642 = vadd.f32 %v2640, %v2641
        %v2643 = vrot.slane %v2642, 4
        %v2644 = vadd.f32 %v2642, %v2643
        %v2645 = vrot.slane %v2644, 2
        %v2646 = vadd.f32 %v2644, %v2645
        %v2647 = vrot.slane %v2646, 1
        %v2648 = vadd.f32 %v2646, %v2647
        %v2649 = vld [vmem:[%s24] sm:$0xff]
        %v2650 = vld [vmem:[%s24 + $0x8] sm:$0xff]
        %v2651 = vld [vmem:[%s24 + $0x10] sm:$0xff]
        %v2652 = vld [vmem:[%s24 + $0x18] sm:$0xff]
        %v2653 = vld [vmem:[%s24 + $0x20] sm:$0xff]
        %v2654 = vld [vmem:[%s24 + $0x28] sm:$0xff]
        %v2655 = vld [vmem:[%s24 + $0x30] sm:$0xff]
        %v2656 = vld [vmem:[%s24 + $0x38] sm:$0xff]
        %v2657 = vld [vmem:[%s24 + $0x40] sm:$0xff]
        %v2658 = vld [vmem:[%s24 + $0x48] sm:$0xff]
        %v2659 = vld [vmem:[%s24 + $0x50] sm:$0xff]
        %v2660 = vld [vmem:[%s24 + $0x58] sm:$0xff]
        %v2661 = vld [vmem:[%s24 + $0x60] sm:$0xff]
        %v2662 = vld [vmem:[%s24 + $0x68] sm:$0xff]
        %v2663 = vld [vmem:[%s24 + $0x70] sm:$0xff]
        %v2664 = vld [vmem:[%s24 + $0x78] sm:$0xff]
        %2665 = vmatpush.msra.mxu0 %v2664
        %2666 = vmatpush.msra.mxu0 %v2663
        %2667 = vmatpush.msra.mxu0 %v2662
        %2668 = vmatpush.msra.mxu0 %v2661
        %2669 = vmatpush.msra.mxu0 %v2660
        %2670 = vmatpush.msra.mxu0 %v2659
        %2671 = vmatpush.msra.mxu0 %v2658
        %2672 = vmatpush.msra.mxu0 %v2657
        %2673 = vmatpush.msra.mxu0 %v2656
        %2674 = vmatpush.msra.mxu0 %v2655
        %2675 = vmatpush.msra.mxu0 %v2654
        %2676 = vmatpush.msra.mxu0 %v2653
        %2677 = vmatpush.msra.mxu0 %v2652
        %2678 = vmatpush.msra.mxu0 %v2651
        %2679 = vmatpush.msra.mxu0 %v2650
        %2680 = vmatpush.msra.mxu0 %v2649
        %2681 = vmatmul.f32.gmra.mxu0 %v2639
        %v2682 = vpop.f32.mrf.mxu0
        %v2683 = vadd.f32 0.0, %v2682
        %2684 = vdwg.mxu0
        %2685 = vmatpush.msra.mxu0 %v2664
        %2686 = vmatpush.msra.mxu0 %v2663
        %2687 = vmatpush.msra.mxu0 %v2662
        %2688 = vmatpush.msra.mxu0 %v2661
        %2689 = vmatpush.msra.mxu0 %v2660
        %2690 = vmatpush.msra.mxu0 %v2659
        %2691 = vmatpush.msra.mxu0 %v2658
        %2692 = vmatpush.msra.mxu0 %v2657
        %2693 = vmatpush.msra.mxu0 %v2656
        %2694 = vmatpush.msra.mxu0 %v2655
        %2695 = vmatpush.msra.mxu0 %v2654
        %2696 = vmatpush.msra.mxu0 %v2653
        %2697 = vmatpush.msra.mxu0 %v2652
        %2698 = vmatpush.msra.mxu0 %v2651
        %2699 = vmatpush.msra.mxu0 %v2650
        %2700 = vmatpush.msra.mxu0 %v2649
        %2701 = vmatmul.f32.gmra.mxu0 %v2648
        %v2702 = vpop.f32.mrf.mxu0
        %v2703 = vadd.f32 0.0, %v2702
        %2704 = vdwg.mxu0
        %v2705 = vmul.f32 %v2683, %v2683
        %v2706 = vsub.f32 %v2703, %v2705
        %v2707 = vmax.f32 %v2706, 0.0
        %v2708 = vadd.f32 %v2707, 1e-05
        %v2709 = vrsqrt.pop %v2708
        %v2710 = vmul.f32 %v2709, %v2708
        %v2711 = vmul.f32 %v2710, %v2709
        %v2712 = vmul.f32 0.5, %v2711
        %v2713 = vsub.f32 1.5, %v2712
        %v2714 = vmul.f32 %v2709, %v2713
        %vm2715 = vweird.f32 %v2708
        %vm2716 = vweird.f32 %v2709
        %vm2717 = vmor %vm2715, %vm2716
        %v2718 = vsel %vm2717, %v2709, %v2714
        %v2719 = vperm.slane %v1948, 2
        %v2721 = vmul.f32 %v2718, %v2719
        %v2722 = vmul.f32 %v2683, %v2721
        %v2723 = vrot.slane %v1949, 2
        %v2725 = vsub.f32 %v2723, %v2722
        %v2726 = vperm.slane %v2721, 0
        %v2727 = vmul.f32 %v2619, %v2726
        %v2728 = vmul.f32 %v2621, %v2726
        %v2730 = vperm.slane %v2725, 0
        %v2732 = vadd.f32 %v2727, %v2730
        %v2733 = vadd.f32 %v2728, %v2730
        %v2734 = vxor.u32 %v2732, 2147483648
        %v2735 = vxor.u32 %v2733, 2147483648
        %v2736 = vmul.f32 %v2734, 1.442695
        %v2737 = vpow.pop %v2736
        %v2738 = vmul.f32 %v2735, 1.442695
        %v2739 = vpow.pop %v2738
        %v2740 = vadd.f32 %v2737, 1.0
        %v2741 = vadd.f32 %v2739, 1.0
        %v2742 = vrcp.pop %v2740
        %v2743 = vmul.f32 %v2740, %v2742
        %v2744 = vsub.f32 1.0, %v2743
        %v2745 = vmul.f32 %v2742, %v2744
        %v2746 = vadd.f32 %v2742, %v2745
        %vm2747 = vweird.f32 %v2740
        %vm2748 = vweird.f32 %v2742
        %vm2749 = vmor %vm2747, %vm2748
        %v2750 = vsel %vm2749, %v2742, %v2746
        %v2751 = vand.u32 2147483647, %v2740
        %vm2752 = vcmp.eq.f32.partialorder %v2751, 8.507059e+37
        %v2753 = vand.u32 %v2740, 2147483648
        %v2754 = vor.u32 1.1754944e-38, %v2753
        %v2755 = vsel %vm2752, %v2754, %v2750
        %v2756 = vmul.f32 1.0, %v2755
        %v2757 = vrcp.pop %v2741
        %v2758 = vmul.f32 %v2741, %v2757
        %v2759 = vsub.f32 1.0, %v2758
        %v2760 = vmul.f32 %v2757, %v2759
        %v2761 = vadd.f32 %v2757, %v2760
        %vm2762 = vweird.f32 %v2741
        %vm2763 = vweird.f32 %v2757
        %vm2764 = vmor %vm2762, %vm2763
        %v2765 = vsel %vm2764, %v2757, %v2761
        %v2766 = vand.u32 2147483647, %v2741
        %vm2767 = vcmp.eq.f32.partialorder %v2766, 8.507059e+37
        %v2768 = vand.u32 %v2741, 2147483648
        %v2769 = vor.u32 1.1754944e-38, %v2768
        %v2770 = vsel %vm2767, %v2769, %v2765
        %v2771 = vmul.f32 1.0, %v2770
        %v2772 = vmul.f32 %v2732, %v2756
        %v2773 = vmul.f32 %v2733, %v2771
        %v2774 = vrot.slane %v2772, 4
        %v2775 = vrot.slane %v2773, 4
        %vm2776 = vcmp.lt.s32.totalorder %v849, 4
        %v2777 = vsel %vm2776, %v2774, %v2775
        %v2778 = vsel %vm2776, %v2775, %v2774
        %vm2779 = vcmp.ge.s32.totalorder %v849, 4
        %vm2780 = vcmp.ge.s32.totalorder %v850, 4
        %v2781 = vsel %vm2779, 1, 0
        %v2782 = vsel %vm2780, 1, 0
        %v2783 = vcvt.s32.f32 %v2781
        %v2784 = vcvt.s32.f32 %v2782
        %v2785 = vmul.f32 %v2778, %v2783
        %v2786 = vmul.f32 %v2777, %v2784
        %vm2787 = vcmp.lt.s32.totalorder %v849, 12
        %vm2788 = vcmp.lt.s32.totalorder %v850, 12
        %v2789 = vsel %vm2787, 1, 0
        %v2790 = vsel %vm2788, 1, 0
        %v2791 = vcvt.s32.f32 %v2789
        %v2792 = vcvt.s32.f32 %v2790
        %v2793 = vmul.f32 %v2777, %v2791
        %v2794 = vmul.f32 %v2778, %v2792
        %v2795 = vpack.c.bf16 %v2786, %v2785
        %v2796 = vpack.c.bf16 %v2773, %v2772
        %v2797 = vpack.c.bf16 %v2794, %v2793
        %v2798 = vld [vmem:[%s13] sm:$0xff]
        %v2799 = vld [vmem:[%s13 + $0x8] sm:$0xff]
        %v2800 = vld [vmem:[%s13 + $0x10] sm:$0xff]
        %v2801 = vld [vmem:[%s13 + $0x18] sm:$0xff]
        %v2802 = vld [vmem:[%s13 + $0x20] sm:$0xff]
        %v2803 = vld [vmem:[%s13 + $0x28] sm:$0xff]
        %v2804 = vld [vmem:[%s13 + $0x30] sm:$0xff]
        %v2805 = vld [vmem:[%s13 + $0x38] sm:$0xff]
        %v2806 = vld [vmem:[%s13 + $0x40] sm:$0xff]
        %v2807 = vld [vmem:[%s13 + $0x48] sm:$0xff]
        %v2808 = vld [vmem:[%s13 + $0x50] sm:$0xff]
        %v2809 = vld [vmem:[%s13 + $0x58] sm:$0xff]
        %v2810 = vld [vmem:[%s13 + $0x60] sm:$0xff]
        %v2811 = vld [vmem:[%s13 + $0x68] sm:$0xff]
        %v2812 = vld [vmem:[%s13 + $0x70] sm:$0xff]
        %v2813 = vld [vmem:[%s13 + $0x78] sm:$0xff]
        %v2814 = vld [vmem:[%s13 + $0x80] sm:$0xff]
        %v2815 = vld [vmem:[%s13 + $0x88] sm:$0xff]
        %v2816 = vld [vmem:[%s13 + $0x90] sm:$0xff]
        %v2817 = vld [vmem:[%s13 + $0x98] sm:$0xff]
        %v2818 = vld [vmem:[%s13 + $0xa0] sm:$0xff]
        %v2819 = vld [vmem:[%s13 + $0xa8] sm:$0xff]
        %v2820 = vld [vmem:[%s13 + $0xb0] sm:$0xff]
        %v2821 = vld [vmem:[%s13 + $0xb8] sm:$0xff]
        %v2822 = vld [vmem:[%s13 + $0xc0] sm:$0xff]
        %v2823 = vld [vmem:[%s13 + $0xc8] sm:$0xff]
        %v2824 = vld [vmem:[%s13 + $0xd0] sm:$0xff]
        %v2825 = vld [vmem:[%s13 + $0xd8] sm:$0xff]
        %v2826 = vld [vmem:[%s13 + $0xe0] sm:$0xff]
        %v2827 = vld [vmem:[%s13 + $0xe8] sm:$0xff]
        %v2828 = vld [vmem:[%s13 + $0xf0] sm:$0xff]
        %v2829 = vld [vmem:[%s13 + $0xf8] sm:$0xff]
        %v2830 = vld [vmem:[%s13 + $0x100] sm:$0xff]
        %v2831 = vld [vmem:[%s13 + $0x108] sm:$0xff]
        %v2832 = vld [vmem:[%s13 + $0x110] sm:$0xff]
        %v2833 = vld [vmem:[%s13 + $0x118] sm:$0xff]
        %v2834 = vld [vmem:[%s13 + $0x120] sm:$0xff]
        %v2835 = vld [vmem:[%s13 + $0x128] sm:$0xff]
        %v2836 = vld [vmem:[%s13 + $0x130] sm:$0xff]
        %v2837 = vld [vmem:[%s13 + $0x138] sm:$0xff]
        %v2838 = vld [vmem:[%s13 + $0x140] sm:$0xff]
        %v2839 = vld [vmem:[%s13 + $0x148] sm:$0xff]
        %v2840 = vld [vmem:[%s13 + $0x150] sm:$0xff]
        %v2841 = vld [vmem:[%s13 + $0x158] sm:$0xff]
        %v2842 = vld [vmem:[%s13 + $0x160] sm:$0xff]
        %v2843 = vld [vmem:[%s13 + $0x168] sm:$0xff]
        %v2844 = vld [vmem:[%s13 + $0x170] sm:$0xff]
        %v2845 = vld [vmem:[%s13 + $0x178] sm:$0xff]
        %v2846 = vperm.slane %v1786, 0
        %v2847 = vperm.slane %v1826, 0
        %v2896 = vunpack.c.l.b16 %v2798
        %v2897 = vunpack.c.h.b16 %v2798
        %v2898 = vunpack.c.l.b16 %v2799
        %v2899 = vunpack.c.h.b16 %v2799
        %v2900 = vunpack.c.l.b16 %v2800
        %v2901 = vunpack.c.h.b16 %v2800
        %v2902 = vunpack.c.l.b16 %v2801
        %v2903 = vunpack.c.h.b16 %v2801
        %v2904 = vunpack.c.l.b16 %v2802
        %v2905 = vunpack.c.h.b16 %v2802
        %v2906 = vunpack.c.l.b16 %v2803
        %v2907 = vunpack.c.h.b16 %v2803
        %v2908 = vunpack.c.l.b16 %v2804
        %v2909 = vunpack.c.h.b16 %v2804
        %v2910 = vunpack.c.l.b16 %v2805
        %v2911 = vunpack.c.h.b16 %v2805
        %v2912 = vunpack.c.l.b16 %v2806
        %v2913 = vunpack.c.h.b16 %v2806
        %v2914 = vunpack.c.l.b16 %v2807
        %v2915 = vunpack.c.h.b16 %v2807
        %v2916 = vunpack.c.l.b16 %v2808
        %v2917 = vunpack.c.h.b16 %v2808
        %v2918 = vunpack.c.l.b16 %v2809
        %v2919 = vunpack.c.h.b16 %v2809
        %v2920 = vunpack.c.l.b16 %v2810
        %v2921 = vunpack.c.h.b16 %v2810
        %v2922 = vunpack.c.l.b16 %v2811
        %v2923 = vunpack.c.h.b16 %v2811
        %v2924 = vunpack.c.l.b16 %v2812
        %v2925 = vunpack.c.h.b16 %v2812
        %v2926 = vunpack.c.l.b16 %v2813
        %v2927 = vunpack.c.h.b16 %v2813
        %v2928 = vunpack.c.l.b16 %v2814
        %v2929 = vunpack.c.h.b16 %v2814
        %v2930 = vunpack.c.l.b16 %v2815
        %v2931 = vunpack.c.h.b16 %v2815
        %v2932 = vunpack.c.l.b16 %v2816
        %v2933 = vunpack.c.h.b16 %v2816
        %v2934 = vunpack.c.l.b16 %v2817
        %v2935 = vunpack.c.h.b16 %v2817
        %v2936 = vunpack.c.l.b16 %v2818
        %v2937 = vunpack.c.h.b16 %v2818
        %v2938 = vunpack.c.l.b16 %v2819
        %v2939 = vunpack.c.h.b16 %v2819
        %v2940 = vunpack.c.l.b16 %v2820
        %v2941 = vunpack.c.h.b16 %v2820
        %v2942 = vunpack.c.l.b16 %v2821
        %v2943 = vunpack.c.h.b16 %v2821
        %v2944 = vunpack.c.l.b16 %v2822
        %v2945 = vunpack.c.h.b16 %v2822
        %v2946 = vunpack.c.l.b16 %v2823
        %v2947 = vunpack.c.h.b16 %v2823
        %v2948 = vunpack.c.l.b16 %v2824
        %v2949 = vunpack.c.h.b16 %v2824
        %v2950 = vunpack.c.l.b16 %v2825
        %v2951 = vunpack.c.h.b16 %v2825
        %v2952 = vunpack.c.l.b16 %v2826
        %v2953 = vunpack.c.h.b16 %v2826
        %v2954 = vunpack.c.l.b16 %v2827
        %v2955 = vunpack.c.h.b16 %v2827
        %v2956 = vunpack.c.l.b16 %v2828
        %v2957 = vunpack.c.h.b16 %v2828
        %v2958 = vunpack.c.l.b16 %v2829
        %v2959 = vunpack.c.h.b16 %v2829
        %v2960 = vunpack.c.l.b16 %v2830
        %v2961 = vunpack.c.h.b16 %v2830
        %v2962 = vunpack.c.l.b16 %v2831
        %v2963 = vunpack.c.h.b16 %v2831
        %v2964 = vunpack.c.l.b16 %v2832
        %v2965 = vunpack.c.h.b16 %v2832
        %v2966 = vunpack.c.l.b16 %v2833
        %v2967 = vunpack.c.h.b16 %v2833
        %v2968 = vunpack.c.l.b16 %v2834
        %v2969 = vunpack.c.h.b16 %v2834
        %v2970 = vunpack.c.l.b16 %v2835
        %v2971 = vunpack.c.h.b16 %v2835
        %v2972 = vunpack.c.l.b16 %v2836
        %v2973 = vunpack.c.h.b16 %v2836
        %v2974 = vunpack.c.l.b16 %v2837
        %v2975 = vunpack.c.h.b16 %v2837
        %v2976 = vunpack.c.l.b16 %v2838
        %v2977 = vunpack.c.h.b16 %v2838
        %v2978 = vunpack.c.l.b16 %v2839
        %v2979 = vunpack.c.h.b16 %v2839
        %v2980 = vunpack.c.l.b16 %v2840
        %v2981 = vunpack.c.h.b16 %v2840
        %v2982 = vunpack.c.l.b16 %v2841
        %v2983 = vunpack.c.h.b16 %v2841
        %v2984 = vunpack.c.l.b16 %v2842
        %v2985 = vunpack.c.h.b16 %v2842
        %v2986 = vunpack.c.l.b16 %v2843
        %v2987 = vunpack.c.h.b16 %v2843
        %v2988 = vunpack.c.l.b16 %v2844
        %v2989 = vunpack.c.h.b16 %v2844
        %v2990 = vunpack.c.l.b16 %v2845
        %v2991 = vunpack.c.h.b16 %v2845
        %v2992 = vpack.c.b16 %v2898, %v2896
        %v2993 = vpack.c.b16 %v2899, %v2897
        %v2994 = vpack.c.b16 %v2902, %v2900
        %v2995 = vpack.c.b16 %v2903, %v2901
        %v2996 = vpack.c.b16 %v2906, %v2904
        %v2997 = vpack.c.b16 %v2907, %v2905
        %v2998 = vpack.c.b16 %v2910, %v2908
        %v2999 = vpack.c.b16 %v2911, %v2909
        %v3000 = vpack.c.b16 %v2914, %v2912
        %v3001 = vpack.c.b16 %v2915, %v2913
        %v3002 = vpack.c.b16 %v2918, %v2916
        %v3003 = vpack.c.b16 %v2919, %v2917
        %v3004 = vpack.c.b16 %v2922, %v2920
        %v3005 = vpack.c.b16 %v2923, %v2921
        %v3006 = vpack.c.b16 %v2926, %v2924
        %v3007 = vpack.c.b16 %v2927, %v2925
        %v3008 = vpack.c.b16 %v2930, %v2928
        %v3009 = vpack.c.b16 %v2931, %v2929
        %v3010 = vpack.c.b16 %v2934, %v2932
        %v3011 = vpack.c.b16 %v2935, %v2933
        %v3012 = vpack.c.b16 %v2938, %v2936
        %v3013 = vpack.c.b16 %v2939, %v2937
        %v3014 = vpack.c.b16 %v2942, %v2940
        %v3015 = vpack.c.b16 %v2943, %v2941
        %v3016 = vpack.c.b16 %v2946, %v2944
        %v3017 = vpack.c.b16 %v2947, %v2945
        %v3018 = vpack.c.b16 %v2950, %v2948
        %v3019 = vpack.c.b16 %v2951, %v2949
        %v3020 = vpack.c.b16 %v2954, %v2952
        %v3021 = vpack.c.b16 %v2955, %v2953
        %v3022 = vpack.c.b16 %v2958, %v2956
        %v3023 = vpack.c.b16 %v2959, %v2957
        %v3024 = vpack.c.b16 %v2962, %v2960
        %v3025 = vpack.c.b16 %v2963, %v2961
        %v3026 = vpack.c.b16 %v2966, %v2964
        %v3027 = vpack.c.b16 %v2967, %v2965
        %v3028 = vpack.c.b16 %v2970, %v2968
        %v3029 = vpack.c.b16 %v2971, %v2969
        %v3030 = vpack.c.b16 %v2974, %v2972
        %v3031 = vpack.c.b16 %v2975, %v2973
        %v3032 = vpack.c.b16 %v2978, %v2976
        %v3033 = vpack.c.b16 %v2979, %v2977
        %v3034 = vpack.c.b16 %v2982, %v2980
        %v3035 = vpack.c.b16 %v2983, %v2981
        %v3036 = vpack.c.b16 %v2986, %v2984
        %v3037 = vpack.c.b16 %v2987, %v2985
        %v3038 = vpack.c.b16 %v2990, %v2988
        %v3039 = vpack.c.b16 %v2991, %v2989
        %3088 = vmatpush.bf16.msra.mxu0 %v3006
        %3089 = vmatpush.bf16.msra.mxu0 %v3004
        %3090 = vmatpush.bf16.msra.mxu0 %v3002
        %3091 = vmatpush.bf16.msra.mxu0 %v3000
        %3092 = vmatpush.bf16.msra.mxu0 %v2998
        %3093 = vmatpush.bf16.msra.mxu0 %v2996
        %3094 = vmatpush.bf16.msra.mxu0 %v2994
        %3095 = vmatpush.bf16.msra.mxu0 %v2992
        %3096 = vmatmul.bf16.gmra.mxu0 %v2795
        %v3097 = vpop.f32.mrf.mxu0
        %v3098 = vadd.f32 %v2846, %v3097
        %v3099 = vpop.f32.mrf.mxu0
        %v3100 = vadd.f32 %v2846, %v3099
        %3101 = vdwg.mxu0
        %3102 = vmatpush.bf16.msra.mxu0 %v3022
        %3103 = vmatpush.bf16.msra.mxu0 %v3020
        %3104 = vmatpush.bf16.msra.mxu0 %v3018
        %3105 = vmatpush.bf16.msra.mxu0 %v3016
        %3106 = vmatpush.bf16.msra.mxu0 %v3014
        %3107 = vmatpush.bf16.msra.mxu0 %v3012
        %3108 = vmatpush.bf16.msra.mxu0 %v3010
        %3109 = vmatpush.bf16.msra.mxu0 %v3008
        %3110 = vmatmul.bf16.gmra.mxu0 %v2796
        %v3111 = vpop.f32.mrf.mxu0
        %v3112 = vadd.f32 %v3098, %v3111
        %v3113 = vpop.f32.mrf.mxu0
        %v3114 = vadd.f32 %v3100, %v3113
        %3115 = vdwg.mxu0
        %3116 = vmatpush.bf16.msra.mxu0 %v3038
        %3117 = vmatpush.bf16.msra.mxu0 %v3036
        %3118 = vmatpush.bf16.msra.mxu0 %v3034
        %3119 = vmatpush.bf16.msra.mxu0 %v3032
        %3120 = vmatpush.bf16.msra.mxu0 %v3030
        %3121 = vmatpush.bf16.msra.mxu0 %v3028
        %3122 = vmatpush.bf16.msra.mxu0 %v3026
        %3123 = vmatpush.bf16.msra.mxu0 %v3024
        %3124 = vmatmul.bf16.gmra.mxu0 %v2797
        %v3125 = vpop.f32.mrf.mxu0
        %v3126 = vadd.f32 %v3112, %v3125
        %v3127 = vpop.f32.mrf.mxu0
        %v3128 = vadd.f32 %v3114, %v3127
        %3129 = vdwg.mxu0
        %3130 = vmatpush.bf16.msra.mxu0 %v3007
        %3131 = vmatpush.bf16.msra.mxu0 %v3005
        %3132 = vmatpush.bf16.msra.mxu0 %v3003
        %3133 = vmatpush.bf16.msra.mxu0 %v3001
        %3134 = vmatpush.bf16.msra.mxu0 %v2999
        %3135 = vmatpush.bf16.msra.mxu0 %v2997
        %3136 = vmatpush.bf16.msra.mxu0 %v2995
        %3137 = vmatpush.bf16.msra.mxu0 %v2993
        %3138 = vmatmul.bf16.gmra.mxu0 %v2795
        %v3139 = vpop.f32.mrf.mxu0
        %v3140 = vadd.f32 %v2847, %v3139
        %v3141 = vpop.f32.mrf.mxu0
        %v3142 = vadd.f32 %v2847, %v3141
        %3143 = vdwg.mxu0
        %3144 = vmatpush.bf16.msra.mxu0 %v3023
        %3145 = vmatpush.bf16.msra.mxu0 %v3021
        %3146 = vmatpush.bf16.msra.mxu0 %v3019
        %3147 = vmatpush.bf16.msra.mxu0 %v3017
        %3148 = vmatpush.bf16.msra.mxu0 %v3015
        %3149 = vmatpush.bf16.msra.mxu0 %v3013
        %3150 = vmatpush.bf16.msra.mxu0 %v3011
        %3151 = vmatpush.bf16.msra.mxu0 %v3009
        %3152 = vmatmul.bf16.gmra.mxu0 %v2796
        %v3153 = vpop.f32.mrf.mxu0
        %v3154 = vadd.f32 %v3140, %v3153
        %v3155 = vpop.f32.mrf.mxu0
        %v3156 = vadd.f32 %v3142, %v3155
        %3157 = vdwg.mxu0
        %3158 = vmatpush.bf16.msra.mxu0 %v3039
        %3159 = vmatpush.bf16.msra.mxu0 %v3037
        %3160 = vmatpush.bf16.msra.mxu0 %v3035
        %3161 = vmatpush.bf16.msra.mxu0 %v3033
        %3162 = vmatpush.bf16.msra.mxu0 %v3031
        %3163 = vmatpush.bf16.msra.mxu0 %v3029
        %3164 = vmatpush.bf16.msra.mxu0 %v3027
        %3165 = vmatpush.bf16.msra.mxu0 %v3025
        %3166 = vmatmul.bf16.gmra.mxu0 %v2797
        %v3167 = vpop.f32.mrf.mxu0
        %v3168 = vadd.f32 %v3154, %v3167
        %v3169 = vpop.f32.mrf.mxu0
        %v3170 = vadd.f32 %v3156, %v3169
        %3171 = vdwg.mxu0
        %v3172 = vand.u32 %v849, 7
        %v3173 = vand.u32 %v850, 7
        %vm3174 = vcmp.eq.s32.totalorder %v3172, 0
        %vm3175 = vcmp.eq.s32.totalorder %v3173, 0
        %v3176 = vsel %vm3174, 1, 0
        %v3177 = vsel %vm3175, 1, 0
        %v3178 = vcvt.s32.f32 %v3176
        %v3179 = vcvt.s32.f32 %v3177
        %v3180 = vmul.f32 %v3126, %v3178
        %v3181 = vmul.f32 %v3168, %v3178
        %v3182 = vmul.f32 %v3128, %v3179
        %v3183 = vmul.f32 %v3170, %v3179
        %v3184 = vadd.f32 %v3180, %v3182
        %v3185 = vrot.slane %v3184, 4
        %v3186 = vadd.f32 %v3184, %v3185
        %v3187 = vrot.slane %v3186, 2
        %v3188 = vadd.f32 %v3186, %v3187
        %v3189 = vrot.slane %v3188, 1
        %v3190 = vadd.f32 %v3188, %v3189
        %v3191 = vadd.f32 %v3181, %v3183
        %v3192 = vrot.slane %v3191, 4
        %v3193 = vadd.f32 %v3191, %v3192
        %v3194 = vrot.slane %v3193, 2
        %v3195 = vadd.f32 %v3193, %v3194
        %v3196 = vrot.slane %v3195, 1
        %v3197 = vadd.f32 %v3195, %v3196
        %v3198 = vmul.f32 %v3180, %v3180
        %v3199 = vmul.f32 %v3181, %v3181
        %v3200 = vmul.f32 %v3182, %v3182
        %v3201 = vmul.f32 %v3183, %v3183
        %v3202 = vadd.f32 %v3198, %v3200
        %v3203 = vrot.slane %v3202, 4
        %v3204 = vadd.f32 %v3202, %v3203
        %v3205 = vrot.slane %v3204, 2
        %v3206 = vadd.f32 %v3204, %v3205
        %v3207 = vrot.slane %v3206, 1
        %v3208 = vadd.f32 %v3206, %v3207
        %v3209 = vadd.f32 %v3199, %v3201
        %v3210 = vrot.slane %v3209, 4
        %v3211 = vadd.f32 %v3209, %v3210
        %v3212 = vrot.slane %v3211, 2
        %v3213 = vadd.f32 %v3211, %v3212
        %v3214 = vrot.slane %v3213, 1
        %v3215 = vadd.f32 %v3213, %v3214
        %v3216 = vld [vmem:[%s25] sm:$0xff]
        %v3217 = vld [vmem:[%s25 + $0x8] sm:$0xff]
        %v3218 = vld [vmem:[%s25 + $0x10] sm:$0xff]
        %v3219 = vld [vmem:[%s25 + $0x18] sm:$0xff]
        %v3220 = vld [vmem:[%s25 + $0x20] sm:$0xff]
        %v3221 = vld [vmem:[%s25 + $0x28] sm:$0xff]
        %v3222 = vld [vmem:[%s25 + $0x30] sm:$0xff]
        %v3223 = vld [vmem:[%s25 + $0x38] sm:$0xff]
        %v3224 = vld [vmem:[%s25 + $0x40] sm:$0xff]
        %v3225 = vld [vmem:[%s25 + $0x48] sm:$0xff]
        %v3226 = vld [vmem:[%s25 + $0x50] sm:$0xff]
        %v3227 = vld [vmem:[%s25 + $0x58] sm:$0xff]
        %v3228 = vld [vmem:[%s25 + $0x60] sm:$0xff]
        %v3229 = vld [vmem:[%s25 + $0x68] sm:$0xff]
        %v3230 = vld [vmem:[%s25 + $0x70] sm:$0xff]
        %v3231 = vld [vmem:[%s25 + $0x78] sm:$0xff]
        %v3232 = vld [vmem:[%s25 + $0x80] sm:$0xff]
        %v3233 = vld [vmem:[%s25 + $0x88] sm:$0xff]
        %v3234 = vld [vmem:[%s25 + $0x90] sm:$0xff]
        %v3235 = vld [vmem:[%s25 + $0x98] sm:$0xff]
        %v3236 = vld [vmem:[%s25 + $0xa0] sm:$0xff]
        %v3237 = vld [vmem:[%s25 + $0xa8] sm:$0xff]
        %v3238 = vld [vmem:[%s25 + $0xb0] sm:$0xff]
        %v3239 = vld [vmem:[%s25 + $0xb8] sm:$0xff]
        %v3240 = vld [vmem:[%s25 + $0xc0] sm:$0xff]
        %v3241 = vld [vmem:[%s25 + $0xc8] sm:$0xff]
        %v3242 = vld [vmem:[%s25 + $0xd0] sm:$0xff]
        %v3243 = vld [vmem:[%s25 + $0xd8] sm:$0xff]
        %v3244 = vld [vmem:[%s25 + $0xe0] sm:$0xff]
        %v3245 = vld [vmem:[%s25 + $0xe8] sm:$0xff]
        %v3246 = vld [vmem:[%s25 + $0xf0] sm:$0xff]
        %v3247 = vld [vmem:[%s25 + $0xf8] sm:$0xff]
        %v3248 = vld [vmem:[%s25 + $0x100] sm:$0xff]
        %v3249 = vld [vmem:[%s25 + $0x108] sm:$0xff]
        %v3250 = vld [vmem:[%s25 + $0x110] sm:$0xff]
        %v3251 = vld [vmem:[%s25 + $0x118] sm:$0xff]
        %v3252 = vld [vmem:[%s25 + $0x120] sm:$0xff]
        %v3253 = vld [vmem:[%s25 + $0x128] sm:$0xff]
        %v3254 = vld [vmem:[%s25 + $0x130] sm:$0xff]
        %v3255 = vld [vmem:[%s25 + $0x138] sm:$0xff]
        %v3256 = vld [vmem:[%s25 + $0x140] sm:$0xff]
        %v3257 = vld [vmem:[%s25 + $0x148] sm:$0xff]
        %v3258 = vld [vmem:[%s25 + $0x150] sm:$0xff]
        %v3259 = vld [vmem:[%s25 + $0x158] sm:$0xff]
        %v3260 = vld [vmem:[%s25 + $0x160] sm:$0xff]
        %v3261 = vld [vmem:[%s25 + $0x168] sm:$0xff]
        %v3262 = vld [vmem:[%s25 + $0x170] sm:$0xff]
        %v3263 = vld [vmem:[%s25 + $0x178] sm:$0xff]
        %v3264 = vld [vmem:[%s25 + $0x180] sm:$0xff]
        %v3265 = vld [vmem:[%s25 + $0x188] sm:$0xff]
        %v3266 = vld [vmem:[%s25 + $0x190] sm:$0xff]
        %v3267 = vld [vmem:[%s25 + $0x198] sm:$0xff]
        %v3268 = vld [vmem:[%s25 + $0x1a0] sm:$0xff]
        %v3269 = vld [vmem:[%s25 + $0x1a8] sm:$0xff]
        %v3270 = vld [vmem:[%s25 + $0x1b0] sm:$0xff]
        %v3271 = vld [vmem:[%s25 + $0x1b8] sm:$0xff]
        %v3272 = vld [vmem:[%s25 + $0x1c0] sm:$0xff]
        %v3273 = vld [vmem:[%s25 + $0x1c8] sm:$0xff]
        %v3274 = vld [vmem:[%s25 + $0x1d0] sm:$0xff]
        %v3275 = vld [vmem:[%s25 + $0x1d8] sm:$0xff]
        %v3276 = vld [vmem:[%s25 + $0x1e0] sm:$0xff]
        %v3277 = vld [vmem:[%s25 + $0x1e8] sm:$0xff]
        %v3278 = vld [vmem:[%s25 + $0x1f0] sm:$0xff]
        %v3279 = vld [vmem:[%s25 + $0x1f8] sm:$0xff]
        %3280 = vmatpush.msra.mxu0 %v3246
        %3281 = vmatpush.msra.mxu0 %v3244
        %3282 = vmatpush.msra.mxu0 %v3242
        %3283 = vmatpush.msra.mxu0 %v3240
        %3284 = vmatpush.msra.mxu0 %v3238
        %3285 = vmatpush.msra.mxu0 %v3236
        %3286 = vmatpush.msra.mxu0 %v3234
        %3287 = vmatpush.msra.mxu0 %v3232
        %3288 = vmatpush.msra.mxu0 %v3230
        %3289 = vmatpush.msra.mxu0 %v3228
        %3290 = vmatpush.msra.mxu0 %v3226
        %3291 = vmatpush.msra.mxu0 %v3224
        %3292 = vmatpush.msra.mxu0 %v3222
        %3293 = vmatpush.msra.mxu0 %v3220
        %3294 = vmatpush.msra.mxu0 %v3218
        %3295 = vmatpush.msra.mxu0 %v3216
        %3296 = vmatmul.f32.gmra.mxu0 %v3190
        %v3297 = vpop.f32.mrf.mxu0
        %v3298 = vadd.f32 0.0, %v3297
        %3299 = vdwg.mxu0
        %3300 = vmatpush.msra.mxu0 %v3278
        %3301 = vmatpush.msra.mxu0 %v3276
        %3302 = vmatpush.msra.mxu0 %v3274
        %3303 = vmatpush.msra.mxu0 %v3272
        %3304 = vmatpush.msra.mxu0 %v3270
        %3305 = vmatpush.msra.mxu0 %v3268
        %3306 = vmatpush.msra.mxu0 %v3266
        %3307 = vmatpush.msra.mxu0 %v3264
        %3308 = vmatpush.msra.mxu0 %v3262
        %3309 = vmatpush.msra.mxu0 %v3260
        %3310 = vmatpush.msra.mxu0 %v3258
        %3311 = vmatpush.msra.mxu0 %v3256
        %3312 = vmatpush.msra.mxu0 %v3254
        %3313 = vmatpush.msra.mxu0 %v3252
        %3314 = vmatpush.msra.mxu0 %v3250
        %3315 = vmatpush.msra.mxu0 %v3248
        %3316 = vmatmul.f32.gmra.mxu0 %v3197
        %v3317 = vpop.f32.mrf.mxu0
        %v3318 = vadd.f32 %v3298, %v3317
        %3319 = vdwg.mxu0
        %3320 = vmatpush.msra.mxu0 %v3247
        %3321 = vmatpush.msra.mxu0 %v3245
        %3322 = vmatpush.msra.mxu0 %v3243
        %3323 = vmatpush.msra.mxu0 %v3241
        %3324 = vmatpush.msra.mxu0 %v3239
        %3325 = vmatpush.msra.mxu0 %v3237
        %3326 = vmatpush.msra.mxu0 %v3235
        %3327 = vmatpush.msra.mxu0 %v3233
        %3328 = vmatpush.msra.mxu0 %v3231
        %3329 = vmatpush.msra.mxu0 %v3229
        %3330 = vmatpush.msra.mxu0 %v3227
        %3331 = vmatpush.msra.mxu0 %v3225
        %3332 = vmatpush.msra.mxu0 %v3223
        %3333 = vmatpush.msra.mxu0 %v3221
        %3334 = vmatpush.msra.mxu0 %v3219
        %3335 = vmatpush.msra.mxu0 %v3217
        %3336 = vmatmul.f32.gmra.mxu0 %v3190
        %v3337 = vpop.f32.mrf.mxu0
        %v3338 = vadd.f32 0.0, %v3337
        %3339 = vdwg.mxu0
        %3340 = vmatpush.msra.mxu0 %v3279
        %3341 = vmatpush.msra.mxu0 %v3277
        %3342 = vmatpush.msra.mxu0 %v3275
        %3343 = vmatpush.msra.mxu0 %v3273
        %3344 = vmatpush.msra.mxu0 %v3271
        %3345 = vmatpush.msra.mxu0 %v3269
        %3346 = vmatpush.msra.mxu0 %v3267
        %3347 = vmatpush.msra.mxu0 %v3265
        %3348 = vmatpush.msra.mxu0 %v3263
        %3349 = vmatpush.msra.mxu0 %v3261
        %3350 = vmatpush.msra.mxu0 %v3259
        %3351 = vmatpush.msra.mxu0 %v3257
        %3352 = vmatpush.msra.mxu0 %v3255
        %3353 = vmatpush.msra.mxu0 %v3253
        %3354 = vmatpush.msra.mxu0 %v3251
        %3355 = vmatpush.msra.mxu0 %v3249
        %3356 = vmatmul.f32.gmra.mxu0 %v3197
        %v3357 = vpop.f32.mrf.mxu0
        %v3358 = vadd.f32 %v3338, %v3357
        %3359 = vdwg.mxu0
        %3360 = vmatpush.msra.mxu0 %v3246
        %3361 = vmatpush.msra.mxu0 %v3244
        %3362 = vmatpush.msra.mxu0 %v3242
        %3363 = vmatpush.msra.mxu0 %v3240
        %3364 = vmatpush.msra.mxu0 %v3238
        %3365 = vmatpush.msra.mxu0 %v3236
        %3366 = vmatpush.msra.mxu0 %v3234
        %3367 = vmatpush.msra.mxu0 %v3232
        %3368 = vmatpush.msra.mxu0 %v3230
        %3369 = vmatpush.msra.mxu0 %v3228
        %3370 = vmatpush.msra.mxu0 %v3226
        %3371 = vmatpush.msra.mxu0 %v3224
        %3372 = vmatpush.msra.mxu0 %v3222
        %3373 = vmatpush.msra.mxu0 %v3220
        %3374 = vmatpush.msra.mxu0 %v3218
        %3375 = vmatpush.msra.mxu0 %v3216
        %3376 = vmatmul.f32.gmra.mxu0 %v3208
        %v3377 = vpop.f32.mrf.mxu0
        %v3378 = vadd.f32 0.0, %v3377
        %3379 = vdwg.mxu0
        %3380 = vmatpush.msra.mxu0 %v3278
        %3381 = vmatpush.msra.mxu0 %v3276
        %3382 = vmatpush.msra.mxu0 %v3274
        %3383 = vmatpush.msra.mxu0 %v3272
        %3384 = vmatpush.msra.mxu0 %v3270
        %3385 = vmatpush.msra.mxu0 %v3268
        %3386 = vmatpush.msra.mxu0 %v3266
        %3387 = vmatpush.msra.mxu0 %v3264
        %3388 = vmatpush.msra.mxu0 %v3262
        %3389 = vmatpush.msra.mxu0 %v3260
        %3390 = vmatpush.msra.mxu0 %v3258
        %3391 = vmatpush.msra.mxu0 %v3256
        %3392 = vmatpush.msra.mxu0 %v3254
        %3393 = vmatpush.msra.mxu0 %v3252
        %3394 = vmatpush.msra.mxu0 %v3250
        %3395 = vmatpush.msra.mxu0 %v3248
        %3396 = vmatmul.f32.gmra.mxu0 %v3215
        %v3397 = vpop.f32.mrf.mxu0
        %v3398 = vadd.f32 %v3378, %v3397
        %3399 = vdwg.mxu0
        %3400 = vmatpush.msra.mxu0 %v3247
        %3401 = vmatpush.msra.mxu0 %v3245
        %3402 = vmatpush.msra.mxu0 %v3243
        %3403 = vmatpush.msra.mxu0 %v3241
        %3404 = vmatpush.msra.mxu0 %v3239
        %3405 = vmatpush.msra.mxu0 %v3237
        %3406 = vmatpush.msra.mxu0 %v3235
        %3407 = vmatpush.msra.mxu0 %v3233
        %3408 = vmatpush.msra.mxu0 %v3231
        %3409 = vmatpush.msra.mxu0 %v3229
        %3410 = vmatpush.msra.mxu0 %v3227
        %3411 = vmatpush.msra.mxu0 %v3225
        %3412 = vmatpush.msra.mxu0 %v3223
        %3413 = vmatpush.msra.mxu0 %v3221
        %3414 = vmatpush.msra.mxu0 %v3219
        %3415 = vmatpush.msra.mxu0 %v3217
        %3416 = vmatmul.f32.gmra.mxu0 %v3208
        %v3417 = vpop.f32.mrf.mxu0
        %v3418 = vadd.f32 0.0, %v3417
        %3419 = vdwg.mxu0
        %3420 = vmatpush.msra.mxu0 %v3279
        %3421 = vmatpush.msra.mxu0 %v3277
        %3422 = vmatpush.msra.mxu0 %v3275
        %3423 = vmatpush.msra.mxu0 %v3273
        %3424 = vmatpush.msra.mxu0 %v3271
        %3425 = vmatpush.msra.mxu0 %v3269
        %3426 = vmatpush.msra.mxu0 %v3267
        %3427 = vmatpush.msra.mxu0 %v3265
        %3428 = vmatpush.msra.mxu0 %v3263
        %3429 = vmatpush.msra.mxu0 %v3261
        %3430 = vmatpush.msra.mxu0 %v3259
        %3431 = vmatpush.msra.mxu0 %v3257
        %3432 = vmatpush.msra.mxu0 %v3255
        %3433 = vmatpush.msra.mxu0 %v3253
        %3434 = vmatpush.msra.mxu0 %v3251
        %3435 = vmatpush.msra.mxu0 %v3249
        %3436 = vmatmul.f32.gmra.mxu0 %v3215
        %v3437 = vpop.f32.mrf.mxu0
        %v3438 = vadd.f32 %v3418, %v3437
        %3439 = vdwg.mxu0
        %v3440 = vmul.f32 %v3318, %v3318
        %v3441 = vmul.f32 %v3358, %v3358
        %v3442 = vsub.f32 %v3398, %v3440
        %v3443 = vsub.f32 %v3438, %v3441
        %v3444 = vmax.f32 %v3442, 0.0
        %v3445 = vmax.f32 %v3443, 0.0
        %v3446 = vadd.f32 %v3444, 1e-05
        %v3447 = vadd.f32 %v3445, 1e-05
        %v3448 = vrsqrt.pop %v3446
        %v3449 = vmul.f32 %v3448, %v3446
        %v3450 = vmul.f32 %v3449, %v3448
        %v3451 = vmul.f32 0.5, %v3450
        %v3452 = vsub.f32 1.5, %v3451
        %v3453 = vmul.f32 %v3448, %v3452
        %vm3454 = vweird.f32 %v3446
        %vm3455 = vweird.f32 %v3448
        %vm3456 = vmor %vm3454, %vm3455
        %v3457 = vsel %vm3456, %v3448, %v3453
        %v3458 = vrsqrt.pop %v3447
        %v3459 = vmul.f32 %v3458, %v3447
        %v3460 = vmul.f32 %v3459, %v3458
        %v3461 = vmul.f32 0.5, %v3460
        %v3462 = vsub.f32 1.5, %v3461
        %v3463 = vmul.f32 %v3458, %v3462
        %vm3464 = vweird.f32 %v3447
        %vm3465 = vweird.f32 %v3458
        %vm3466 = vmor %vm3464, %vm3465
        %v3467 = vsel %vm3466, %v3458, %v3463
        %v3468 = vperm.slane %v1948, 3
        %v3469 = vperm.slane %v1948, 4
        %v3472 = vmul.f32 %v3457, %v3468
        %v3473 = vmul.f32 %v3467, %v3469
        %v3474 = vmul.f32 %v3318, %v3472
        %v3475 = vmul.f32 %v3358, %v3473
        %v3476 = vrot.slane %v1949, 3
        %v3480 = vrot.slane %v3475, 7
        %vm3481 = vcmask 1040384
        %v3482 = vsel %vm3481, %v3474, %v3480
        %v3484 = vsub.f32 %v3476, %v3482
        %v3485 = vperm.slane %v3472, 0
        %v3486 = vperm.slane %v3473, 0
        %v3487 = vmul.f32 %v3126, %v3485
        %v3488 = vmul.f32 %v3168, %v3486
        %v3489 = vmul.f32 %v3128, %v3485
        %v3490 = vmul.f32 %v3170, %v3486
        %v3492 = vperm.slane %v3484, 0
        %v3493 = vperm.slane %v3484, 1
        %v3496 = vadd.f32 %v3487, %v3492
        %v3497 = vadd.f32 %v3488, %v3493
        %v3498 = vadd.f32 %v3489, %v3492
        %v3499 = vadd.f32 %v3490, %v3493
        %v3500 = vxor.u32 %v3496, 2147483648
        %v3501 = vxor.u32 %v3497, 2147483648
        %v3502 = vxor.u32 %v3498, 2147483648
        %v3503 = vxor.u32 %v3499, 2147483648
        %v3504 = vmul.f32 %v3500, 1.442695
        %v3505 = vpow.pop %v3504
        %v3506 = vmul.f32 %v3501, 1.442695
        %v3507 = vpow.pop %v3506
        %v3508 = vmul.f32 %v3502, 1.442695
        %v3509 = vpow.pop %v3508
        %v3510 = vmul.f32 %v3503, 1.442695
        %v3511 = vpow.pop %v3510
        %v3512 = vadd.f32 %v3505, 1.0
        %v3513 = vadd.f32 %v3507, 1.0
        %v3514 = vadd.f32 %v3509, 1.0
        %v3515 = vadd.f32 %v3511, 1.0
        %v3516 = vrcp.pop %v3512
        %v3517 = vmul.f32 %v3512, %v3516
        %v3518 = vsub.f32 1.0, %v3517
        %v3519 = vmul.f32 %v3516, %v3518
        %v3520 = vadd.f32 %v3516, %v3519
        %vm3521 = vweird.f32 %v3512
        %vm3522 = vweird.f32 %v3516
        %vm3523 = vmor %vm3521, %vm3522
        %v3524 = vsel %vm3523, %v3516, %v3520
        %v3525 = vand.u32 2147483647, %v3512
        %vm3526 = vcmp.eq.f32.partialorder %v3525, 8.507059e+37
        %v3527 = vand.u32 %v3512, 2147483648
        %v3528 = vor.u32 1.1754944e-38, %v3527
        %v3529 = vsel %vm3526, %v3528, %v3524
        %v3530 = vmul.f32 1.0, %v3529
        %v3531 = vrcp.pop %v3513
        %v3532 = vmul.f32 %v3513, %v3531
        %v3533 = vsub.f32 1.0, %v3532
        %v3534 = vmul.f32 %v3531, %v3533
        %v3535 = vadd.f32 %v3531, %v3534
        %vm3536 = vweird.f32 %v3513
        %vm3537 = vweird.f32 %v3531
        %vm3538 = vmor %vm3536, %vm3537
        %v3539 = vsel %vm3538, %v3531, %v3535
        %v3540 = vand.u32 2147483647, %v3513
        %vm3541 = vcmp.eq.f32.partialorder %v3540, 8.507059e+37
        %v3542 = vand.u32 %v3513, 2147483648
        %v3543 = vor.u32 1.1754944e-38, %v3542
        %v3544 = vsel %vm3541, %v3543, %v3539
        %v3545 = vmul.f32 1.0, %v3544
        %v3546 = vrcp.pop %v3514
        %v3547 = vmul.f32 %v3514, %v3546
        %v3548 = vsub.f32 1.0, %v3547
        %v3549 = vmul.f32 %v3546, %v3548
        %v3550 = vadd.f32 %v3546, %v3549
        %vm3551 = vweird.f32 %v3514
        %vm3552 = vweird.f32 %v3546
        %vm3553 = vmor %vm3551, %vm3552
        %v3554 = vsel %vm3553, %v3546, %v3550
        %v3555 = vand.u32 2147483647, %v3514
        %vm3556 = vcmp.eq.f32.partialorder %v3555, 8.507059e+37
        %v3557 = vand.u32 %v3514, 2147483648
        %v3558 = vor.u32 1.1754944e-38, %v3557
        %v3559 = vsel %vm3556, %v3558, %v3554
        %v3560 = vmul.f32 1.0, %v3559
        %v3561 = vrcp.pop %v3515
        %v3562 = vmul.f32 %v3515, %v3561
        %v3563 = vsub.f32 1.0, %v3562
        %v3564 = vmul.f32 %v3561, %v3563
        %v3565 = vadd.f32 %v3561, %v3564
        %vm3566 = vweird.f32 %v3515
        %vm3567 = vweird.f32 %v3561
        %vm3568 = vmor %vm3566, %vm3567
        %v3569 = vsel %vm3568, %v3561, %v3565
        %v3570 = vand.u32 2147483647, %v3515
        %vm3571 = vcmp.eq.f32.partialorder %v3570, 8.507059e+37
        %v3572 = vand.u32 %v3515, 2147483648
        %v3573 = vor.u32 1.1754944e-38, %v3572
        %v3574 = vsel %vm3571, %v3573, %v3569
        %v3575 = vmul.f32 1.0, %v3574
        %v3576 = vmul.f32 %v3496, %v3530
        %v3577 = vmul.f32 %v3497, %v3545
        %v3578 = vmul.f32 %v3498, %v3560
        %v3579 = vmul.f32 %v3499, %v3575
        %v3580 = vmul.f32 %v3576, %v3178
        %v3581 = vmul.f32 %v3577, %v3178
        %v3582 = vmul.f32 %v3578, %v3179
        %v3583 = vmul.f32 %v3579, %v3179
        %vm3584 = vcmp.lt.s32.totalorder %v849, 8
        %vm3585 = vcmp.lt.s32.totalorder %v850, 8
        %v3586 = vsel %vm3584, 1, 0
        %v3587 = vsel %vm3585, 1, 0
        %v3588 = vcvt.s32.f32 %v3586
        %v3589 = vcvt.s32.f32 %v3587
        %v3590 = vmul.f32 %v3582, %v3588
        %v3591 = vmul.f32 %v3583, %v3588
        %v3592 = vmul.f32 %v3580, %v3589
        %v3593 = vmul.f32 %v3581, %v3589
        %v3594 = vpack.c.bf16 %v3581, %v3580
        %v3595 = vpack.c.bf16 %v3583, %v3582
        %v3596 = vld [vmem:[%s14] sm:$0xf]
        %v3597 = vld [vmem:[%s14 + $0x4] sm:$0xf]
        %v3598 = vld [vmem:[%s14 + $0x8] sm:$0xf]
        %v3599 = vld [vmem:[%s14 + $0xc] sm:$0xf]
        %v3600 = vld [vmem:[%s14 + $0x10] sm:$0xf]
        %v3601 = vld [vmem:[%s14 + $0x14] sm:$0xf]
        %v3602 = vld [vmem:[%s14 + $0x18] sm:$0xf]
        %v3603 = vld [vmem:[%s14 + $0x1c] sm:$0xf]
        %v3604 = vld [vmem:[%s14 + $0x20] sm:$0xf]
        %v3605 = vld [vmem:[%s14 + $0x24] sm:$0xf]
        %v3606 = vld [vmem:[%s14 + $0x28] sm:$0xf]
        %v3607 = vld [vmem:[%s14 + $0x2c] sm:$0xf]
        %v3608 = vld [vmem:[%s14 + $0x30] sm:$0xf]
        %v3609 = vld [vmem:[%s14 + $0x34] sm:$0xf]
        %v3610 = vld [vmem:[%s14 + $0x38] sm:$0xf]
        %v3611 = vld [vmem:[%s14 + $0x3c] sm:$0xf]
        %v3612 = vld [vmem:[%s14 + $0x40] sm:$0xf]
        %v3613 = vld [vmem:[%s14 + $0x44] sm:$0xf]
        %v3614 = vld [vmem:[%s14 + $0x48] sm:$0xf]
        %v3615 = vld [vmem:[%s14 + $0x4c] sm:$0xf]
        %v3616 = vld [vmem:[%s14 + $0x50] sm:$0xf]
        %v3617 = vld [vmem:[%s14 + $0x54] sm:$0xf]
        %v3618 = vld [vmem:[%s14 + $0x58] sm:$0xf]
        %v3619 = vld [vmem:[%s14 + $0x5c] sm:$0xf]
        %v3620 = vld [vmem:[%s14 + $0x60] sm:$0xf]
        %v3621 = vld [vmem:[%s14 + $0x64] sm:$0xf]
        %v3622 = vld [vmem:[%s14 + $0x68] sm:$0xf]
        %v3623 = vld [vmem:[%s14 + $0x6c] sm:$0xf]
        %v3624 = vld [vmem:[%s14 + $0x70] sm:$0xf]
        %v3625 = vld [vmem:[%s14 + $0x74] sm:$0xf]
        %v3626 = vld [vmem:[%s14 + $0x78] sm:$0xf]
        %v3627 = vld [vmem:[%s14 + $0x7c] sm:$0xf]
        %v3628 = vpack.c.bf16 %v3591, %v3590
        %v3629 = vpack.c.bf16 %v3593, %v3592
        %v3632 = vunpack.c.l.b16 %v3594
        %v3633 = vunpack.c.h.b16 %v3594
        %v3634 = vunpack.c.l.b16 %v3595
        %v3635 = vunpack.c.h.b16 %v3595
        %v3636 = vpack.c.b16 %v3634, %v3632
        %v3637 = vpack.c.b16 %v3635, %v3633
        %v3642 = vunpack.c.l.b16 %v3628
        %v3643 = vunpack.c.h.b16 %v3628
        %v3644 = vunpack.c.l.b16 %v3629
        %v3645 = vunpack.c.h.b16 %v3629
        %v3646 = vpack.c.b16 %v3644, %v3642
        %v3647 = vpack.c.b16 %v3645, %v3643
        %v3650 = vld [vmem:[%s15] sm:$0xf]
        %v3651 = vld [vmem:[%s15 + $0x4] sm:$0xf]
        %v3652 = vld [vmem:[%s15 + $0x8] sm:$0xf]
        %v3653 = vld [vmem:[%s15 + $0xc] sm:$0xf]
        %v3654 = vld [vmem:[%s15 + $0x10] sm:$0xf]
        %v3655 = vld [vmem:[%s15 + $0x14] sm:$0xf]
        %v3656 = vld [vmem:[%s15 + $0x18] sm:$0xf]
        %v3657 = vld [vmem:[%s15 + $0x1c] sm:$0xf]
        %v3658 = vld [vmem:[%s15 + $0x20] sm:$0xf]
        %v3659 = vld [vmem:[%s15 + $0x24] sm:$0xf]
        %v3660 = vld [vmem:[%s15 + $0x28] sm:$0xf]
        %v3661 = vld [vmem:[%s15 + $0x2c] sm:$0xf]
        %v3662 = vld [vmem:[%s15 + $0x30] sm:$0xf]
        %v3663 = vld [vmem:[%s15 + $0x34] sm:$0xf]
        %v3664 = vld [vmem:[%s15 + $0x38] sm:$0xf]
        %v3665 = vld [vmem:[%s15 + $0x3c] sm:$0xf]
        %v3666 = vld [vmem:[%s15 + $0x40] sm:$0xf]
        %v3667 = vld [vmem:[%s15 + $0x44] sm:$0xf]
        %v3668 = vld [vmem:[%s15 + $0x48] sm:$0xf]
        %v3669 = vld [vmem:[%s15 + $0x4c] sm:$0xf]
        %v3670 = vld [vmem:[%s15 + $0x50] sm:$0xf]
        %v3671 = vld [vmem:[%s15 + $0x54] sm:$0xf]
        %v3672 = vld [vmem:[%s15 + $0x58] sm:$0xf]
        %v3673 = vld [vmem:[%s15 + $0x5c] sm:$0xf]
        %v3674 = vld [vmem:[%s15 + $0x60] sm:$0xf]
        %v3675 = vld [vmem:[%s15 + $0x64] sm:$0xf]
        %v3676 = vld [vmem:[%s15 + $0x68] sm:$0xf]
        %v3677 = vld [vmem:[%s15 + $0x6c] sm:$0xf]
        %v3678 = vld [vmem:[%s15 + $0x70] sm:$0xf]
        %v3679 = vld [vmem:[%s15 + $0x74] sm:$0xf]
        %v3680 = vld [vmem:[%s15 + $0x78] sm:$0xf]
        %v3681 = vld [vmem:[%s15 + $0x7c] sm:$0xf]
        %v3682 = vld [vmem:[%s15 + $0x80] sm:$0xf]
        %v3683 = vld [vmem:[%s15 + $0x84] sm:$0xf]
        %v3684 = vld [vmem:[%s15 + $0x88] sm:$0xf]
        %v3685 = vld [vmem:[%s15 + $0x8c] sm:$0xf]
        %v3686 = vld [vmem:[%s15 + $0x90] sm:$0xf]
        %v3687 = vld [vmem:[%s15 + $0x94] sm:$0xf]
        %v3688 = vld [vmem:[%s15 + $0x98] sm:$0xf]
        %v3689 = vld [vmem:[%s15 + $0x9c] sm:$0xf]
        %v3690 = vld [vmem:[%s15 + $0xa0] sm:$0xf]
        %v3691 = vld [vmem:[%s15 + $0xa4] sm:$0xf]
        %v3692 = vld [vmem:[%s15 + $0xa8] sm:$0xf]
        %v3693 = vld [vmem:[%s15 + $0xac] sm:$0xf]
        %v3694 = vld [vmem:[%s15 + $0xb0] sm:$0xf]
        %v3695 = vld [vmem:[%s15 + $0xb4] sm:$0xf]
        %v3696 = vld [vmem:[%s15 + $0xb8] sm:$0xf]
        %v3697 = vld [vmem:[%s15 + $0xbc] sm:$0xf]
        %v3698 = vld [vmem:[%s15 + $0xc0] sm:$0xf]
        %v3699 = vld [vmem:[%s15 + $0xc4] sm:$0xf]
        %v3700 = vld [vmem:[%s15 + $0xc8] sm:$0xf]
        %v3701 = vld [vmem:[%s15 + $0xcc] sm:$0xf]
        %v3702 = vld [vmem:[%s15 + $0xd0] sm:$0xf]
        %v3703 = vld [vmem:[%s15 + $0xd4] sm:$0xf]
        %v3704 = vld [vmem:[%s15 + $0xd8] sm:$0xf]
        %v3705 = vld [vmem:[%s15 + $0xdc] sm:$0xf]
        %v3706 = vld [vmem:[%s15 + $0xe0] sm:$0xf]
        %v3707 = vld [vmem:[%s15 + $0xe4] sm:$0xf]
        %v3708 = vld [vmem:[%s15 + $0xe8] sm:$0xf]
        %v3709 = vld [vmem:[%s15 + $0xec] sm:$0xf]
        %v3710 = vld [vmem:[%s15 + $0xf0] sm:$0xf]
        %v3711 = vld [vmem:[%s15 + $0xf4] sm:$0xf]
        %v3712 = vld [vmem:[%s15 + $0xf8] sm:$0xf]
        %v3713 = vld [vmem:[%s15 + $0xfc] sm:$0xf]
        %v3778 = vunpack.c.l.b16 %v3650
        %v3779 = vunpack.c.l.b16 %v3651
        %v3780 = vunpack.c.l.b16 %v3652
        %v3781 = vunpack.c.l.b16 %v3653
        %v3782 = vunpack.c.l.b16 %v3654
        %v3783 = vunpack.c.l.b16 %v3655
        %v3784 = vunpack.c.l.b16 %v3656
        %v3785 = vunpack.c.l.b16 %v3657
        %v3786 = vunpack.c.l.b16 %v3658
        %v3787 = vunpack.c.l.b16 %v3659
        %v3788 = vunpack.c.l.b16 %v3660
        %v3789 = vunpack.c.l.b16 %v3661
        %v3790 = vunpack.c.l.b16 %v3662
        %v3791 = vunpack.c.l.b16 %v3663
        %v3792 = vunpack.c.l.b16 %v3664
        %v3793 = vunpack.c.l.b16 %v3665
        %v3794 = vunpack.c.l.b16 %v3666
        %v3795 = vunpack.c.l.b16 %v3667
        %v3796 = vunpack.c.l.b16 %v3668
        %v3797 = vunpack.c.l.b16 %v3669
        %v3798 = vunpack.c.l.b16 %v3670
        %v3799 = vunpack.c.l.b16 %v3671
        %v3800 = vunpack.c.l.b16 %v3672
        %v3801 = vunpack.c.l.b16 %v3673
        %v3802 = vunpack.c.l.b16 %v3674
        %v3803 = vunpack.c.l.b16 %v3675
        %v3804 = vunpack.c.l.b16 %v3676
        %v3805 = vunpack.c.l.b16 %v3677
        %v3806 = vunpack.c.l.b16 %v3678
        %v3807 = vunpack.c.l.b16 %v3679
        %v3808 = vunpack.c.l.b16 %v3680
        %v3809 = vunpack.c.l.b16 %v3681
        %v3810 = vunpack.c.l.b16 %v3682
        %v3811 = vunpack.c.l.b16 %v3683
        %v3812 = vunpack.c.l.b16 %v3684
        %v3813 = vunpack.c.l.b16 %v3685
        %v3814 = vunpack.c.l.b16 %v3686
        %v3815 = vunpack.c.l.b16 %v3687
        %v3816 = vunpack.c.l.b16 %v3688
        %v3817 = vunpack.c.l.b16 %v3689
        %v3818 = vunpack.c.l.b16 %v3690
        %v3819 = vunpack.c.l.b16 %v3691
        %v3820 = vunpack.c.l.b16 %v3692
        %v3821 = vunpack.c.l.b16 %v3693
        %v3822 = vunpack.c.l.b16 %v3694
        %v3823 = vunpack.c.l.b16 %v3695
        %v3824 = vunpack.c.l.b16 %v3696
        %v3825 = vunpack.c.l.b16 %v3697
        %v3826 = vunpack.c.l.b16 %v3698
        %v3827 = vunpack.c.l.b16 %v3699
        %v3828 = vunpack.c.l.b16 %v3700
        %v3829 = vunpack.c.l.b16 %v3701
        %v3830 = vunpack.c.l.b16 %v3702
        %v3831 = vunpack.c.l.b16 %v3703
        %v3832 = vunpack.c.l.b16 %v3704
        %v3833 = vunpack.c.l.b16 %v3705
        %v3834 = vunpack.c.l.b16 %v3706
        %v3835 = vunpack.c.l.b16 %v3707
        %v3836 = vunpack.c.l.b16 %v3708
        %v3837 = vunpack.c.l.b16 %v3709
        %v3838 = vunpack.c.l.b16 %v3710
        %v3839 = vunpack.c.l.b16 %v3711
        %v3840 = vunpack.c.l.b16 %v3712
        %v3841 = vunpack.c.l.b16 %v3713
        %v3842 = vpack.c.b16 %v3779, %v3778
        %v3843 = vpack.c.b16 %v3781, %v3780
        %v3844 = vpack.c.b16 %v3783, %v3782
        %v3845 = vpack.c.b16 %v3785, %v3784
        %v3846 = vpack.c.b16 %v3787, %v3786
        %v3847 = vpack.c.b16 %v3789, %v3788
        %v3848 = vpack.c.b16 %v3791, %v3790
        %v3849 = vpack.c.b16 %v3793, %v3792
        %v3850 = vpack.c.b16 %v3795, %v3794
        %v3851 = vpack.c.b16 %v3797, %v3796
        %v3852 = vpack.c.b16 %v3799, %v3798
        %v3853 = vpack.c.b16 %v3801, %v3800
        %v3854 = vpack.c.b16 %v3803, %v3802
        %v3855 = vpack.c.b16 %v3805, %v3804
        %v3856 = vpack.c.b16 %v3807, %v3806
        %v3857 = vpack.c.b16 %v3809, %v3808
        %v3858 = vpack.c.b16 %v3811, %v3810
        %v3859 = vpack.c.b16 %v3813, %v3812
        %v3860 = vpack.c.b16 %v3815, %v3814
        %v3861 = vpack.c.b16 %v3817, %v3816
        %v3862 = vpack.c.b16 %v3819, %v3818
        %v3863 = vpack.c.b16 %v3821, %v3820
        %v3864 = vpack.c.b16 %v3823, %v3822
        %v3865 = vpack.c.b16 %v3825, %v3824
        %v3866 = vpack.c.b16 %v3827, %v3826
        %v3867 = vpack.c.b16 %v3829, %v3828
        %v3868 = vpack.c.b16 %v3831, %v3830
        %v3869 = vpack.c.b16 %v3833, %v3832
        %v3870 = vpack.c.b16 %v3835, %v3834
        %v3871 = vpack.c.b16 %v3837, %v3836
        %v3872 = vpack.c.b16 %v3839, %v3838
        %v3873 = vpack.c.b16 %v3841, %v3840
        %3906 = vmatpush.bf16.msra.mxu0 %v3849
        %3907 = vmatpush.bf16.msra.mxu0 %v3848
        %3908 = vmatpush.bf16.msra.mxu0 %v3847
        %3909 = vmatpush.bf16.msra.mxu0 %v3846
        %3910 = vmatpush.bf16.msra.mxu0 %v3845
        %3911 = vmatpush.bf16.msra.mxu0 %v3844
        %3912 = vmatpush.bf16.msra.mxu0 %v3843
        %3913 = vmatpush.bf16.msra.mxu0 %v3842
        %3914 = vmatmul.bf16.gmra.mxu0 %v3636
        %v3915 = vpop.f32.mrf.mxu0
        %v3916 = vadd.f32 0.0, %v3915
        %v3917 = vpop.f32.mrf.mxu0
        %v3918 = vadd.f32 0.0, %v3917
        %3919 = vdwg.mxu0
        %3920 = vmatpush.bf16.msra.mxu0 %v3857
        %3921 = vmatpush.bf16.msra.mxu0 %v3856
        %3922 = vmatpush.bf16.msra.mxu0 %v3855
        %3923 = vmatpush.bf16.msra.mxu0 %v3854
        %3924 = vmatpush.bf16.msra.mxu0 %v3853
        %3925 = vmatpush.bf16.msra.mxu0 %v3852
        %3926 = vmatpush.bf16.msra.mxu0 %v3851
        %3927 = vmatpush.bf16.msra.mxu0 %v3850
        %3928 = vmatmul.bf16.gmra.mxu0 %v3637
        %v3929 = vpop.f32.mrf.mxu0
        %v3930 = vadd.f32 %v3916, %v3929
        %v3931 = vpop.f32.mrf.mxu0
        %v3932 = vadd.f32 %v3918, %v3931
        %3933 = vdwg.mxu0
        %3934 = vmatpush.bf16.msra.mxu0 %v3865
        %3935 = vmatpush.bf16.msra.mxu0 %v3864
        %3936 = vmatpush.bf16.msra.mxu0 %v3863
        %3937 = vmatpush.bf16.msra.mxu0 %v3862
        %3938 = vmatpush.bf16.msra.mxu0 %v3861
        %3939 = vmatpush.bf16.msra.mxu0 %v3860
        %3940 = vmatpush.bf16.msra.mxu0 %v3859
        %3941 = vmatpush.bf16.msra.mxu0 %v3858
        %3942 = vmatmul.bf16.gmra.mxu0 %v3646
        %v3943 = vpop.f32.mrf.mxu0
        %v3944 = vadd.f32 %v3930, %v3943
        %v3945 = vpop.f32.mrf.mxu0
        %v3946 = vadd.f32 %v3932, %v3945
        %3947 = vdwg.mxu0
        %3948 = vmatpush.bf16.msra.mxu0 %v3873
        %3949 = vmatpush.bf16.msra.mxu0 %v3872
        %3950 = vmatpush.bf16.msra.mxu0 %v3871
        %3951 = vmatpush.bf16.msra.mxu0 %v3870
        %3952 = vmatpush.bf16.msra.mxu0 %v3869
        %3953 = vmatpush.bf16.msra.mxu0 %v3868
        %3954 = vmatpush.bf16.msra.mxu0 %v3867
        %3955 = vmatpush.bf16.msra.mxu0 %v3866
        %3956 = vmatmul.bf16.gmra.mxu0 %v3647
        %v3957 = vpop.f32.mrf.mxu0
        %v3958 = vadd.f32 %v3944, %v3957
        %v3959 = vpop.f32.mrf.mxu0
        %v3960 = vadd.f32 %v3946, %v3959
        %3961 = vdwg.mxu0
        %v3962 = vrot.slane %v3958, 4
        %v3963 = vrot.slane %v3960, 4
        %v3964 = vsel %vm2776, %v3962, %v3963
        %v3965 = vsel %vm2776, %v3963, %v3962
        %v3998 = vunpack.c.l.b16 %v3596
        %v3999 = vunpack.c.l.b16 %v3597
        %v4000 = vunpack.c.l.b16 %v3598
        %v4001 = vunpack.c.l.b16 %v3599
        %v4002 = vunpack.c.l.b16 %v3600
        %v4003 = vunpack.c.l.b16 %v3601
        %v4004 = vunpack.c.l.b16 %v3602
        %v4005 = vunpack.c.l.b16 %v3603
        %v4006 = vunpack.c.l.b16 %v3604
        %v4007 = vunpack.c.l.b16 %v3605
        %v4008 = vunpack.c.l.b16 %v3606
        %v4009 = vunpack.c.l.b16 %v3607
        %v4010 = vunpack.c.l.b16 %v3608
        %v4011 = vunpack.c.l.b16 %v3609
        %v4012 = vunpack.c.l.b16 %v3610
        %v4013 = vunpack.c.l.b16 %v3611
        %v4014 = vunpack.c.l.b16 %v3612
        %v4015 = vunpack.c.l.b16 %v3613
        %v4016 = vunpack.c.l.b16 %v3614
        %v4017 = vunpack.c.l.b16 %v3615
        %v4018 = vunpack.c.l.b16 %v3616
        %v4019 = vunpack.c.l.b16 %v3617
        %v4020 = vunpack.c.l.b16 %v3618
        %v4021 = vunpack.c.l.b16 %v3619
        %v4022 = vunpack.c.l.b16 %v3620
        %v4023 = vunpack.c.l.b16 %v3621
        %v4024 = vunpack.c.l.b16 %v3622
        %v4025 = vunpack.c.l.b16 %v3623
        %v4026 = vunpack.c.l.b16 %v3624
        %v4027 = vunpack.c.l.b16 %v3625
        %v4028 = vunpack.c.l.b16 %v3626
        %v4029 = vunpack.c.l.b16 %v3627
        %v4030 = vpack.c.b16 %v3999, %v3998
        %v4031 = vpack.c.b16 %v4001, %v4000
        %v4032 = vpack.c.b16 %v4003, %v4002
        %v4033 = vpack.c.b16 %v4005, %v4004
        %v4034 = vpack.c.b16 %v4007, %v4006
        %v4035 = vpack.c.b16 %v4009, %v4008
        %v4036 = vpack.c.b16 %v4011, %v4010
        %v4037 = vpack.c.b16 %v4013, %v4012
        %v4038 = vpack.c.b16 %v4015, %v4014
        %v4039 = vpack.c.b16 %v4017, %v4016
        %v4040 = vpack.c.b16 %v4019, %v4018
        %v4041 = vpack.c.b16 %v4021, %v4020
        %v4042 = vpack.c.b16 %v4023, %v4022
        %v4043 = vpack.c.b16 %v4025, %v4024
        %v4044 = vpack.c.b16 %v4027, %v4026
        %v4045 = vpack.c.b16 %v4029, %v4028
        %4062 = vmatpush.bf16.msra.mxu0 %v4037
        %4063 = vmatpush.bf16.msra.mxu0 %v4036
        %4064 = vmatpush.bf16.msra.mxu0 %v4035
        %4065 = vmatpush.bf16.msra.mxu0 %v4034
        %4066 = vmatpush.bf16.msra.mxu0 %v4033
        %4067 = vmatpush.bf16.msra.mxu0 %v4032
        %4068 = vmatpush.bf16.msra.mxu0 %v4031
        %4069 = vmatpush.bf16.msra.mxu0 %v4030
        %4070 = vmatmul.bf16.gmra.mxu0 %v3636
        %v4071 = vpop.f32.mrf.mxu0
        %v4072 = vadd.f32 %v3965, %v4071
        %v4073 = vpop.f32.mrf.mxu0
        %v4074 = vadd.f32 %v3964, %v4073
        %4075 = vdwg.mxu0
        %4076 = vmatpush.bf16.msra.mxu0 %v4045
        %4077 = vmatpush.bf16.msra.mxu0 %v4044
        %4078 = vmatpush.bf16.msra.mxu0 %v4043
        %4079 = vmatpush.bf16.msra.mxu0 %v4042
        %4080 = vmatpush.bf16.msra.mxu0 %v4041
        %4081 = vmatpush.bf16.msra.mxu0 %v4040
        %4082 = vmatpush.bf16.msra.mxu0 %v4039
        %4083 = vmatpush.bf16.msra.mxu0 %v4038
        %4084 = vmatmul.bf16.gmra.mxu0 %v3637
        %v4085 = vpop.f32.mrf.mxu0
        %v4086 = vadd.f32 %v4072, %v4085
        %v4087 = vpop.f32.mrf.mxu0
        %v4088 = vadd.f32 %v4074, %v4087
        %4089 = vdwg.mxu0
        %v4090 = vperm.slane %v1866, 0
        %v4091 = vadd.f32 %v4086, %v4090
        %v4092 = vadd.f32 %v4088, %v4090
        %v4093 = vmul.f32 %v4091, %v2629
        %v4094 = vmul.f32 %v4092, %v2630
        %v4095 = vadd.f32 %v4093, %v4094
        %v4096 = vrot.slane %v4095, 4
        %v4097 = vadd.f32 %v4095, %v4096
        %v4098 = vrot.slane %v4097, 2
        %v4099 = vadd.f32 %v4097, %v4098
        %v4100 = vrot.slane %v4099, 1
        %v4101 = vadd.f32 %v4099, %v4100
        %v4102 = vmul.f32 %v4093, %v4093
        %v4103 = vmul.f32 %v4094, %v4094
        %v4104 = vadd.f32 %v4102, %v4103
        %v4105 = vrot.slane %v4104, 4
        %v4106 = vadd.f32 %v4104, %v4105
        %v4107 = vrot.slane %v4106, 2
        %v4108 = vadd.f32 %v4106, %v4107
        %v4109 = vrot.slane %v4108, 1
        %v4110 = vadd.f32 %v4108, %v4109
        %4111 = vmatpush.msra.mxu0 %v2664
        %4112 = vmatpush.msra.mxu0 %v2663
        %4113 = vmatpush.msra.mxu0 %v2662
        %4114 = vmatpush.msra.mxu0 %v2661
        %4115 = vmatpush.msra.mxu0 %v2660
        %4116 = vmatpush.msra.mxu0 %v2659
        %4117 = vmatpush.msra.mxu0 %v2658
        %4118 = vmatpush.msra.mxu0 %v2657
        %4119 = vmatpush.msra.mxu0 %v2656
        %4120 = vmatpush.msra.mxu0 %v2655
        %4121 = vmatpush.msra.mxu0 %v2654
        %4122 = vmatpush.msra.mxu0 %v2653
        %4123 = vmatpush.msra.mxu0 %v2652
        %4124 = vmatpush.msra.mxu0 %v2651
        %4125 = vmatpush.msra.mxu0 %v2650
        %4126 = vmatpush.msra.mxu0 %v2649
        %4127 = vmatmul.f32.gmra.mxu0 %v4101
        %v4128 = vpop.f32.mrf.mxu0
        %v4129 = vadd.f32 0.0, %v4128
        %4130 = vdwg.mxu0
        %4131 = vmatpush.msra.mxu0 %v2664
        %4132 = vmatpush.msra.mxu0 %v2663
        %4133 = vmatpush.msra.mxu0 %v2662
        %4134 = vmatpush.msra.mxu0 %v2661
        %4135 = vmatpush.msra.mxu0 %v2660
        %4136 = vmatpush.msra.mxu0 %v2659
        %4137 = vmatpush.msra.mxu0 %v2658
        %4138 = vmatpush.msra.mxu0 %v2657
        %4139 = vmatpush.msra.mxu0 %v2656
        %4140 = vmatpush.msra.mxu0 %v2655
        %4141 = vmatpush.msra.mxu0 %v2654
        %4142 = vmatpush.msra.mxu0 %v2653
        %4143 = vmatpush.msra.mxu0 %v2652
        %4144 = vmatpush.msra.mxu0 %v2651
        %4145 = vmatpush.msra.mxu0 %v2650
        %4146 = vmatpush.msra.mxu0 %v2649
        %4147 = vmatmul.f32.gmra.mxu0 %v4110
        %v4148 = vpop.f32.mrf.mxu0
        %v4149 = vadd.f32 0.0, %v4148
        %4150 = vdwg.mxu0
        %v4151 = vmul.f32 %v4129, %v4129
        %v4152 = vsub.f32 %v4149, %v4151
        %v4153 = vmax.f32 %v4152, 0.0
        %v4154 = vadd.f32 %v4153, 1e-05
        %v4155 = vrsqrt.pop %v4154
        %v4156 = vmul.f32 %v4155, %v4154
        %v4157 = vmul.f32 %v4156, %v4155
        %v4158 = vmul.f32 0.5, %v4157
        %v4159 = vsub.f32 1.5, %v4158
        %v4160 = vmul.f32 %v4155, %v4159
        %vm4161 = vweird.f32 %v4154
        %vm4162 = vweird.f32 %v4155
        %vm4163 = vmor %vm4161, %vm4162
        %v4164 = vsel %vm4163, %v4155, %v4160
        %v4165 = vperm.slane %v1948, 5
        %v4167 = vmul.f32 %v4164, %v4165
        %v4168 = vmul.f32 %v4129, %v4167
        %v4169 = vrot.slane %v1949, 5
        %v4171 = vsub.f32 %v4169, %v4168
        %v4172 = vperm.slane %v4167, 0
        %v4173 = vmul.f32 %v4091, %v4172
        %v4174 = vmul.f32 %v4092, %v4172
        %v4176 = vperm.slane %v4171, 0
        %v4178 = vadd.f32 %v4173, %v4176
        %v4179 = vadd.f32 %v4174, %v4176
        %v4180 = vxor.u32 %v4178, 2147483648
        %v4181 = vxor.u32 %v4179, 2147483648
        %v4182 = vmul.f32 %v4180, 1.442695
        %v4183 = vpow.pop %v4182
        %v4184 = vmul.f32 %v4181, 1.442695
        %v4185 = vpow.pop %v4184
        %v4186 = vadd.f32 %v4183, 1.0
        %v4187 = vadd.f32 %v4185, 1.0
        %v4188 = vrcp.pop %v4186
        %v4189 = vmul.f32 %v4186, %v4188
        %v4190 = vsub.f32 1.0, %v4189
        %v4191 = vmul.f32 %v4188, %v4190
        %v4192 = vadd.f32 %v4188, %v4191
        %vm4193 = vweird.f32 %v4186
        %vm4194 = vweird.f32 %v4188
        %vm4195 = vmor %vm4193, %vm4194
        %v4196 = vsel %vm4195, %v4188, %v4192
        %v4197 = vand.u32 2147483647, %v4186
        %vm4198 = vcmp.eq.f32.partialorder %v4197, 8.507059e+37
        %v4199 = vand.u32 %v4186, 2147483648
        %v4200 = vor.u32 1.1754944e-38, %v4199
        %v4201 = vsel %vm4198, %v4200, %v4196
        %v4202 = vmul.f32 1.0, %v4201
        %v4203 = vrcp.pop %v4187
        %v4204 = vmul.f32 %v4187, %v4203
        %v4205 = vsub.f32 1.0, %v4204
        %v4206 = vmul.f32 %v4203, %v4205
        %v4207 = vadd.f32 %v4203, %v4206
        %vm4208 = vweird.f32 %v4187
        %vm4209 = vweird.f32 %v4203
        %vm4210 = vmor %vm4208, %vm4209
        %v4211 = vsel %vm4210, %v4203, %v4207
        %v4212 = vand.u32 2147483647, %v4187
        %vm4213 = vcmp.eq.f32.partialorder %v4212, 8.507059e+37
        %v4214 = vand.u32 %v4187, 2147483648
        %v4215 = vor.u32 1.1754944e-38, %v4214
        %v4216 = vsel %vm4213, %v4215, %v4211
        %v4217 = vmul.f32 1.0, %v4216
        %v4218 = vmul.f32 %v4178, %v4202
        %v4219 = vmul.f32 %v4179, %v4217
        %v4220 = vmul.f32 %v4218, %v2629
        %v4221 = vmul.f32 %v2772, %v2629
        %v4222 = vmul.f32 %v4219, %v2630
        %v4223 = vmul.f32 %v2773, %v2630
        %v4224 = vrot.slane %v4220, 4
        %v4225 = vrot.slane %v4221, 4
        %v4226 = vrot.slane %v4222, 4
        %v4227 = vrot.slane %v4223, 4
        %v4228 = vsel %vm2776, %v4224, %v4226
        %v4229 = vsel %vm2776, %v4225, %v4227
        %v4230 = vsel %vm2776, %v4226, %v4224
        %v4231 = vsel %vm2776, %v4227, %v4225
        %v4232 = vmul.f32 %v4228, %v2791
        %v4233 = vmul.f32 %v4229, %v2791
        %v4234 = vmul.f32 %v4230, %v2792
        %v4235 = vmul.f32 %v4231, %v2792
        %v4236 = vpack.c.bf16 %v4221, %v4220
        %v4237 = vpack.c.bf16 %v4223, %v4222
        %v4238 = vld [vmem:[%s16] sm:$0xf]
        %v4239 = vld [vmem:[%s16 + $0x4] sm:$0xf]
        %v4240 = vld [vmem:[%s16 + $0x8] sm:$0xf]
        %v4241 = vld [vmem:[%s16 + $0xc] sm:$0xf]
        %v4242 = vld [vmem:[%s16 + $0x10] sm:$0xf]
        %v4243 = vld [vmem:[%s16 + $0x14] sm:$0xf]
        %v4244 = vld [vmem:[%s16 + $0x18] sm:$0xf]
        %v4245 = vld [vmem:[%s16 + $0x1c] sm:$0xf]
        %v4246 = vld [vmem:[%s16 + $0x20] sm:$0xf]
        %v4247 = vld [vmem:[%s16 + $0x24] sm:$0xf]
        %v4248 = vld [vmem:[%s16 + $0x28] sm:$0xf]
        %v4249 = vld [vmem:[%s16 + $0x2c] sm:$0xf]
        %v4250 = vld [vmem:[%s16 + $0x30] sm:$0xf]
        %v4251 = vld [vmem:[%s16 + $0x34] sm:$0xf]
        %v4252 = vld [vmem:[%s16 + $0x38] sm:$0xf]
        %v4253 = vld [vmem:[%s16 + $0x3c] sm:$0xf]
        %v4254 = vld [vmem:[%s16 + $0x40] sm:$0xf]
        %v4255 = vld [vmem:[%s16 + $0x44] sm:$0xf]
        %v4256 = vld [vmem:[%s16 + $0x48] sm:$0xf]
        %v4257 = vld [vmem:[%s16 + $0x4c] sm:$0xf]
        %v4258 = vld [vmem:[%s16 + $0x50] sm:$0xf]
        %v4259 = vld [vmem:[%s16 + $0x54] sm:$0xf]
        %v4260 = vld [vmem:[%s16 + $0x58] sm:$0xf]
        %v4261 = vld [vmem:[%s16 + $0x5c] sm:$0xf]
        %v4262 = vld [vmem:[%s16 + $0x60] sm:$0xf]
        %v4263 = vld [vmem:[%s16 + $0x64] sm:$0xf]
        %v4264 = vld [vmem:[%s16 + $0x68] sm:$0xf]
        %v4265 = vld [vmem:[%s16 + $0x6c] sm:$0xf]
        %v4266 = vld [vmem:[%s16 + $0x70] sm:$0xf]
        %v4267 = vld [vmem:[%s16 + $0x74] sm:$0xf]
        %v4268 = vld [vmem:[%s16 + $0x78] sm:$0xf]
        %v4269 = vld [vmem:[%s16 + $0x7c] sm:$0xf]
        %v4270 = vpack.c.bf16 %v4233, %v4232
        %v4271 = vpack.c.bf16 %v4235, %v4234
        %v4274 = vunpack.c.l.b16 %v4236
        %v4275 = vunpack.c.h.b16 %v4236
        %v4276 = vunpack.c.l.b16 %v4237
        %v4277 = vunpack.c.h.b16 %v4237
        %v4278 = vpack.c.b16 %v4276, %v4274
        %v4279 = vpack.c.b16 %v4277, %v4275
        %v4284 = vunpack.c.l.b16 %v4270
        %v4285 = vunpack.c.h.b16 %v4270
        %v4286 = vunpack.c.l.b16 %v4271
        %v4287 = vunpack.c.h.b16 %v4271
        %v4288 = vpack.c.b16 %v4286, %v4284
        %v4289 = vpack.c.b16 %v4287, %v4285
        %v4292 = vld [vmem:[%s17] sm:$0xf]
        %v4293 = vld [vmem:[%s17 + $0x4] sm:$0xf]
        %v4294 = vld [vmem:[%s17 + $0x8] sm:$0xf]
        %v4295 = vld [vmem:[%s17 + $0xc] sm:$0xf]
        %v4296 = vld [vmem:[%s17 + $0x10] sm:$0xf]
        %v4297 = vld [vmem:[%s17 + $0x14] sm:$0xf]
        %v4298 = vld [vmem:[%s17 + $0x18] sm:$0xf]
        %v4299 = vld [vmem:[%s17 + $0x1c] sm:$0xf]
        %v4300 = vld [vmem:[%s17 + $0x20] sm:$0xf]
        %v4301 = vld [vmem:[%s17 + $0x24] sm:$0xf]
        %v4302 = vld [vmem:[%s17 + $0x28] sm:$0xf]
        %v4303 = vld [vmem:[%s17 + $0x2c] sm:$0xf]
        %v4304 = vld [vmem:[%s17 + $0x30] sm:$0xf]
        %v4305 = vld [vmem:[%s17 + $0x34] sm:$0xf]
        %v4306 = vld [vmem:[%s17 + $0x38] sm:$0xf]
        %v4307 = vld [vmem:[%s17 + $0x3c] sm:$0xf]
        %v4308 = vld [vmem:[%s17 + $0x40] sm:$0xf]
        %v4309 = vld [vmem:[%s17 + $0x44] sm:$0xf]
        %v4310 = vld [vmem:[%s17 + $0x48] sm:$0xf]
        %v4311 = vld [vmem:[%s17 + $0x4c] sm:$0xf]
        %v4312 = vld [vmem:[%s17 + $0x50] sm:$0xf]
        %v4313 = vld [vmem:[%s17 + $0x54] sm:$0xf]
        %v4314 = vld [vmem:[%s17 + $0x58] sm:$0xf]
        %v4315 = vld [vmem:[%s17 + $0x5c] sm:$0xf]
        %v4316 = vld [vmem:[%s17 + $0x60] sm:$0xf]
        %v4317 = vld [vmem:[%s17 + $0x64] sm:$0xf]
        %v4318 = vld [vmem:[%s17 + $0x68] sm:$0xf]
        %v4319 = vld [vmem:[%s17 + $0x6c] sm:$0xf]
        %v4320 = vld [vmem:[%s17 + $0x70] sm:$0xf]
        %v4321 = vld [vmem:[%s17 + $0x74] sm:$0xf]
        %v4322 = vld [vmem:[%s17 + $0x78] sm:$0xf]
        %v4323 = vld [vmem:[%s17 + $0x7c] sm:$0xf]
        %v4324 = vld [vmem:[%s17 + $0x80] sm:$0xf]
        %v4325 = vld [vmem:[%s17 + $0x84] sm:$0xf]
        %v4326 = vld [vmem:[%s17 + $0x88] sm:$0xf]
        %v4327 = vld [vmem:[%s17 + $0x8c] sm:$0xf]
        %v4328 = vld [vmem:[%s17 + $0x90] sm:$0xf]
        %v4329 = vld [vmem:[%s17 + $0x94] sm:$0xf]
        %v4330 = vld [vmem:[%s17 + $0x98] sm:$0xf]
        %v4331 = vld [vmem:[%s17 + $0x9c] sm:$0xf]
        %v4332 = vld [vmem:[%s17 + $0xa0] sm:$0xf]
        %v4333 = vld [vmem:[%s17 + $0xa4] sm:$0xf]
        %v4334 = vld [vmem:[%s17 + $0xa8] sm:$0xf]
        %v4335 = vld [vmem:[%s17 + $0xac] sm:$0xf]
        %v4336 = vld [vmem:[%s17 + $0xb0] sm:$0xf]
        %v4337 = vld [vmem:[%s17 + $0xb4] sm:$0xf]
        %v4338 = vld [vmem:[%s17 + $0xb8] sm:$0xf]
        %v4339 = vld [vmem:[%s17 + $0xbc] sm:$0xf]
        %v4340 = vld [vmem:[%s17 + $0xc0] sm:$0xf]
        %v4341 = vld [vmem:[%s17 + $0xc4] sm:$0xf]
        %v4342 = vld [vmem:[%s17 + $0xc8] sm:$0xf]
        %v4343 = vld [vmem:[%s17 + $0xcc] sm:$0xf]
        %v4344 = vld [vmem:[%s17 + $0xd0] sm:$0xf]
        %v4345 = vld [vmem:[%s17 + $0xd4] sm:$0xf]
        %v4346 = vld [vmem:[%s17 + $0xd8] sm:$0xf]
        %v4347 = vld [vmem:[%s17 + $0xdc] sm:$0xf]
        %v4348 = vld [vmem:[%s17 + $0xe0] sm:$0xf]
        %v4349 = vld [vmem:[%s17 + $0xe4] sm:$0xf]
        %v4350 = vld [vmem:[%s17 + $0xe8] sm:$0xf]
        %v4351 = vld [vmem:[%s17 + $0xec] sm:$0xf]
        %v4352 = vld [vmem:[%s17 + $0xf0] sm:$0xf]
        %v4353 = vld [vmem:[%s17 + $0xf4] sm:$0xf]
        %v4354 = vld [vmem:[%s17 + $0xf8] sm:$0xf]
        %v4355 = vld [vmem:[%s17 + $0xfc] sm:$0xf]
        %v4420 = vunpack.c.l.b16 %v4292
        %v4421 = vunpack.c.l.b16 %v4293
        %v4422 = vunpack.c.l.b16 %v4294
        %v4423 = vunpack.c.l.b16 %v4295
        %v4424 = vunpack.c.l.b16 %v4296
        %v4425 = vunpack.c.l.b16 %v4297
        %v4426 = vunpack.c.l.b16 %v4298
        %v4427 = vunpack.c.l.b16 %v4299
        %v4428 = vunpack.c.l.b16 %v4300
        %v4429 = vunpack.c.l.b16 %v4301
        %v4430 = vunpack.c.l.b16 %v4302
        %v4431 = vunpack.c.l.b16 %v4303
        %v4432 = vunpack.c.l.b16 %v4304
        %v4433 = vunpack.c.l.b16 %v4305
        %v4434 = vunpack.c.l.b16 %v4306
        %v4435 = vunpack.c.l.b16 %v4307
        %v4436 = vunpack.c.l.b16 %v4308
        %v4437 = vunpack.c.l.b16 %v4309
        %v4438 = vunpack.c.l.b16 %v4310
        %v4439 = vunpack.c.l.b16 %v4311
        %v4440 = vunpack.c.l.b16 %v4312
        %v4441 = vunpack.c.l.b16 %v4313
        %v4442 = vunpack.c.l.b16 %v4314
        %v4443 = vunpack.c.l.b16 %v4315
        %v4444 = vunpack.c.l.b16 %v4316
        %v4445 = vunpack.c.l.b16 %v4317
        %v4446 = vunpack.c.l.b16 %v4318
        %v4447 = vunpack.c.l.b16 %v4319
        %v4448 = vunpack.c.l.b16 %v4320
        %v4449 = vunpack.c.l.b16 %v4321
        %v4450 = vunpack.c.l.b16 %v4322
        %v4451 = vunpack.c.l.b16 %v4323
        %v4452 = vunpack.c.l.b16 %v4324
        %v4453 = vunpack.c.l.b16 %v4325
        %v4454 = vunpack.c.l.b16 %v4326
        %v4455 = vunpack.c.l.b16 %v4327
        %v4456 = vunpack.c.l.b16 %v4328
        %v4457 = vunpack.c.l.b16 %v4329
        %v4458 = vunpack.c.l.b16 %v4330
        %v4459 = vunpack.c.l.b16 %v4331
        %v4460 = vunpack.c.l.b16 %v4332
        %v4461 = vunpack.c.l.b16 %v4333
        %v4462 = vunpack.c.l.b16 %v4334
        %v4463 = vunpack.c.l.b16 %v4335
        %v4464 = vunpack.c.l.b16 %v4336
        %v4465 = vunpack.c.l.b16 %v4337
        %v4466 = vunpack.c.l.b16 %v4338
        %v4467 = vunpack.c.l.b16 %v4339
        %v4468 = vunpack.c.l.b16 %v4340
        %v4469 = vunpack.c.l.b16 %v4341
        %v4470 = vunpack.c.l.b16 %v4342
        %v4471 = vunpack.c.l.b16 %v4343
        %v4472 = vunpack.c.l.b16 %v4344
        %v4473 = vunpack.c.l.b16 %v4345
        %v4474 = vunpack.c.l.b16 %v4346
        %v4475 = vunpack.c.l.b16 %v4347
        %v4476 = vunpack.c.l.b16 %v4348
        %v4477 = vunpack.c.l.b16 %v4349
        %v4478 = vunpack.c.l.b16 %v4350
        %v4479 = vunpack.c.l.b16 %v4351
        %v4480 = vunpack.c.l.b16 %v4352
        %v4481 = vunpack.c.l.b16 %v4353
        %v4482 = vunpack.c.l.b16 %v4354
        %v4483 = vunpack.c.l.b16 %v4355
        %v4484 = vpack.c.b16 %v4421, %v4420
        %v4485 = vpack.c.b16 %v4423, %v4422
        %v4486 = vpack.c.b16 %v4425, %v4424
        %v4487 = vpack.c.b16 %v4427, %v4426
        %v4488 = vpack.c.b16 %v4429, %v4428
        %v4489 = vpack.c.b16 %v4431, %v4430
        %v4490 = vpack.c.b16 %v4433, %v4432
        %v4491 = vpack.c.b16 %v4435, %v4434
        %v4492 = vpack.c.b16 %v4437, %v4436
        %v4493 = vpack.c.b16 %v4439, %v4438
        %v4494 = vpack.c.b16 %v4441, %v4440
        %v4495 = vpack.c.b16 %v4443, %v4442
        %v4496 = vpack.c.b16 %v4445, %v4444
        %v4497 = vpack.c.b16 %v4447, %v4446
        %v4498 = vpack.c.b16 %v4449, %v4448
        %v4499 = vpack.c.b16 %v4451, %v4450
        %v4500 = vpack.c.b16 %v4453, %v4452
        %v4501 = vpack.c.b16 %v4455, %v4454
        %v4502 = vpack.c.b16 %v4457, %v4456
        %v4503 = vpack.c.b16 %v4459, %v4458
        %v4504 = vpack.c.b16 %v4461, %v4460
        %v4505 = vpack.c.b16 %v4463, %v4462
        %v4506 = vpack.c.b16 %v4465, %v4464
        %v4507 = vpack.c.b16 %v4467, %v4466
        %v4508 = vpack.c.b16 %v4469, %v4468
        %v4509 = vpack.c.b16 %v4471, %v4470
        %v4510 = vpack.c.b16 %v4473, %v4472
        %v4511 = vpack.c.b16 %v4475, %v4474
        %v4512 = vpack.c.b16 %v4477, %v4476
        %v4513 = vpack.c.b16 %v4479, %v4478
        %v4514 = vpack.c.b16 %v4481, %v4480
        %v4515 = vpack.c.b16 %v4483, %v4482
        %4548 = vmatpush.bf16.msra.mxu0 %v4491
        %4549 = vmatpush.bf16.msra.mxu0 %v4490
        %4550 = vmatpush.bf16.msra.mxu0 %v4489
        %4551 = vmatpush.bf16.msra.mxu0 %v4488
        %4552 = vmatpush.bf16.msra.mxu0 %v4487
        %4553 = vmatpush.bf16.msra.mxu0 %v4486
        %4554 = vmatpush.bf16.msra.mxu0 %v4485
        %4555 = vmatpush.bf16.msra.mxu0 %v4484
        %4556 = vmatmul.bf16.gmra.mxu0 %v4278
        %v4557 = vpop.f32.mrf.mxu0
        %v4558 = vadd.f32 0.0, %v4557
        %v4559 = vpop.f32.mrf.mxu0
        %v4560 = vadd.f32 0.0, %v4559
        %4561 = vdwg.mxu0
        %4562 = vmatpush.bf16.msra.mxu0 %v4499
        %4563 = vmatpush.bf16.msra.mxu0 %v4498
        %4564 = vmatpush.bf16.msra.mxu0 %v4497
        %4565 = vmatpush.bf16.msra.mxu0 %v4496
        %4566 = vmatpush.bf16.msra.mxu0 %v4495
        %4567 = vmatpush.bf16.msra.mxu0 %v4494
        %4568 = vmatpush.bf16.msra.mxu0 %v4493
        %4569 = vmatpush.bf16.msra.mxu0 %v4492
        %4570 = vmatmul.bf16.gmra.mxu0 %v4279
        %v4571 = vpop.f32.mrf.mxu0
        %v4572 = vadd.f32 %v4558, %v4571
        %v4573 = vpop.f32.mrf.mxu0
        %v4574 = vadd.f32 %v4560, %v4573
        %4575 = vdwg.mxu0
        %4576 = vmatpush.bf16.msra.mxu0 %v4507
        %4577 = vmatpush.bf16.msra.mxu0 %v4506
        %4578 = vmatpush.bf16.msra.mxu0 %v4505
        %4579 = vmatpush.bf16.msra.mxu0 %v4504
        %4580 = vmatpush.bf16.msra.mxu0 %v4503
        %4581 = vmatpush.bf16.msra.mxu0 %v4502
        %4582 = vmatpush.bf16.msra.mxu0 %v4501
        %4583 = vmatpush.bf16.msra.mxu0 %v4500
        %4584 = vmatmul.bf16.gmra.mxu0 %v4288
        %v4585 = vpop.f32.mrf.mxu0
        %v4586 = vadd.f32 %v4572, %v4585
        %v4587 = vpop.f32.mrf.mxu0
        %v4588 = vadd.f32 %v4574, %v4587
        %4589 = vdwg.mxu0
        %4590 = vmatpush.bf16.msra.mxu0 %v4515
        %4591 = vmatpush.bf16.msra.mxu0 %v4514
        %4592 = vmatpush.bf16.msra.mxu0 %v4513
        %4593 = vmatpush.bf16.msra.mxu0 %v4512
        %4594 = vmatpush.bf16.msra.mxu0 %v4511
        %4595 = vmatpush.bf16.msra.mxu0 %v4510
        %4596 = vmatpush.bf16.msra.mxu0 %v4509
        %4597 = vmatpush.bf16.msra.mxu0 %v4508
        %4598 = vmatmul.bf16.gmra.mxu0 %v4289
        %v4599 = vpop.f32.mrf.mxu0
        %v4600 = vadd.f32 %v4586, %v4599
        %v4601 = vpop.f32.mrf.mxu0
        %v4602 = vadd.f32 %v4588, %v4601
        %4603 = vdwg.mxu0
        %v4604 = vrot.slane %v4600, 6
        %v4605 = vrot.slane %v4602, 6
        %v4606 = vsel %vm2459, %v4604, %v4605
        %v4607 = vsel %vm2459, %v4605, %v4604
        %v4640 = vunpack.c.l.b16 %v4238
        %v4641 = vunpack.c.l.b16 %v4239
        %v4642 = vunpack.c.l.b16 %v4240
        %v4643 = vunpack.c.l.b16 %v4241
        %v4644 = vunpack.c.l.b16 %v4242
        %v4645 = vunpack.c.l.b16 %v4243
        %v4646 = vunpack.c.l.b16 %v4244
        %v4647 = vunpack.c.l.b16 %v4245
        %v4648 = vunpack.c.l.b16 %v4246
        %v4649 = vunpack.c.l.b16 %v4247
        %v4650 = vunpack.c.l.b16 %v4248
        %v4651 = vunpack.c.l.b16 %v4249
        %v4652 = vunpack.c.l.b16 %v4250
        %v4653 = vunpack.c.l.b16 %v4251
        %v4654 = vunpack.c.l.b16 %v4252
        %v4655 = vunpack.c.l.b16 %v4253
        %v4656 = vunpack.c.l.b16 %v4254
        %v4657 = vunpack.c.l.b16 %v4255
        %v4658 = vunpack.c.l.b16 %v4256
        %v4659 = vunpack.c.l.b16 %v4257
        %v4660 = vunpack.c.l.b16 %v4258
        %v4661 = vunpack.c.l.b16 %v4259
        %v4662 = vunpack.c.l.b16 %v4260
        %v4663 = vunpack.c.l.b16 %v4261
        %v4664 = vunpack.c.l.b16 %v4262
        %v4665 = vunpack.c.l.b16 %v4263
        %v4666 = vunpack.c.l.b16 %v4264
        %v4667 = vunpack.c.l.b16 %v4265
        %v4668 = vunpack.c.l.b16 %v4266
        %v4669 = vunpack.c.l.b16 %v4267
        %v4670 = vunpack.c.l.b16 %v4268
        %v4671 = vunpack.c.l.b16 %v4269
        %v4672 = vpack.c.b16 %v4641, %v4640
        %v4673 = vpack.c.b16 %v4643, %v4642
        %v4674 = vpack.c.b16 %v4645, %v4644
        %v4675 = vpack.c.b16 %v4647, %v4646
        %v4676 = vpack.c.b16 %v4649, %v4648
        %v4677 = vpack.c.b16 %v4651, %v4650
        %v4678 = vpack.c.b16 %v4653, %v4652
        %v4679 = vpack.c.b16 %v4655, %v4654
        %v4680 = vpack.c.b16 %v4657, %v4656
        %v4681 = vpack.c.b16 %v4659, %v4658
        %v4682 = vpack.c.b16 %v4661, %v4660
        %v4683 = vpack.c.b16 %v4663, %v4662
        %v4684 = vpack.c.b16 %v4665, %v4664
        %v4685 = vpack.c.b16 %v4667, %v4666
        %v4686 = vpack.c.b16 %v4669, %v4668
        %v4687 = vpack.c.b16 %v4671, %v4670
        %4704 = vmatpush.bf16.msra.mxu0 %v4679
        %4705 = vmatpush.bf16.msra.mxu0 %v4678
        %4706 = vmatpush.bf16.msra.mxu0 %v4677
        %4707 = vmatpush.bf16.msra.mxu0 %v4676
        %4708 = vmatpush.bf16.msra.mxu0 %v4675
        %4709 = vmatpush.bf16.msra.mxu0 %v4674
        %4710 = vmatpush.bf16.msra.mxu0 %v4673
        %4711 = vmatpush.bf16.msra.mxu0 %v4672
        %4712 = vmatmul.bf16.gmra.mxu0 %v4278
        %v4713 = vpop.f32.mrf.mxu0
        %v4714 = vadd.f32 %v4607, %v4713
        %v4715 = vpop.f32.mrf.mxu0
        %v4716 = vadd.f32 %v4606, %v4715
        %4717 = vdwg.mxu0
        %4718 = vmatpush.bf16.msra.mxu0 %v4687
        %4719 = vmatpush.bf16.msra.mxu0 %v4686
        %4720 = vmatpush.bf16.msra.mxu0 %v4685
        %4721 = vmatpush.bf16.msra.mxu0 %v4684
        %4722 = vmatpush.bf16.msra.mxu0 %v4683
        %4723 = vmatpush.bf16.msra.mxu0 %v4682
        %4724 = vmatpush.bf16.msra.mxu0 %v4681
        %4725 = vmatpush.bf16.msra.mxu0 %v4680
        %4726 = vmatmul.bf16.gmra.mxu0 %v4279
        %v4727 = vpop.f32.mrf.mxu0
        %v4728 = vadd.f32 %v4714, %v4727
        %v4729 = vpop.f32.mrf.mxu0
        %v4730 = vadd.f32 %v4716, %v4729
        %4731 = vdwg.mxu0
        %v4732 = vperm.slane %v1906, 0
        %v4733 = vadd.f32 %v4728, %v4732
        %v4734 = vadd.f32 %v4730, %v4732
        %v4735 = vmul.f32 %v4733, %v2308
        %v4736 = vmul.f32 %v4734, %v2309
        %v4737 = vsel %vm1997, %v4735, 0.0
        %v4738 = vsel %vm1997, %v4736, 0.0
        %v4739 = vadd.f32 %v4737, %v4738
        %v4740 = vrot.slane %v4739, 4
        %v4741 = vadd.f32 %v4739, %v4740
        %v4742 = vrot.slane %v4741, 2
        %v4743 = vadd.f32 %v4741, %v4742
        %v4744 = vrot.slane %v4743, 1
        %v4745 = vadd.f32 %v4743, %v4744
        %v4746 = vmul.f32 %v4735, %v4735
        %v4747 = vmul.f32 %v4736, %v4736
        %v4748 = vsel %vm1997, %v4746, 0.0
        %v4749 = vsel %vm1997, %v4747, 0.0
        %v4750 = vadd.f32 %v4748, %v4749
        %v4751 = vrot.slane %v4750, 4
        %v4752 = vadd.f32 %v4750, %v4751
        %v4753 = vrot.slane %v4752, 2
        %v4754 = vadd.f32 %v4752, %v4753
        %v4755 = vrot.slane %v4754, 1
        %v4756 = vadd.f32 %v4754, %v4755
        %v4758 = vsel %vm1997, %v4745, 0
        %4760 = vmatpush.msra.mxu0 0.0
        %4761 = vmatpush.msra.mxu0 0.0
        %4762 = vmatpush.msra.mxu0 0.0
        %4763 = vmatpush.msra.mxu0 0.0
        %4764 = vmatpush.msra.mxu0 0.0
        %4765 = vmatpush.msra.mxu0 0.0
        %4766 = vmatpush.msra.mxu0 0.0
        %4767 = vmatpush.msra.mxu0 0.0
        %4768 = vmatpush.msra.mxu0 %v2339
        %4769 = vmatpush.msra.mxu0 %v2338
        %4770 = vmatpush.msra.mxu0 %v2337
        %4771 = vmatpush.msra.mxu0 %v2336
        %4772 = vmatpush.msra.mxu0 %v2335
        %4773 = vmatpush.msra.mxu0 %v2334
        %4774 = vmatpush.msra.mxu0 %v2333
        %4775 = vmatpush.msra.mxu0 %v2332
        %4776 = vmatmul.f32.gmra.mxu0 %v4758
        %v4777 = vpop.f32.mrf.mxu0
        %v4778 = vadd.f32 0.0, %v4777
        %4779 = vdwg.mxu0
        %v4781 = vsel %vm1997, %v4756, 0
        %4783 = vmatpush.msra.mxu0 0.0
        %4784 = vmatpush.msra.mxu0 0.0
        %4785 = vmatpush.msra.mxu0 0.0
        %4786 = vmatpush.msra.mxu0 0.0
        %4787 = vmatpush.msra.mxu0 0.0
        %4788 = vmatpush.msra.mxu0 0.0
        %4789 = vmatpush.msra.mxu0 0.0
        %4790 = vmatpush.msra.mxu0 0.0
        %4791 = vmatpush.msra.mxu0 %v2339
        %4792 = vmatpush.msra.mxu0 %v2338
        %4793 = vmatpush.msra.mxu0 %v2337
        %4794 = vmatpush.msra.mxu0 %v2336
        %4795 = vmatpush.msra.mxu0 %v2335
        %4796 = vmatpush.msra.mxu0 %v2334
        %4797 = vmatpush.msra.mxu0 %v2333
        %4798 = vmatpush.msra.mxu0 %v2332
        %4799 = vmatmul.f32.gmra.mxu0 %v4781
        %v4800 = vpop.f32.mrf.mxu0
        %v4801 = vadd.f32 0.0, %v4800
        %4802 = vdwg.mxu0
        %v4803 = vmul.f32 %v4778, %v4778
        %v4804 = vsub.f32 %v4801, %v4803
        %v4805 = vmax.f32 %v4804, 0.0
        %v4806 = vadd.f32 %v4805, 1e-05
        %v4807 = vrsqrt.pop %v4806
        %v4808 = vmul.f32 %v4807, %v4806
        %v4809 = vmul.f32 %v4808, %v4807
        %v4810 = vmul.f32 0.5, %v4809
        %v4811 = vsub.f32 1.5, %v4810
        %v4812 = vmul.f32 %v4807, %v4811
        %vm4813 = vweird.f32 %v4806
        %vm4814 = vweird.f32 %v4807
        %vm4815 = vmor %vm4813, %vm4814
        %v4816 = vsel %vm4815, %v4807, %v4812
        %v4817 = vperm.slane %v1948, 6
        %v4819 = vmul.f32 %v4816, %v4817
        %v4820 = vmul.f32 %v4778, %v4819
        %v4821 = vrot.slane %v1949, 6
        %v4823 = vsub.f32 %v4821, %v4820
        %v4824 = vperm.slane %v4819, 0
        %v4825 = vmul.f32 %v4733, %v4824
        %v4826 = vmul.f32 %v4734, %v4824
        %v4828 = vperm.slane %v4823, 0
        %v4830 = vadd.f32 %v4825, %v4828
        %v4831 = vadd.f32 %v4826, %v4828
        %v4832 = vxor.u32 %v4830, 2147483648
        %v4833 = vxor.u32 %v4831, 2147483648
        %v4834 = vmul.f32 %v4832, 1.442695
        %v4835 = vpow.pop %v4834
        %v4836 = vmul.f32 %v4833, 1.442695
        %v4837 = vpow.pop %v4836
        %v4838 = vadd.f32 %v4835, 1.0
        %v4839 = vadd.f32 %v4837, 1.0
        %v4840 = vrcp.pop %v4838
        %v4841 = vmul.f32 %v4838, %v4840
        %v4842 = vsub.f32 1.0, %v4841
        %v4843 = vmul.f32 %v4840, %v4842
        %v4844 = vadd.f32 %v4840, %v4843
        %vm4845 = vweird.f32 %v4838
        %vm4846 = vweird.f32 %v4840
        %vm4847 = vmor %vm4845, %vm4846
        %v4848 = vsel %vm4847, %v4840, %v4844
        %v4849 = vand.u32 2147483647, %v4838
        %vm4850 = vcmp.eq.f32.partialorder %v4849, 8.507059e+37
        %v4851 = vand.u32 %v4838, 2147483648
        %v4852 = vor.u32 1.1754944e-38, %v4851
        %v4853 = vsel %vm4850, %v4852, %v4848
        %v4854 = vmul.f32 1.0, %v4853
        %v4855 = vrcp.pop %v4839
        %v4856 = vmul.f32 %v4839, %v4855
        %v4857 = vsub.f32 1.0, %v4856
        %v4858 = vmul.f32 %v4855, %v4857
        %v4859 = vadd.f32 %v4855, %v4858
        %vm4860 = vweird.f32 %v4839
        %vm4861 = vweird.f32 %v4855
        %vm4862 = vmor %vm4860, %vm4861
        %v4863 = vsel %vm4862, %v4855, %v4859
        %v4864 = vand.u32 2147483647, %v4839
        %vm4865 = vcmp.eq.f32.partialorder %v4864, 8.507059e+37
        %v4866 = vand.u32 %v4839, 2147483648
        %v4867 = vor.u32 1.1754944e-38, %v4866
        %v4868 = vsel %vm4865, %v4867, %v4863
        %v4869 = vmul.f32 1.0, %v4868
        %v4870 = vmul.f32 %v4830, %v4854
        %v4871 = vmul.f32 %v4831, %v4869
        %v4872 = vsel %vm1997, %v4870, %v2486
        %v4873 = vsel %vm1997, %v4871, %v2488
        %v4874 = vmul.f32 %v4872, %v2308
        %v4875 = vmul.f32 %v4873, %v2309
        %v4876 = vrot.slane %v4874, 2
        %v4877 = vrot.slane %v4875, 2
        %v4878 = vsel %vm2472, %v4876, %v4877
        %v4879 = vsel %vm2472, %v4877, %v4876
        %v4880 = vmul.f32 %v4878, %v2479
        %v4881 = vmul.f32 %v4879, %v2480
        %v4882 = vpack.c.bf16 %v4874, %v4874
        %v4883 = vpack.c.bf16 %v4875, %v4875
        %v4884 = vld [vmem:[%s18] sm:$0xf]
        %v4885 = vld [vmem:[%s18 + $0x4] sm:$0xf]
        %v4886 = vld [vmem:[%s18 + $0x8] sm:$0xf]
        %v4887 = vld [vmem:[%s18 + $0xc] sm:$0xf]
        %v4888 = vld [vmem:[%s18 + $0x10] sm:$0xf]
        %v4889 = vld [vmem:[%s18 + $0x14] sm:$0xf]
        %v4890 = vld [vmem:[%s18 + $0x18] sm:$0xf]
        %v4891 = vld [vmem:[%s18 + $0x1c] sm:$0xf]
        %v4892 = vld [vmem:[%s18 + $0x20] sm:$0xf]
        %v4893 = vld [vmem:[%s18 + $0x24] sm:$0xf]
        %v4894 = vld [vmem:[%s18 + $0x28] sm:$0xf]
        %v4895 = vld [vmem:[%s18 + $0x2c] sm:$0xf]
        %v4896 = vld [vmem:[%s18 + $0x30] sm:$0xf]
        %v4897 = vld [vmem:[%s18 + $0x34] sm:$0xf]
        %v4898 = vld [vmem:[%s18 + $0x38] sm:$0xf]
        %v4899 = vld [vmem:[%s18 + $0x3c] sm:$0xf]
        %v4900 = vpack.c.bf16 %v4880, %v4880
        %v4901 = vpack.c.bf16 %v4881, %v4881
        %v4904 = vunpack.c.l.b16 %v4882
        %v4905 = vunpack.c.l.b16 %v4883
        %v4906 = vpack.c.b16 %v4905, %v4904
        %v4910 = vunpack.c.l.b16 %v4900
        %v4911 = vunpack.c.l.b16 %v4901
        %v4912 = vpack.c.b16 %v4911, %v4910
        %v4914 = vld [vmem:[%s19] sm:$0xf]
        %v4915 = vld [vmem:[%s19 + $0x4] sm:$0xf]
        %v4916 = vld [vmem:[%s19 + $0x8] sm:$0xf]
        %v4917 = vld [vmem:[%s19 + $0xc] sm:$0xf]
        %v4918 = vld [vmem:[%s19 + $0x10] sm:$0xf]
        %v4919 = vld [vmem:[%s19 + $0x14] sm:$0xf]
        %v4920 = vld [vmem:[%s19 + $0x18] sm:$0xf]
        %v4921 = vld [vmem:[%s19 + $0x1c] sm:$0xf]
        %v4922 = vld [vmem:[%s19 + $0x20] sm:$0xf]
        %v4923 = vld [vmem:[%s19 + $0x24] sm:$0xf]
        %v4924 = vld [vmem:[%s19 + $0x28] sm:$0xf]
        %v4925 = vld [vmem:[%s19 + $0x2c] sm:$0xf]
        %v4926 = vld [vmem:[%s19 + $0x30] sm:$0xf]
        %v4927 = vld [vmem:[%s19 + $0x34] sm:$0xf]
        %v4928 = vld [vmem:[%s19 + $0x38] sm:$0xf]
        %v4929 = vld [vmem:[%s19 + $0x3c] sm:$0xf]
        %v4930 = vld [vmem:[%s19 + $0x40] sm:$0xf]
        %v4931 = vld [vmem:[%s19 + $0x44] sm:$0xf]
        %v4932 = vld [vmem:[%s19 + $0x48] sm:$0xf]
        %v4933 = vld [vmem:[%s19 + $0x4c] sm:$0xf]
        %v4934 = vld [vmem:[%s19 + $0x50] sm:$0xf]
        %v4935 = vld [vmem:[%s19 + $0x54] sm:$0xf]
        %v4936 = vld [vmem:[%s19 + $0x58] sm:$0xf]
        %v4937 = vld [vmem:[%s19 + $0x5c] sm:$0xf]
        %v4938 = vld [vmem:[%s19 + $0x60] sm:$0xf]
        %v4939 = vld [vmem:[%s19 + $0x64] sm:$0xf]
        %v4940 = vld [vmem:[%s19 + $0x68] sm:$0xf]
        %v4941 = vld [vmem:[%s19 + $0x6c] sm:$0xf]
        %v4942 = vld [vmem:[%s19 + $0x70] sm:$0xf]
        %v4943 = vld [vmem:[%s19 + $0x74] sm:$0xf]
        %v4944 = vld [vmem:[%s19 + $0x78] sm:$0xf]
        %v4945 = vld [vmem:[%s19 + $0x7c] sm:$0xf]
        %v4978 = vunpack.c.l.b16 %v4914
        %v4979 = vunpack.c.l.b16 %v4915
        %v4980 = vunpack.c.l.b16 %v4916
        %v4981 = vunpack.c.l.b16 %v4917
        %v4982 = vunpack.c.l.b16 %v4918
        %v4983 = vunpack.c.l.b16 %v4919
        %v4984 = vunpack.c.l.b16 %v4920
        %v4985 = vunpack.c.l.b16 %v4921
        %v4986 = vunpack.c.l.b16 %v4922
        %v4987 = vunpack.c.l.b16 %v4923
        %v4988 = vunpack.c.l.b16 %v4924
        %v4989 = vunpack.c.l.b16 %v4925
        %v4990 = vunpack.c.l.b16 %v4926
        %v4991 = vunpack.c.l.b16 %v4927
        %v4992 = vunpack.c.l.b16 %v4928
        %v4993 = vunpack.c.l.b16 %v4929
        %v4994 = vunpack.c.l.b16 %v4930
        %v4995 = vunpack.c.l.b16 %v4931
        %v4996 = vunpack.c.l.b16 %v4932
        %v4997 = vunpack.c.l.b16 %v4933
        %v4998 = vunpack.c.l.b16 %v4934
        %v4999 = vunpack.c.l.b16 %v4935
        %v5000 = vunpack.c.l.b16 %v4936
        %v5001 = vunpack.c.l.b16 %v4937
        %v5002 = vunpack.c.l.b16 %v4938
        %v5003 = vunpack.c.l.b16 %v4939
        %v5004 = vunpack.c.l.b16 %v4940
        %v5005 = vunpack.c.l.b16 %v4941
        %v5006 = vunpack.c.l.b16 %v4942
        %v5007 = vunpack.c.l.b16 %v4943
        %v5008 = vunpack.c.l.b16 %v4944
        %v5009 = vunpack.c.l.b16 %v4945
        %v5010 = vpack.c.b16 %v4979, %v4978
        %v5011 = vpack.c.b16 %v4981, %v4980
        %v5012 = vpack.c.b16 %v4983, %v4982
        %v5013 = vpack.c.b16 %v4985, %v4984
        %v5014 = vpack.c.b16 %v4987, %v4986
        %v5015 = vpack.c.b16 %v4989, %v4988
        %v5016 = vpack.c.b16 %v4991, %v4990
        %v5017 = vpack.c.b16 %v4993, %v4992
        %v5018 = vpack.c.b16 %v4995, %v4994
        %v5019 = vpack.c.b16 %v4997, %v4996
        %v5020 = vpack.c.b16 %v4999, %v4998
        %v5021 = vpack.c.b16 %v5001, %v5000
        %v5022 = vpack.c.b16 %v5003, %v5002
        %v5023 = vpack.c.b16 %v5005, %v5004
        %v5024 = vpack.c.b16 %v5007, %v5006
        %v5025 = vpack.c.b16 %v5009, %v5008
        %5042 = vmatpush.bf16.msra.mxu0 %v5017
        %5043 = vmatpush.bf16.msra.mxu0 %v5016
        %5044 = vmatpush.bf16.msra.mxu0 %v5015
        %5045 = vmatpush.bf16.msra.mxu0 %v5014
        %5046 = vmatpush.bf16.msra.mxu0 %v5013
        %5047 = vmatpush.bf16.msra.mxu0 %v5012
        %5048 = vmatpush.bf16.msra.mxu0 %v5011
        %5049 = vmatpush.bf16.msra.mxu0 %v5010
        %5050 = vmatmul.bf16.gmra.mxu0 %v4906
        %v5051 = vpop.f32.mrf.mxu0
        %v5052 = vadd.f32 0.0, %v5051
        %v5053 = vpop.f32.mrf.mxu0
        %v5054 = vadd.f32 0.0, %v5053
        %5055 = vdwg.mxu0
        %5056 = vmatpush.bf16.msra.mxu0 %v5025
        %5057 = vmatpush.bf16.msra.mxu0 %v5024
        %5058 = vmatpush.bf16.msra.mxu0 %v5023
        %5059 = vmatpush.bf16.msra.mxu0 %v5022
        %5060 = vmatpush.bf16.msra.mxu0 %v5021
        %5061 = vmatpush.bf16.msra.mxu0 %v5020
        %5062 = vmatpush.bf16.msra.mxu0 %v5019
        %5063 = vmatpush.bf16.msra.mxu0 %v5018
        %5064 = vmatmul.bf16.gmra.mxu0 %v4912
        %v5065 = vpop.f32.mrf.mxu0
        %v5066 = vadd.f32 %v5052, %v5065
        %v5067 = vpop.f32.mrf.mxu0
        %v5068 = vadd.f32 %v5054, %v5067
        %5069 = vdwg.mxu0
        %v5070 = vrot.slane %v5066, 7
        %v5071 = vrot.slane %v5068, 7
        %v5072 = vsel %vm1954, %v5070, %v5071
        %v5073 = vsel %vm1954, %v5071, %v5070
        %v5090 = vunpack.c.l.b16 %v4884
        %v5091 = vunpack.c.l.b16 %v4885
        %v5092 = vunpack.c.l.b16 %v4886
        %v5093 = vunpack.c.l.b16 %v4887
        %v5094 = vunpack.c.l.b16 %v4888
        %v5095 = vunpack.c.l.b16 %v4889
        %v5096 = vunpack.c.l.b16 %v4890
        %v5097 = vunpack.c.l.b16 %v4891
        %v5098 = vunpack.c.l.b16 %v4892
        %v5099 = vunpack.c.l.b16 %v4893
        %v5100 = vunpack.c.l.b16 %v4894
        %v5101 = vunpack.c.l.b16 %v4895
        %v5102 = vunpack.c.l.b16 %v4896
        %v5103 = vunpack.c.l.b16 %v4897
        %v5104 = vunpack.c.l.b16 %v4898
        %v5105 = vunpack.c.l.b16 %v4899
        %v5106 = vpack.c.b16 %v5091, %v5090
        %v5107 = vpack.c.b16 %v5093, %v5092
        %v5108 = vpack.c.b16 %v5095, %v5094
        %v5109 = vpack.c.b16 %v5097, %v5096
        %v5110 = vpack.c.b16 %v5099, %v5098
        %v5111 = vpack.c.b16 %v5101, %v5100
        %v5112 = vpack.c.b16 %v5103, %v5102
        %v5113 = vpack.c.b16 %v5105, %v5104
        %5122 = vmatpush.bf16.msra.mxu0 %v5113
        %5123 = vmatpush.bf16.msra.mxu0 %v5112
        %5124 = vmatpush.bf16.msra.mxu0 %v5111
        %5125 = vmatpush.bf16.msra.mxu0 %v5110
        %5126 = vmatpush.bf16.msra.mxu0 %v5109
        %5127 = vmatpush.bf16.msra.mxu0 %v5108
        %5128 = vmatpush.bf16.msra.mxu0 %v5107
        %5129 = vmatpush.bf16.msra.mxu0 %v5106
        %5130 = vmatmul.bf16.gmra.mxu0 %v4906
        %v5131 = vpop.f32.mrf.mxu0
        %v5132 = vadd.f32 %v5073, %v5131
        %v5133 = vpop.f32.mrf.mxu0
        %v5134 = vadd.f32 %v5072, %v5133
        %5135 = vdwg.mxu0
        %v5136 = vperm.slane %v1946, 0
        %v5137 = vadd.f32 %v5132, %v5136
        %v5138 = vadd.f32 %v5134, %v5136
        %v5139 = vsel %vm1994, %v5137, 0.0
        %v5140 = vsel %vm1994, %v5138, 0.0
        %v5141 = vadd.f32 %v5139, %v5140
        %v5142 = vrot.slane %v5141, 4
        %v5143 = vadd.f32 %v5141, %v5142
        %v5144 = vrot.slane %v5143, 2
        %v5145 = vadd.f32 %v5143, %v5144
        %v5146 = vrot.slane %v5145, 1
        %v5147 = vadd.f32 %v5145, %v5146
        %v5148 = vmul.f32 %v5137, %v5137
        %v5149 = vmul.f32 %v5138, %v5138
        %v5150 = vsel %vm1994, %v5148, 0.0
        %v5151 = vsel %vm1994, %v5149, 0.0
        %v5152 = vadd.f32 %v5150, %v5151
        %v5153 = vrot.slane %v5152, 4
        %v5154 = vadd.f32 %v5152, %v5153
        %v5155 = vrot.slane %v5154, 2
        %v5156 = vadd.f32 %v5154, %v5155
        %v5157 = vrot.slane %v5156, 1
        %v5158 = vadd.f32 %v5156, %v5157
        %v5159 = vld [vmem:[%s26] sm:$0xff]
        %v5160 = vld [vmem:[%s26 + $0x8] sm:$0xff]
        %v5161 = vld [vmem:[%s26 + $0x10] sm:$0xff]
        %v5162 = vld [vmem:[%s26 + $0x18] sm:$0xff]
        %v5164 = vsel %vm1994, %v5147, 0
        %5166 = vmatpush.msra.mxu0 0.0
        %5167 = vmatpush.msra.mxu0 0.0
        %5168 = vmatpush.msra.mxu0 0.0
        %5169 = vmatpush.msra.mxu0 0.0
        %5170 = vmatpush.msra.mxu0 0.0
        %5171 = vmatpush.msra.mxu0 0.0
        %5172 = vmatpush.msra.mxu0 0.0
        %5173 = vmatpush.msra.mxu0 0.0
        %5174 = vmatpush.msra.mxu0 0.0
        %5175 = vmatpush.msra.mxu0 0.0
        %5176 = vmatpush.msra.mxu0 0.0
        %5177 = vmatpush.msra.mxu0 0.0
        %5178 = vmatpush.msra.mxu0 %v5162
        %5179 = vmatpush.msra.mxu0 %v5161
        %5180 = vmatpush.msra.mxu0 %v5160
        %5181 = vmatpush.msra.mxu0 %v5159
        %5182 = vmatmul.f32.gmra.mxu0 %v5164
        %v5183 = vpop.f32.mrf.mxu0
        %v5184 = vadd.f32 0.0, %v5183
        %5185 = vdwg.mxu0
        %v5187 = vsel %vm1994, %v5158, 0
        %5189 = vmatpush.msra.mxu0 0.0
        %5190 = vmatpush.msra.mxu0 0.0
        %5191 = vmatpush.msra.mxu0 0.0
        %5192 = vmatpush.msra.mxu0 0.0
        %5193 = vmatpush.msra.mxu0 0.0
        %5194 = vmatpush.msra.mxu0 0.0
        %5195 = vmatpush.msra.mxu0 0.0
        %5196 = vmatpush.msra.mxu0 0.0
        %5197 = vmatpush.msra.mxu0 0.0
        %5198 = vmatpush.msra.mxu0 0.0
        %5199 = vmatpush.msra.mxu0 0.0
        %5200 = vmatpush.msra.mxu0 0.0
        %5201 = vmatpush.msra.mxu0 %v5162
        %5202 = vmatpush.msra.mxu0 %v5161
        %5203 = vmatpush.msra.mxu0 %v5160
        %5204 = vmatpush.msra.mxu0 %v5159
        %5205 = vmatmul.f32.gmra.mxu0 %v5187
        %v5206 = vpop.f32.mrf.mxu0
        %v5207 = vadd.f32 0.0, %v5206
        %5208 = vdwg.mxu0
        %v5209 = vmul.f32 %v5184, %v5184
        %v5210 = vsub.f32 %v5207, %v5209
        %v5211 = vmax.f32 %v5210, 0.0
        %v5212 = vadd.f32 %v5211, 1e-05
        %v5213 = vrsqrt.pop %v5212
        %v5214 = vmul.f32 %v5213, %v5212
        %v5215 = vmul.f32 %v5214, %v5213
        %v5216 = vmul.f32 0.5, %v5215
        %v5217 = vsub.f32 1.5, %v5216
        %v5218 = vmul.f32 %v5213, %v5217
        %vm5219 = vweird.f32 %v5212
        %vm5220 = vweird.f32 %v5213
        %vm5221 = vmor %vm5219, %vm5220
        %v5222 = vsel %vm5221, %v5213, %v5218
        %v5223 = vperm.slane %v1948, 7
        %v5225 = vmul.f32 %v5222, %v5223
        %v5226 = vmul.f32 %v5184, %v5225
        %v5227 = vrot.slane %v1949, 7
        %v5229 = vsub.f32 %v5227, %v5226
        %v5230 = vperm.slane %v5225, 0
        %v5231 = vmul.f32 %v5137, %v5230
        %v5232 = vmul.f32 %v5138, %v5230
        %v5234 = vperm.slane %v5229, 0
        %v5236 = vadd.f32 %v5231, %v5234
        %v5237 = vadd.f32 %v5232, %v5234
        %v5238 = vxor.u32 %v5236, 2147483648
        %v5239 = vxor.u32 %v5237, 2147483648
        %v5240 = vmul.f32 %v5238, 1.442695
        %v5241 = vpow.pop %v5240
        %v5242 = vmul.f32 %v5239, 1.442695
        %v5243 = vpow.pop %v5242
        %v5244 = vadd.f32 %v5241, 1.0
        %v5245 = vadd.f32 %v5243, 1.0
        %v5246 = vrcp.pop %v5244
        %v5247 = vmul.f32 %v5244, %v5246
        %v5248 = vsub.f32 1.0, %v5247
        %v5249 = vmul.f32 %v5246, %v5248
        %v5250 = vadd.f32 %v5246, %v5249
        %vm5251 = vweird.f32 %v5244
        %vm5252 = vweird.f32 %v5246
        %vm5253 = vmor %vm5251, %vm5252
        %v5254 = vsel %vm5253, %v5246, %v5250
        %v5255 = vand.u32 2147483647, %v5244
        %vm5256 = vcmp.eq.f32.partialorder %v5255, 8.507059e+37
        %v5257 = vand.u32 %v5244, 2147483648
        %v5258 = vor.u32 1.1754944e-38, %v5257
        %v5259 = vsel %vm5256, %v5258, %v5254
        %v5260 = vmul.f32 1.0, %v5259
        %v5261 = vrcp.pop %v5245
        %v5262 = vmul.f32 %v5245, %v5261
        %v5263 = vsub.f32 1.0, %v5262
        %v5264 = vmul.f32 %v5261, %v5263
        %v5265 = vadd.f32 %v5261, %v5264
        %vm5266 = vweird.f32 %v5245
        %vm5267 = vweird.f32 %v5261
        %vm5268 = vmor %vm5266, %vm5267
        %v5269 = vsel %vm5268, %v5261, %v5265
        %v5270 = vand.u32 2147483647, %v5245
        %vm5271 = vcmp.eq.f32.partialorder %v5270, 8.507059e+37
        %v5272 = vand.u32 %v5245, 2147483648
        %v5273 = vor.u32 1.1754944e-38, %v5272
        %v5274 = vsel %vm5271, %v5273, %v5269
        %v5275 = vmul.f32 1.0, %v5274
        %v5276 = vmul.f32 %v5236, %v5260
        %v5277 = vmul.f32 %v5237, %v5275
        %v5278 = vsel %vm1994, %v5276, %v2218
        %v5279 = vsel %vm1994, %v5277, %v2220
        %v5280 = vrot.slane %v5278, 7
        %v5281 = vrot.slane %v5279, 7
        %v5282 = vsel %vm1954, %v5280, %v5281
        %v5283 = vsel %vm1954, %v5281, %v5280
        %v5284 = vmul.f32 %v5283, %v1961
        %v5285 = vmul.f32 %v5282, %v1962
        %v5286 = vrot.slane %v5278, 1
        %v5287 = vrot.slane %v5279, 1
        %v5288 = vsel %vm1967, %v5286, %v5287
        %v5289 = vsel %vm1967, %v5287, %v5286
        %v5290 = vmul.f32 %v5288, %v1974
        %v5291 = vmul.f32 %v5289, %v1975
        %5294 = vrot.lane.b32.xlu0 %v5278, 64
        %v5295 = vpop.permute.xlu0 %5294
        %5296 = vrot.lane.b32.xlu0 %v5279, 64
        %v5297 = vpop.permute.xlu0 %5296
        %v5300 = vsel %vm1997, %v5284, %v5295
        %v5301 = vsel %vm1997, %v5285, %v5297
        %v5302 = vpack.c.bf16 %v5301, %v5300
        %v5303 = vpack.c.bf16 %v5291, %v5290
        %v5304 = vld [vmem:[%s20] sm:$0xf]
        %v5305 = vld [vmem:[%s20 + $0x4] sm:$0xf]
        %v5306 = vld [vmem:[%s20 + $0x8] sm:$0xf]
        %v5307 = vld [vmem:[%s20 + $0xc] sm:$0xf]
        %v5308 = vld [vmem:[%s20 + $0x10] sm:$0xf]
        %v5309 = vld [vmem:[%s20 + $0x14] sm:$0xf]
        %v5310 = vld [vmem:[%s20 + $0x18] sm:$0xf]
        %v5311 = vld [vmem:[%s20 + $0x1c] sm:$0xf]
        %v5312 = vld [vmem:[%s20 + $0x20] sm:$0xf]
        %v5313 = vld [vmem:[%s20 + $0x24] sm:$0xf]
        %v5314 = vld [vmem:[%s20 + $0x28] sm:$0xf]
        %v5315 = vld [vmem:[%s20 + $0x2c] sm:$0xf]
        %v5316 = vld [vmem:[%s20 + $0x30] sm:$0xf]
        %v5317 = vld [vmem:[%s20 + $0x34] sm:$0xf]
        %v5318 = vld [vmem:[%s20 + $0x38] sm:$0xf]
        %v5319 = vld [vmem:[%s20 + $0x3c] sm:$0xf]
        %v5320 = vld [vmem:[%s20 + $0x40] sm:$0xf]
        %v5321 = vld [vmem:[%s20 + $0x44] sm:$0xf]
        %v5322 = vld [vmem:[%s20 + $0x48] sm:$0xf]
        %v5323 = vld [vmem:[%s20 + $0x4c] sm:$0xf]
        %v5324 = vld [vmem:[%s20 + $0x50] sm:$0xf]
        %v5325 = vld [vmem:[%s20 + $0x54] sm:$0xf]
        %v5326 = vld [vmem:[%s20 + $0x58] sm:$0xf]
        %v5327 = vld [vmem:[%s20 + $0x5c] sm:$0xf]
        %v5328 = vld [vmem:[%s21] sm:$0x1]
        %v5330 = vperm.slane %v5328, 0
        %v5356 = vunpack.c.l.b16 %v5304
        %v5357 = vunpack.c.l.b16 %v5305
        %v5358 = vunpack.c.l.b16 %v5306
        %v5359 = vunpack.c.l.b16 %v5307
        %v5360 = vunpack.c.l.b16 %v5308
        %v5361 = vunpack.c.l.b16 %v5309
        %v5362 = vunpack.c.l.b16 %v5310
        %v5363 = vunpack.c.l.b16 %v5311
        %v5364 = vunpack.c.l.b16 %v5312
        %v5365 = vunpack.c.l.b16 %v5313
        %v5366 = vunpack.c.l.b16 %v5314
        %v5367 = vunpack.c.l.b16 %v5315
        %v5368 = vunpack.c.l.b16 %v5316
        %v5369 = vunpack.c.l.b16 %v5317
        %v5370 = vunpack.c.l.b16 %v5318
        %v5371 = vunpack.c.l.b16 %v5319
        %v5372 = vunpack.c.l.b16 %v5320
        %v5373 = vunpack.c.l.b16 %v5321
        %v5374 = vunpack.c.l.b16 %v5322
        %v5375 = vunpack.c.l.b16 %v5323
        %v5376 = vunpack.c.l.b16 %v5324
        %v5377 = vunpack.c.l.b16 %v5325
        %v5378 = vunpack.c.l.b16 %v5326
        %v5379 = vunpack.c.l.b16 %v5327
        %v5380 = vpack.c.b16 %v5357, %v5356
        %v5381 = vpack.c.b16 %v5359, %v5358
        %v5382 = vpack.c.b16 %v5361, %v5360
        %v5383 = vpack.c.b16 %v5363, %v5362
        %v5384 = vpack.c.b16 %v5365, %v5364
        %v5385 = vpack.c.b16 %v5367, %v5366
        %v5386 = vpack.c.b16 %v5369, %v5368
        %v5387 = vpack.c.b16 %v5371, %v5370
        %v5388 = vpack.c.b16 %v5373, %v5372
        %v5389 = vpack.c.b16 %v5375, %v5374
        %v5390 = vpack.c.b16 %v5377, %v5376
        %v5391 = vpack.c.b16 %v5379, %v5378
        %v5405 = vsel %vm1997, %v5303, 0
        %5407 = vmatpush.bf16.msra.mxu0 %v5387
        %5408 = vmatpush.bf16.msra.mxu0 %v5386
        %5409 = vmatpush.bf16.msra.mxu0 %v5385
        %5410 = vmatpush.bf16.msra.mxu0 %v5384
        %5411 = vmatpush.bf16.msra.mxu0 %v5383
        %5412 = vmatpush.bf16.msra.mxu0 %v5382
        %5413 = vmatpush.bf16.msra.mxu0 %v5381
        %5414 = vmatpush.bf16.msra.mxu0 %v5380
        %5415 = vmatmul.bf16.gmra.mxu0 %v5302
        %v5416 = vpop.f32.mrf.mxu0
        %v5417 = vadd.f32 %v5330, %v5416
        %v5418 = vpop.f32.mrf.mxu0
        %v5419 = vadd.f32 %v5330, %v5418
        %5420 = vdwg.mxu0
        %5421 = vmatpush.bf16.msra.mxu0 0
        %5422 = vmatpush.bf16.msra.mxu0 0
        %5423 = vmatpush.bf16.msra.mxu0 0
        %5424 = vmatpush.bf16.msra.mxu0 0
        %5425 = vmatpush.bf16.msra.mxu0 %v5391
        %5426 = vmatpush.bf16.msra.mxu0 %v5390
        %5427 = vmatpush.bf16.msra.mxu0 %v5389
        %5428 = vmatpush.bf16.msra.mxu0 %v5388
        %5429 = vmatmul.bf16.gmra.mxu0 %v5405
        %v5430 = vpop.f32.mrf.mxu0
        %v5431 = vadd.f32 %v5417, %v5430
        %v5432 = vpop.f32.mrf.mxu0
        %v5433 = vadd.f32 %v5419, %v5432
        %5434 = vdwg.mxu0
        %s5435 = sld [smem:[#allocation5 + %s43]]
        %v5436 = vstv %s5435
        %v5437 = vmul.f32 %v5431, %v5436
        %v5438 = vmul.f32 %v5433, %v5436
        %5439 = vst.msk [vmem:[%s839] sm:$0xff] %vm1994, %v5437
        %5440 = vst.msk [vmem:[%s839 + $0x8] sm:$0xff] %vm1994, %v5438
        %s5441 = sand.u32 %s623, 1
        %s5442 = scalar_lea.sflag [#allocation3], %s5441
        %s5443 = sand.u32 %s623, 1
        %s5444 = smul.addr %s5443, 16
        %s5445 = scalar_lea.vmem [#allocation7], %s5444
        // Predicated region
        $region137: #{scorenet_forward.1} parent=127 // pred_check
          %p5446 = pneg %p633
        $region138: #{scorenet_forward.1} parent=127 // pred_check_branch
          %5448 = sbr.rel (%p5446) target = $region140
        $region139: #{scorenet_forward.1} parent=127 // pred_region
          %s5449 = smul.u32 2, %s43
          %5451 = vsyncadd %s5442, 0
          %s5452 = smul.addr %s5449, 8
          %s5453 = scalar_lea.hbm %s27, %s5452
          %s5454 = sshll.u32 %s5445, 4
          %s5455 = int_to_ptr.vmem [resolvable:$true] %s5454
          %s5456 = sshll.u32 %s5453, 4
          %s5457 = int_to_ptr.hbm [resolvable:$true] %s5456
          %5462 = dma.vmem_to_hbm [thread:$0]  %s5455, 256, %s5457, %s5442, 128, 128, 8
        $region140: #{scorenet_forward.1} parent=127 // pred_fallthru
          _
      $region128: #{scorenet_forward.1} parent=5 // pred_fallthru
        _
      %p5463 = scmp.le.s32.totalorder 2, %s38
      // Predicated region
      $region141: #{scorenet_forward.1} parent=5 // pred_check
        %p5464 = pneg %p5463
      $region142: #{scorenet_forward.1} parent=5 // pred_check_branch
        %5466 = sbr.rel (%p5464) target = $region144
      $region143: #{scorenet_forward.1} parent=5 // pred_region
        %s5467 = ssub.s32 %s38, 2
        // Predicated region
        $region145: #{scorenet_forward.1} parent=143 // pred_check
          %p5468 = pneg %p639
        $region146: #{scorenet_forward.1} parent=143 // pred_check_branch
          %5470 = sbr.rel (%p5468) target = $region148
        $region147: #{scorenet_forward.1} parent=143 // pred_region
          %s5471 = sand.u32 %s624, 1
          %s5472 = scalar_lea.sflag [#allocation3], %s5471
          %s5473 = sand.u32 %s624, 1
          %s5474 = smul.addr %s5473, 16
          %s5475 = scalar_lea.vmem [#allocation7], %s5474
          %5477 = dma.done %s5472, 256
        $region148: #{scorenet_forward.1} parent=143 // pred_fallthru
          _
      $region144: #{scorenet_forward.1} parent=5 // pred_fallthru
        _
    $region6: #{scorenet_forward.1} parent=1 // loop_footer
      %s42 = sadd.s32 1, %s38
    $region7: #{scorenet_forward.1} parent=1 // loop_footer_branch
      %37 = sbr.rel target = $region3
    $region8: #{scorenet_forward.1} parent=1 // loop_exit
      _
    %5478 = vsyncpa [#allocation3], 1
    %s5479 = scalar_lea.sflag [#allocation3], 1
    %5480 = vsyncpa %s5479, 1
    %5481 = vsyncpa [#allocation4], 1
    %s5482 = scalar_lea.sflag [#allocation4], 1
    %5483 = vsyncpa %s5482, 1
    %5484 = vsyncpa [#allocation6], 1

</llo_original>
